<compile_context>
chip_gen: v7x
topology: tpu7x:2x2x1
jax: 0.10.0
libtpu: 0.0.40
codegen_flags: <defaults>
</compile_context>

<pallas_src>
import functools

import numpy as np

import jax
import jax.numpy as jnp
from jax.experimental import pallas as pl
from jax.experimental.pallas import tpu as pltpu


def _boundary_masks(d, h, w):
    """(27, D*H*W) f32 {0,1} masks: mask[t, l]=1 iff tap t reads an in-bounds voxel."""
    lin = np.arange(d * h * w)
    dd = lin // (h * w)
    hh = (lin // w) % h
    ww = lin % w
    m = np.zeros((27, d * h * w), np.float32)
    for kd in range(3):
        for kh in range(3):
            for kw in range(3):
                t = (kd * 3 + kh) * 3 + kw
                ok = ((dd + kd - 1 >= 0) & (dd + kd - 1 < d) &
                      (hh + kh - 1 >= 0) & (hh + kh - 1 < h) &
                      (ww + kw - 1 >= 0) & (ww + kw - 1 < w))
                m[t] = ok.astype(np.float32)
    return jnp.asarray(m)


def _luconv3d_kernel(x_ref, w_ref, m_ref, b_ref, g_ref, be_ref, out_ref,
                     line_ref, *, d, h, w, pad, eps, neg_slope):
    """One sample per grid step.

    x_ref   : (C, S)           flattened sample, S = D*H*W          (VMEM)
    w_ref   : (27, C, C)       per-tap (C_out, C_in) weight tiles   (VMEM)
    m_ref   : (27, S)          {0,1} halo masks per tap             (VMEM)
    b/g/be  : (C, 1)           conv bias / IN gamma / IN beta       (VMEM)
    out_ref : (C, S)           output sample (lane-dense)           (VMEM)
    line_ref: (C, S + 2*pad)   line buffer with lane slack          (VMEM scratch)
    """
    c, s = out_ref.shape
    f32 = jnp.float32

    # Stage the flattened sample into the line buffer; zero the slack borders so
    # every shifted tap slice is a plain in-bounds lane slice with finite data
    # (out-of-range lanes are additionally masked to 0 before the matmul).
    line_ref[:, :pad] = jnp.zeros((c, pad), f32)
    line_ref[:, pad + s:] = jnp.zeros((c, pad), f32)
    line_ref[:, pad:pad + s] = x_ref[...].astype(f32)

    # 3x3x3 conv: one MXU matmul per tap, one accumulator update per tap.
    acc = jnp.zeros((c, s), f32)
    for kd in range(3):
        for kh in range(3):
            for kw in range(3):
                t = (kd * 3 + kh) * 3 + kw
                delta = (kd - 1) * (h * w) + (kh - 1) * w + (kw - 1)
                xs = line_ref[:, pad + delta:pad + delta + s]      # (C, S)
                if (kd, kh, kw) != (1, 1, 1):                      # halo mask
                    xs = xs * m_ref[t:t + 1, :]
                acc = acc + jnp.dot(w_ref[t], xs,
                                    preferred_element_type=f32)    # MXU

    # Fused epilogue: bias + InstanceNorm (single-pass sum / sum-of-squares,
    # biased variance) + affine + LeakyReLU, vectorized over all channels.
    inv_n = 1.0 / float(s)
    y = acc + b_ref[...]                                           # (C, S)
    sum_y = jnp.sum(y, axis=1, keepdims=True)                      # (C, 1)
    sum_y2 = jnp.sum(y * y, axis=1, keepdims=True)                 # (C, 1)
    mean = sum_y * inv_n
    var = jnp.maximum(sum_y2 * inv_n - mean * mean, 0.0)
    inv_std = jax.lax.rsqrt(var + eps)
    scale = g_ref[...] * inv_std                                   # (C, 1)
    shift = be_ref[...] - mean * scale
    z = y * scale + shift
    z = jnp.where(z >= 0.0, z, neg_slope * z)                      # LeakyReLU
    # TODO(synk): training-mode Dropout3d would need pltpu.prng_* per (n, c).
    out_ref[...] = z.astype(out_ref.dtype)


def _pick_vmem_limit():
    # Generous on v5e/v6e (128 MiB physical), conservative fallback for v7x (64 MiB).
    try:
        cap = int(pltpu.get_tpu_info().vmem_capacity_bytes)
        return min(max(cap - (16 << 20), 32 << 20), 100 << 20)
    except Exception:
        return 48 << 20


def lu_conv3d(x, weight, bias, gamma, beta, *, eps=1e-5, neg_slope=0.01,
              drop_prob=0.0):
    """Fused LUConv3d forward (inference).

    x: (N, C, D, H, W); weight: (C, C, 3, 3, 3); bias/gamma/beta: (C,).
    drop_prob is accepted for API parity; Dropout3d is identity at inference.
    """
    del drop_prob
    n, c, d, h, w = x.shape
    assert weight.shape == (c, c, 3, 3, 3)
    s = d * h * w
    # Lane slack covering the largest tap offset |delta| = H*W + W + 1,
    # rounded up to a multiple of 128 so the staged interior stays lane-aligned.
    pad = ((h * w + w + 1 + 127) // 128) * 128

    x2 = x.reshape(n, c, s)                               # contiguous -> free
    w_r = jnp.transpose(weight.astype(jnp.float32),
                        (2, 3, 4, 0, 1)).reshape(27, c, c)  # [tap, co, ci]
    masks = _boundary_masks(d, h, w)                      # (27, S) f32
    b_col = bias.astype(jnp.float32).reshape(c, 1)
    g_col = gamma.astype(jnp.float32).reshape(c, 1)
    be_col = beta.astype(jnp.float32).reshape(c, 1)

    kernel = functools.partial(_luconv3d_kernel, d=d, h=h, w=w, pad=pad,
                               eps=eps, neg_slope=neg_slope)

    out_flat = pl.pallas_call(
        kernel,
        out_shape=jax.ShapeDtypeStruct((n, c, s), x.dtype),
        grid_spec=pltpu.PrefetchScalarGridSpec(
            num_scalar_prefetch=0,
            grid=(n,),
            in_specs=[
                pl.BlockSpec((None, c, s), lambda i: (i, 0, 0)),   # sample
                pl.BlockSpec((27, c, c), lambda i: (0, 0, 0)),     # weights
                pl.BlockSpec((27, s), lambda i: (0, 0)),           # halo masks
                pl.BlockSpec((c, 1), lambda i: (0, 0)),            # bias
                pl.BlockSpec((c, 1), lambda i: (0, 0)),            # gamma
                pl.BlockSpec((c, 1), lambda i: (0, 0)),            # beta
            ],
            out_specs=pl.BlockSpec((None, c, s), lambda i: (i, 0, 0)),
            scratch_shapes=[pltpu.VMEM((c, s + 2 * pad), jnp.float32)],
        ),
        compiler_params=pltpu.CompilerParams(
            dimension_semantics=("parallel",),   # both TCs on v7x when N >= 2
            vmem_limit_bytes=_pick_vmem_limit(),
        ),
    )(x2, w_r, masks, b_col, g_col, be_col)

    return out_flat.reshape(n, c, d, h, w)


def _reference(x, weight, bias, gamma, beta, eps=1e-5, neg_slope=0.01):
    y = jax.lax.conv_general_dilated(
        x.astype(jnp.float32), weight.astype(jnp.float32),
        window_strides=(1, 1, 1), padding=((1, 1), (1, 1), (1, 1)),
        dimension_numbers=("NCDHW", "OIDHW", "NCDHW"),
        precision=jax.lax.Precision.HIGHEST)
    y = y + bias[None, :, None, None, None]
    mean = jnp.mean(y, axis=(2, 3, 4), keepdims=True)
    var = jnp.var(y, axis=(2, 3, 4), keepdims=True)   # biased, like InstanceNorm
    z = (y - mean) * jax.lax.rsqrt(var + eps)
    z = z * gamma[None, :, None, None, None] + beta[None, :, None, None, None]
    return jnp.where(z >= 0, z, neg_slope * z)


if __name__ == "__main__":
    key = jax.random.PRNGKey(0)
    k_x, k_w, k_b, k_g, k_be = jax.random.split(key, 5)

    N, C, SP = 2, 8, 8   # small shapes: batch=2, nchan=8, D=H=W=8
    x = jax.random.normal(k_x, (N, C, SP, SP, SP), dtype=jnp.float32)
    weight = 0.1 * jax.random.normal(k_w, (C, C, 3, 3, 3), dtype=jnp.float32)
    bias = 0.1 * jax.random.normal(k_b, (C,), dtype=jnp.float32)
    gamma = 1.0 + 0.1 * jax.random.normal(k_g, (C,), dtype=jnp.float32)
    beta = 0.1 * jax.random.normal(k_be, (C,), dtype=jnp.float32)

    out = lu_conv3d(x, weight, bias, gamma, beta, drop_prob=0.5)
    out = jax.block_until_ready(out)

    ref = _reference(x, weight, bias, gamma, beta)
    assert out.shape == ref.shape
    max_err = float(jnp.max(jnp.abs(out - ref)))
    # Tolerance accounts for MXU f32 pass decomposition; structural/mask errors
    # would produce O(1) mismatches.
    assert max_err < 5e-3, f"max_err={max_err}"

    print("KERNEL_OK")
</pallas_src>

<mosaic_0001>
module attributes {stable_mosaic.version = 11 : i64} {
  func.func @_luconv3d_kernel(%arg0: i32, %arg1: memref<1x8x512xf32, #tpu.memory_space<vmem>>, %arg2: memref<27x8x8xf32, #tpu.memory_space<vmem>>, %arg3: memref<27x512xf32, #tpu.memory_space<vmem>>, %arg4: memref<8x1xf32, #tpu.memory_space<vmem>>, %arg5: memref<8x1xf32, #tpu.memory_space<vmem>>, %arg6: memref<8x1xf32, #tpu.memory_space<vmem>>, %arg7: memref<1x8x512xf32, #tpu.memory_space<vmem>>, %arg8: memref<8x768xf32, #tpu.memory_space<vmem>>) attributes {dimension_semantics = [#tpu.dimension_semantics<parallel>], iteration_bounds = array<i64: 2>, scalar_prefetch = 0 : i64, scratch_operands = 1 : i64, tpu.core_type = #tpu.core_type<tc>, window_params = [{transform_indices = @transform_0, window_bounds = array<i64: 1, 8, 512>}, {pipeline_mode = #tpu.pipeline_mode<synchronous>, transform_indices = @transform_1, window_bounds = array<i64: 27, 8, 8>}, {pipeline_mode = #tpu.pipeline_mode<synchronous>, transform_indices = @transform_2, window_bounds = array<i64: 27, 512>}, {pipeline_mode = #tpu.pipeline_mode<synchronous>, transform_indices = @transform_3, window_bounds = array<i64: 8, 1>}, {pipeline_mode = #tpu.pipeline_mode<synchronous>, transform_indices = @transform_4, window_bounds = array<i64: 8, 1>}, {pipeline_mode = #tpu.pipeline_mode<synchronous>, transform_indices = @transform_5, window_bounds = array<i64: 8, 1>}, {transform_indices = @transform_6, window_bounds = array<i64: 1, 8, 512>}]} {
    %cst = arith.constant 0.000000e+00 : f32
    %0 = vector.broadcast %cst : f32 to vector<8x128xf32>
    %c0 = arith.constant 0 : index
    %c0_0 = arith.constant 0 : index
    %1 = vector.load %arg8[%c0, %c0_0] : memref<8x768xf32, #tpu.memory_space<vmem>>, vector<8x128xf32>
    tpu.vector_store %arg8[%c0, %c0_0], %0 {strides = array<i32>} : memref<8x768xf32, #tpu.memory_space<vmem>>, vector<8x128xf32>,
    %cst_1 = arith.constant 0.000000e+00 : f32
    %2 = vector.broadcast %cst_1 : f32 to vector<8x128xf32>
    %c0_2 = arith.constant 0 : index
    %c640 = arith.constant 640 : index
    %3 = vector.load %arg8[%c0_2, %c640] : memref<8x768xf32, #tpu.memory_space<vmem>>, vector<8x128xf32>
    tpu.vector_store %arg8[%c0_2, %c640], %2 {strides = array<i32>} : memref<8x768xf32, #tpu.memory_space<vmem>>, vector<8x128xf32>,
    %c0_3 = arith.constant 0 : index
    %c0_4 = arith.constant 0 : index
    %c0_5 = arith.constant 0 : index
    %4 = vector.load %arg1[%c0_3, %c0_4, %c0_5] : memref<1x8x512xf32, #tpu.memory_space<vmem>>, vector<1x8x512xf32>
    %5 = vector.shape_cast %4 : vector<1x8x512xf32> to vector<8x512xf32>
    %c0_6 = arith.constant 0 : index
    %c128 = arith.constant 128 : index
    %6 = vector.load %arg8[%c0_6, %c128] : memref<8x768xf32, #tpu.memory_space<vmem>>, vector<8x512xf32>
    tpu.vector_store %arg8[%c0_6, %c128], %5 {strides = array<i32>} : memref<8x768xf32, #tpu.memory_space<vmem>>, vector<8x512xf32>,
    %cst_7 = arith.constant 0.000000e+00 : f32
    %7 = vector.broadcast %cst_7 : f32 to vector<8x512xf32>
    %c0_8 = arith.constant 0 : index
    %c55 = arith.constant 55 : index
    %8 = vector.load %arg8[%c0_8, %c55] : memref<8x768xf32, #tpu.memory_space<vmem>>, vector<8x512xf32>
    %c0_9 = arith.constant 0 : index
    %c0_10 = arith.constant 0 : index
    %9 = vector.load %arg3[%c0_9, %c0_10] : memref<27x512xf32, #tpu.memory_space<vmem>>, vector<1x512xf32>
    %10 = vector.broadcast %9 : vector<1x512xf32> to vector<8x512xf32>
    %11 = arith.mulf %8, %10 : vector<8x512xf32>
    %c0_11 = arith.constant 0 : index
    %c0_12 = arith.constant 0 : index
    %c0_13 = arith.constant 0 : index
    %12 = vector.load %arg2[%c0_11, %c0_12, %c0_13] : memref<27x8x8xf32, #tpu.memory_space<vmem>>, vector<1x8x8xf32>
    %13 = vector.shape_cast %12 : vector<1x8x8xf32> to vector<8x8xf32>
    %cst_14 = arith.constant dense<0.000000e+00> : vector<8x512xf32>
    %14 = tpu.matmul %13, %11, %cst_14 {dimension_numbers = #tpu.dot_dimension_numbers<[1], [0], [0], [1], [0, 0, 1, 1], [], []>} : vector<8x8xf32>, vector<8x512xf32>, vector<8x512xf32> -> vector<8x512xf32>
    %15 = arith.addf %7, %14 : vector<8x512xf32>
    %c0_15 = arith.constant 0 : index
    %c56 = arith.constant 56 : index
    %16 = vector.load %arg8[%c0_15, %c56] : memref<8x768xf32, #tpu.memory_space<vmem>>, vector<8x512xf32>
    %c1 = arith.constant 1 : index
    %c0_16 = arith.constant 0 : index
    %17 = vector.load %arg3[%c1, %c0_16] : memref<27x512xf32, #tpu.memory_space<vmem>>, vector<1x512xf32>
    %18 = vector.broadcast %17 : vector<1x512xf32> to vector<8x512xf32>
    %19 = arith.mulf %16, %18 : vector<8x512xf32>
    %c1_17 = arith.constant 1 : index
    %c0_18 = arith.constant 0 : index
    %c0_19 = arith.constant 0 : index
    %20 = vector.load %arg2[%c1_17, %c0_18, %c0_19] : memref<27x8x8xf32, #tpu.memory_space<vmem>>, vector<1x8x8xf32>
    %21 = vector.shape_cast %20 : vector<1x8x8xf32> to vector<8x8xf32>
    %cst_20 = arith.constant dense<0.000000e+00> : vector<8x512xf32>
    %22 = tpu.matmul %21, %19, %cst_20 {dimension_numbers = #tpu.dot_dimension_numbers<[1], [0], [0], [1], [0, 0, 1, 1], [], []>} : vector<8x8xf32>, vector<8x512xf32>, vector<8x512xf32> -> vector<8x512xf32>
    %23 = arith.addf %15, %22 : vector<8x512xf32>
    %c0_21 = arith.constant 0 : index
    %c57 = arith.constant 57 : index
    %24 = vector.load %arg8[%c0_21, %c57] : memref<8x768xf32, #tpu.memory_space<vmem>>, vector<8x512xf32>
    %c2 = arith.constant 2 : index
    %c0_22 = arith.constant 0 : index
    %25 = vector.load %arg3[%c2, %c0_22] : memref<27x512xf32, #tpu.memory_space<vmem>>, vector<1x512xf32>
    %26 = vector.broadcast %25 : vector<1x512xf32> to vector<8x512xf32>
    %27 = arith.mulf %24, %26 : vector<8x512xf32>
    %c2_23 = arith.constant 2 : index
    %c0_24 = arith.constant 0 : index
    %c0_25 = arith.constant 0 : index
    %28 = vector.load %arg2[%c2_23, %c0_24, %c0_25] : memref<27x8x8xf32, #tpu.memory_space<vmem>>, vector<1x8x8xf32>
    %29 = vector.shape_cast %28 : vector<1x8x8xf32> to vector<8x8xf32>
    %cst_26 = arith.constant dense<0.000000e+00> : vector<8x512xf32>
    %30 = tpu.matmul %29, %27, %cst_26 {dimension_numbers = #tpu.dot_dimension_numbers<[1], [0], [0], [1], [0, 0, 1, 1], [], []>} : vector<8x8xf32>, vector<8x512xf32>, vector<8x512xf32> -> vector<8x512xf32>
    %31 = arith.addf %23, %30 : vector<8x512xf32>
    %c0_27 = arith.constant 0 : index
    %c63 = arith.constant 63 : index
    %32 = vector.load %arg8[%c0_27, %c63] : memref<8x768xf32, #tpu.memory_space<vmem>>, vector<8x512xf32>
    %c3 = arith.constant 3 : index
    %c0_28 = arith.constant 0 : index
    %33 = vector.load %arg3[%c3, %c0_28] : memref<27x512xf32, #tpu.memory_space<vmem>>, vector<1x512xf32>
    %34 = vector.broadcast %33 : vector<1x512xf32> to vector<8x512xf32>
    %35 = arith.mulf %32, %34 : vector<8x512xf32>
    %c3_29 = arith.constant 3 : index
    %c0_30 = arith.constant 0 : index
    %c0_31 = arith.constant 0 : index
    %36 = vector.load %arg2[%c3_29, %c0_30, %c0_31] : memref<27x8x8xf32, #tpu.memory_space<vmem>>, vector<1x8x8xf32>
    %37 = vector.shape_cast %36 : vector<1x8x8xf32> to vector<8x8xf32>
    %cst_32 = arith.constant dense<0.000000e+00> : vector<8x512xf32>
    %38 = tpu.matmul %37, %35, %cst_32 {dimension_numbers = #tpu.dot_dimension_numbers<[1], [0], [0], [1], [0, 0, 1, 1], [], []>} : vector<8x8xf32>, vector<8x512xf32>, vector<8x512xf32> -> vector<8x512xf32>
    %39 = arith.addf %31, %38 : vector<8x512xf32>
    %c0_33 = arith.constant 0 : index
    %c64 = arith.constant 64 : index
    %40 = vector.load %arg8[%c0_33, %c64] : memref<8x768xf32, #tpu.memory_space<vmem>>, vector<8x512xf32>
    %c4 = arith.constant 4 : index
    %c0_34 = arith.constant 0 : index
    %41 = vector.load %arg3[%c4, %c0_34] : memref<27x512xf32, #tpu.memory_space<vmem>>, vector<1x512xf32>
    %42 = vector.broadcast %41 : vector<1x512xf32> to vector<8x512xf32>
    %43 = arith.mulf %40, %42 : vector<8x512xf32>
    %c4_35 = arith.constant 4 : index
    %c0_36 = arith.constant 0 : index
    %c0_37 = arith.constant 0 : index
    %44 = vector.load %arg2[%c4_35, %c0_36, %c0_37] : memref<27x8x8xf32, #tpu.memory_space<vmem>>, vector<1x8x8xf32>
    %45 = vector.shape_cast %44 : vector<1x8x8xf32> to vector<8x8xf32>
    %cst_38 = arith.constant dense<0.000000e+00> : vector<8x512xf32>
    %46 = tpu.matmul %45, %43, %cst_38 {dimension_numbers = #tpu.dot_dimension_numbers<[1], [0], [0], [1], [0, 0, 1, 1], [], []>} : vector<8x8xf32>, vector<8x512xf32>, vector<8x512xf32> -> vector<8x512xf32>
    %47 = arith.addf %39, %46 : vector<8x512xf32>
    %c0_39 = arith.constant 0 : index
    %c65 = arith.constant 65 : index
    %48 = vector.load %arg8[%c0_39, %c65] : memref<8x768xf32, #tpu.memory_space<vmem>>, vector<8x512xf32>
    %c5 = arith.constant 5 : index
    %c0_40 = arith.constant 0 : index
    %49 = vector.load %arg3[%c5, %c0_40] : memref<27x512xf32, #tpu.memory_space<vmem>>, vector<1x512xf32>
    %50 = vector.broadcast %49 : vector<1x512xf32> to vector<8x512xf32>
    %51 = arith.mulf %48, %50 : vector<8x512xf32>
    %c5_41 = arith.constant 5 : index
    %c0_42 = arith.constant 0 : index
    %c0_43 = arith.constant 0 : index
    %52 = vector.load %arg2[%c5_41, %c0_42, %c0_43] : memref<27x8x8xf32, #tpu.memory_space<vmem>>, vector<1x8x8xf32>
    %53 = vector.shape_cast %52 : vector<1x8x8xf32> to vector<8x8xf32>
    %cst_44 = arith.constant dense<0.000000e+00> : vector<8x512xf32>
    %54 = tpu.matmul %53, %51, %cst_44 {dimension_numbers = #tpu.dot_dimension_numbers<[1], [0], [0], [1], [0, 0, 1, 1], [], []>} : vector<8x8xf32>, vector<8x512xf32>, vector<8x512xf32> -> vector<8x512xf32>
    %55 = arith.addf %47, %54 : vector<8x512xf32>
    %c0_45 = arith.constant 0 : index
    %c71 = arith.constant 71 : index
    %56 = vector.load %arg8[%c0_45, %c71] : memref<8x768xf32, #tpu.memory_space<vmem>>, vector<8x512xf32>
    %c6 = arith.constant 6 : index
    %c0_46 = arith.constant 0 : index
    %57 = vector.load %arg3[%c6, %c0_46] : memref<27x512xf32, #tpu.memory_space<vmem>>, vector<1x512xf32>
    %58 = vector.broadcast %57 : vector<1x512xf32> to vector<8x512xf32>
    %59 = arith.mulf %56, %58 : vector<8x512xf32>
    %c6_47 = arith.constant 6 : index
    %c0_48 = arith.constant 0 : index
    %c0_49 = arith.constant 0 : index
    %60 = vector.load %arg2[%c6_47, %c0_48, %c0_49] : memref<27x8x8xf32, #tpu.memory_space<vmem>>, vector<1x8x8xf32>
    %61 = vector.shape_cast %60 : vector<1x8x8xf32> to vector<8x8xf32>
    %cst_50 = arith.constant dense<0.000000e+00> : vector<8x512xf32>
    %62 = tpu.matmul %61, %59, %cst_50 {dimension_numbers = #tpu.dot_dimension_numbers<[1], [0], [0], [1], [0, 0, 1, 1], [], []>} : vector<8x8xf32>, vector<8x512xf32>, vector<8x512xf32> -> vector<8x512xf32>
    %63 = arith.addf %55, %62 : vector<8x512xf32>
    %c0_51 = arith.constant 0 : index
    %c72 = arith.constant 72 : index
    %64 = vector.load %arg8[%c0_51, %c72] : memref<8x768xf32, #tpu.memory_space<vmem>>, vector<8x512xf32>
    %c7 = arith.constant 7 : index
    %c0_52 = arith.constant 0 : index
    %65 = vector.load %arg3[%c7, %c0_52] : memref<27x512xf32, #tpu.memory_space<vmem>>, vector<1x512xf32>
    %66 = vector.broadcast %65 : vector<1x512xf32> to vector<8x512xf32>
    %67 = arith.mulf %64, %66 : vector<8x512xf32>
    %c7_53 = arith.constant 7 : index
    %c0_54 = arith.constant 0 : index
    %c0_55 = arith.constant 0 : index
    %68 = vector.load %arg2[%c7_53, %c0_54, %c0_55] : memref<27x8x8xf32, #tpu.memory_space<vmem>>, vector<1x8x8xf32>
    %69 = vector.shape_cast %68 : vector<1x8x8xf32> to vector<8x8xf32>
    %cst_56 = arith.constant dense<0.000000e+00> : vector<8x512xf32>
    %70 = tpu.matmul %69, %67, %cst_56 {dimension_numbers = #tpu.dot_dimension_numbers<[1], [0], [0], [1], [0, 0, 1, 1], [], []>} : vector<8x8xf32>, vector<8x512xf32>, vector<8x512xf32> -> vector<8x512xf32>
    %71 = arith.addf %63, %70 : vector<8x512xf32>
    %c0_57 = arith.constant 0 : index
    %c73 = arith.constant 73 : index
    %72 = vector.load %arg8[%c0_57, %c73] : memref<8x768xf32, #tpu.memory_space<vmem>>, vector<8x512xf32>
    %c8 = arith.constant 8 : index
    %c0_58 = arith.constant 0 : index
    %73 = vector.load %arg3[%c8, %c0_58] : memref<27x512xf32, #tpu.memory_space<vmem>>, vector<1x512xf32>
    %74 = vector.broadcast %73 : vector<1x512xf32> to vector<8x512xf32>
    %75 = arith.mulf %72, %74 : vector<8x512xf32>
    %c8_59 = arith.constant 8 : index
    %c0_60 = arith.constant 0 : index
    %c0_61 = arith.constant 0 : index
    %76 = vector.load %arg2[%c8_59, %c0_60, %c0_61] : memref<27x8x8xf32, #tpu.memory_space<vmem>>, vector<1x8x8xf32>
    %77 = vector.shape_cast %76 : vector<1x8x8xf32> to vector<8x8xf32>
    %cst_62 = arith.constant dense<0.000000e+00> : vector<8x512xf32>
    %78 = tpu.matmul %77, %75, %cst_62 {dimension_numbers = #tpu.dot_dimension_numbers<[1], [0], [0], [1], [0, 0, 1, 1], [], []>} : vector<8x8xf32>, vector<8x512xf32>, vector<8x512xf32> -> vector<8x512xf32>
    %79 = arith.addf %71, %78 : vector<8x512xf32>
    %c0_63 = arith.constant 0 : index
    %c119 = arith.constant 119 : index
    %80 = vector.load %arg8[%c0_63, %c119] : memref<8x768xf32, #tpu.memory_space<vmem>>, vector<8x512xf32>
    %c9 = arith.constant 9 : index
    %c0_64 = arith.constant 0 : index
    %81 = vector.load %arg3[%c9, %c0_64] : memref<27x512xf32, #tpu.memory_space<vmem>>, vector<1x512xf32>
    %82 = vector.broadcast %81 : vector<1x512xf32> to vector<8x512xf32>
    %83 = arith.mulf %80, %82 : vector<8x512xf32>
    %c9_65 = arith.constant 9 : index
    %c0_66 = arith.constant 0 : index
    %c0_67 = arith.constant 0 : index
    %84 = vector.load %arg2[%c9_65, %c0_66, %c0_67] : memref<27x8x8xf32, #tpu.memory_space<vmem>>, vector<1x8x8xf32>
    %85 = vector.shape_cast %84 : vector<1x8x8xf32> to vector<8x8xf32>
    %cst_68 = arith.constant dense<0.000000e+00> : vector<8x512xf32>
    %86 = tpu.matmul %85, %83, %cst_68 {dimension_numbers = #tpu.dot_dimension_numbers<[1], [0], [0], [1], [0, 0, 1, 1], [], []>} : vector<8x8xf32>, vector<8x512xf32>, vector<8x512xf32> -> vector<8x512xf32>
    %87 = arith.addf %79, %86 : vector<8x512xf32>
    %c0_69 = arith.constant 0 : index
    %c120 = arith.constant 120 : index
    %88 = vector.load %arg8[%c0_69, %c120] : memref<8x768xf32, #tpu.memory_space<vmem>>, vector<8x512xf32>
    %c10 = arith.constant 10 : index
    %c0_70 = arith.constant 0 : index
    %89 = vector.load %arg3[%c10, %c0_70] : memref<27x512xf32, #tpu.memory_space<vmem>>, vector<1x512xf32>
    %90 = vector.broadcast %89 : vector<1x512xf32> to vector<8x512xf32>
    %91 = arith.mulf %88, %90 : vector<8x512xf32>
    %c10_71 = arith.constant 10 : index
    %c0_72 = arith.constant 0 : index
    %c0_73 = arith.constant 0 : index
    %92 = vector.load %arg2[%c10_71, %c0_72, %c0_73] : memref<27x8x8xf32, #tpu.memory_space<vmem>>, vector<1x8x8xf32>
    %93 = vector.shape_cast %92 : vector<1x8x8xf32> to vector<8x8xf32>
    %cst_74 = arith.constant dense<0.000000e+00> : vector<8x512xf32>
    %94 = tpu.matmul %93, %91, %cst_74 {dimension_numbers = #tpu.dot_dimension_numbers<[1], [0], [0], [1], [0, 0, 1, 1], [], []>} : vector<8x8xf32>, vector<8x512xf32>, vector<8x512xf32> -> vector<8x512xf32>
    %95 = arith.addf %87, %94 : vector<8x512xf32>
    %c0_75 = arith.constant 0 : index
    %c121 = arith.constant 121 : index
    %96 = vector.load %arg8[%c0_75, %c121] : memref<8x768xf32, #tpu.memory_space<vmem>>, vector<8x512xf32>
    %c11 = arith.constant 11 : index
    %c0_76 = arith.constant 0 : index
    %97 = vector.load %arg3[%c11, %c0_76] : memref<27x512xf32, #tpu.memory_space<vmem>>, vector<1x512xf32>
    %98 = vector.broadcast %97 : vector<1x512xf32> to vector<8x512xf32>
    %99 = arith.mulf %96, %98 : vector<8x512xf32>
    %c11_77 = arith.constant 11 : index
    %c0_78 = arith.constant 0 : index
    %c0_79 = arith.constant 0 : index
    %100 = vector.load %arg2[%c11_77, %c0_78, %c0_79] : memref<27x8x8xf32, #tpu.memory_space<vmem>>, vector<1x8x8xf32>
    %101 = vector.shape_cast %100 : vector<1x8x8xf32> to vector<8x8xf32>
    %cst_80 = arith.constant dense<0.000000e+00> : vector<8x512xf32>
    %102 = tpu.matmul %101, %99, %cst_80 {dimension_numbers = #tpu.dot_dimension_numbers<[1], [0], [0], [1], [0, 0, 1, 1], [], []>} : vector<8x8xf32>, vector<8x512xf32>, vector<8x512xf32> -> vector<8x512xf32>
    %103 = arith.addf %95, %102 : vector<8x512xf32>
    %c0_81 = arith.constant 0 : index
    %c127 = arith.constant 127 : index
    %104 = vector.load %arg8[%c0_81, %c127] : memref<8x768xf32, #tpu.memory_space<vmem>>, vector<8x512xf32>
    %c12 = arith.constant 12 : index
    %c0_82 = arith.constant 0 : index
    %105 = vector.load %arg3[%c12, %c0_82] : memref<27x512xf32, #tpu.memory_space<vmem>>, vector<1x512xf32>
    %106 = vector.broadcast %105 : vector<1x512xf32> to vector<8x512xf32>
    %107 = arith.mulf %104, %106 : vector<8x512xf32>
    %c12_83 = arith.constant 12 : index
    %c0_84 = arith.constant 0 : index
    %c0_85 = arith.constant 0 : index
    %108 = vector.load %arg2[%c12_83, %c0_84, %c0_85] : memref<27x8x8xf32, #tpu.memory_space<vmem>>, vector<1x8x8xf32>
    %109 = vector.shape_cast %108 : vector<1x8x8xf32> to vector<8x8xf32>
    %cst_86 = arith.constant dense<0.000000e+00> : vector<8x512xf32>
    %110 = tpu.matmul %109, %107, %cst_86 {dimension_numbers = #tpu.dot_dimension_numbers<[1], [0], [0], [1], [0, 0, 1, 1], [], []>} : vector<8x8xf32>, vector<8x512xf32>, vector<8x512xf32> -> vector<8x512xf32>
    %111 = arith.addf %103, %110 : vector<8x512xf32>
    %c0_87 = arith.constant 0 : index
    %c128_88 = arith.constant 128 : index
    %112 = vector.load %arg8[%c0_87, %c128_88] : memref<8x768xf32, #tpu.memory_space<vmem>>, vector<8x512xf32>
    %c13 = arith.constant 13 : index
    %c0_89 = arith.constant 0 : index
    %c0_90 = arith.constant 0 : index
    %113 = vector.load %arg2[%c13, %c0_89, %c0_90] : memref<27x8x8xf32, #tpu.memory_space<vmem>>, vector<1x8x8xf32>
    %114 = vector.shape_cast %113 : vector<1x8x8xf32> to vector<8x8xf32>
    %cst_91 = arith.constant dense<0.000000e+00> : vector<8x512xf32>
    %115 = tpu.matmul %114, %112, %cst_91 {dimension_numbers = #tpu.dot_dimension_numbers<[1], [0], [0], [1], [0, 0, 1, 1], [], []>} : vector<8x8xf32>, vector<8x512xf32>, vector<8x512xf32> -> vector<8x512xf32>
    %116 = arith.addf %111, %115 : vector<8x512xf32>
    %c0_92 = arith.constant 0 : index
    %c129 = arith.constant 129 : index
    %117 = vector.load %arg8[%c0_92, %c129] : memref<8x768xf32, #tpu.memory_space<vmem>>, vector<8x512xf32>
    %c14 = arith.constant 14 : index
    %c0_93 = arith.constant 0 : index
    %118 = vector.load %arg3[%c14, %c0_93] : memref<27x512xf32, #tpu.memory_space<vmem>>, vector<1x512xf32>
    %119 = vector.broadcast %118 : vector<1x512xf32> to vector<8x512xf32>
    %120 = arith.mulf %117, %119 : vector<8x512xf32>
    %c14_94 = arith.constant 14 : index
    %c0_95 = arith.constant 0 : index
    %c0_96 = arith.constant 0 : index
    %121 = vector.load %arg2[%c14_94, %c0_95, %c0_96] : memref<27x8x8xf32, #tpu.memory_space<vmem>>, vector<1x8x8xf32>
    %122 = vector.shape_cast %121 : vector<1x8x8xf32> to vector<8x8xf32>
    %cst_97 = arith.constant dense<0.000000e+00> : vector<8x512xf32>
    %123 = tpu.matmul %122, %120, %cst_97 {dimension_numbers = #tpu.dot_dimension_numbers<[1], [0], [0], [1], [0, 0, 1, 1], [], []>} : vector<8x8xf32>, vector<8x512xf32>, vector<8x512xf32> -> vector<8x512xf32>
    %124 = arith.addf %116, %123 : vector<8x512xf32>
    %c0_98 = arith.constant 0 : index
    %c135 = arith.constant 135 : index
    %125 = vector.load %arg8[%c0_98, %c135] : memref<8x768xf32, #tpu.memory_space<vmem>>, vector<8x512xf32>
    %c15 = arith.constant 15 : index
    %c0_99 = arith.constant 0 : index
    %126 = vector.load %arg3[%c15, %c0_99] : memref<27x512xf32, #tpu.memory_space<vmem>>, vector<1x512xf32>
    %127 = vector.broadcast %126 : vector<1x512xf32> to vector<8x512xf32>
    %128 = arith.mulf %125, %127 : vector<8x512xf32>
    %c15_100 = arith.constant 15 : index
    %c0_101 = arith.constant 0 : index
    %c0_102 = arith.constant 0 : index
    %129 = vector.load %arg2[%c15_100, %c0_101, %c0_102] : memref<27x8x8xf32, #tpu.memory_space<vmem>>, vector<1x8x8xf32>
    %130 = vector.shape_cast %129 : vector<1x8x8xf32> to vector<8x8xf32>
    %cst_103 = arith.constant dense<0.000000e+00> : vector<8x512xf32>
    %131 = tpu.matmul %130, %128, %cst_103 {dimension_numbers = #tpu.dot_dimension_numbers<[1], [0], [0], [1], [0, 0, 1, 1], [], []>} : vector<8x8xf32>, vector<8x512xf32>, vector<8x512xf32> -> vector<8x512xf32>
    %132 = arith.addf %124, %131 : vector<8x512xf32>
    %c0_104 = arith.constant 0 : index
    %c136 = arith.constant 136 : index
    %133 = vector.load %arg8[%c0_104, %c136] : memref<8x768xf32, #tpu.memory_space<vmem>>, vector<8x512xf32>
    %c16 = arith.constant 16 : index
    %c0_105 = arith.constant 0 : index
    %134 = vector.load %arg3[%c16, %c0_105] : memref<27x512xf32, #tpu.memory_space<vmem>>, vector<1x512xf32>
    %135 = vector.broadcast %134 : vector<1x512xf32> to vector<8x512xf32>
    %136 = arith.mulf %133, %135 : vector<8x512xf32>
    %c16_106 = arith.constant 16 : index
    %c0_107 = arith.constant 0 : index
    %c0_108 = arith.constant 0 : index
    %137 = vector.load %arg2[%c16_106, %c0_107, %c0_108] : memref<27x8x8xf32, #tpu.memory_space<vmem>>, vector<1x8x8xf32>
    %138 = vector.shape_cast %137 : vector<1x8x8xf32> to vector<8x8xf32>
    %cst_109 = arith.constant dense<0.000000e+00> : vector<8x512xf32>
    %139 = tpu.matmul %138, %136, %cst_109 {dimension_numbers = #tpu.dot_dimension_numbers<[1], [0], [0], [1], [0, 0, 1, 1], [], []>} : vector<8x8xf32>, vector<8x512xf32>, vector<8x512xf32> -> vector<8x512xf32>
    %140 = arith.addf %132, %139 : vector<8x512xf32>
    %c0_110 = arith.constant 0 : index
    %c137 = arith.constant 137 : index
    %141 = vector.load %arg8[%c0_110, %c137] : memref<8x768xf32, #tpu.memory_space<vmem>>, vector<8x512xf32>
    %c17 = arith.constant 17 : index
    %c0_111 = arith.constant 0 : index
    %142 = vector.load %arg3[%c17, %c0_111] : memref<27x512xf32, #tpu.memory_space<vmem>>, vector<1x512xf32>
    %143 = vector.broadcast %142 : vector<1x512xf32> to vector<8x512xf32>
    %144 = arith.mulf %141, %143 : vector<8x512xf32>
    %c17_112 = arith.constant 17 : index
    %c0_113 = arith.constant 0 : index
    %c0_114 = arith.constant 0 : index
    %145 = vector.load %arg2[%c17_112, %c0_113, %c0_114] : memref<27x8x8xf32, #tpu.memory_space<vmem>>, vector<1x8x8xf32>
    %146 = vector.shape_cast %145 : vector<1x8x8xf32> to vector<8x8xf32>
    %cst_115 = arith.constant dense<0.000000e+00> : vector<8x512xf32>
    %147 = tpu.matmul %146, %144, %cst_115 {dimension_numbers = #tpu.dot_dimension_numbers<[1], [0], [0], [1], [0, 0, 1, 1], [], []>} : vector<8x8xf32>, vector<8x512xf32>, vector<8x512xf32> -> vector<8x512xf32>
    %148 = arith.addf %140, %147 : vector<8x512xf32>
    %c0_116 = arith.constant 0 : index
    %c183 = arith.constant 183 : index
    %149 = vector.load %arg8[%c0_116, %c183] : memref<8x768xf32, #tpu.memory_space<vmem>>, vector<8x512xf32>
    %c18 = arith.constant 18 : index
    %c0_117 = arith.constant 0 : index
    %150 = vector.load %arg3[%c18, %c0_117] : memref<27x512xf32, #tpu.memory_space<vmem>>, vector<1x512xf32>
    %151 = vector.broadcast %150 : vector<1x512xf32> to vector<8x512xf32>
    %152 = arith.mulf %149, %151 : vector<8x512xf32>
    %c18_118 = arith.constant 18 : index
    %c0_119 = arith.constant 0 : index
    %c0_120 = arith.constant 0 : index
    %153 = vector.load %arg2[%c18_118, %c0_119, %c0_120] : memref<27x8x8xf32, #tpu.memory_space<vmem>>, vector<1x8x8xf32>
    %154 = vector.shape_cast %153 : vector<1x8x8xf32> to vector<8x8xf32>
    %cst_121 = arith.constant dense<0.000000e+00> : vector<8x512xf32>
    %155 = tpu.matmul %154, %152, %cst_121 {dimension_numbers = #tpu.dot_dimension_numbers<[1], [0], [0], [1], [0, 0, 1, 1], [], []>} : vector<8x8xf32>, vector<8x512xf32>, vector<8x512xf32> -> vector<8x512xf32>
    %156 = arith.addf %148, %155 : vector<8x512xf32>
    %c0_122 = arith.constant 0 : index
    %c184 = arith.constant 184 : index
    %157 = vector.load %arg8[%c0_122, %c184] : memref<8x768xf32, #tpu.memory_space<vmem>>, vector<8x512xf32>
    %c19 = arith.constant 19 : index
    %c0_123 = arith.constant 0 : index
    %158 = vector.load %arg3[%c19, %c0_123] : memref<27x512xf32, #tpu.memory_space<vmem>>, vector<1x512xf32>
    %159 = vector.broadcast %158 : vector<1x512xf32> to vector<8x512xf32>
    %160 = arith.mulf %157, %159 : vector<8x512xf32>
    %c19_124 = arith.constant 19 : index
    %c0_125 = arith.constant 0 : index
    %c0_126 = arith.constant 0 : index
    %161 = vector.load %arg2[%c19_124, %c0_125, %c0_126] : memref<27x8x8xf32, #tpu.memory_space<vmem>>, vector<1x8x8xf32>
    %162 = vector.shape_cast %161 : vector<1x8x8xf32> to vector<8x8xf32>
    %cst_127 = arith.constant dense<0.000000e+00> : vector<8x512xf32>
    %163 = tpu.matmul %162, %160, %cst_127 {dimension_numbers = #tpu.dot_dimension_numbers<[1], [0], [0], [1], [0, 0, 1, 1], [], []>} : vector<8x8xf32>, vector<8x512xf32>, vector<8x512xf32> -> vector<8x512xf32>
    %164 = arith.addf %156, %163 : vector<8x512xf32>
    %c0_128 = arith.constant 0 : index
    %c185 = arith.constant 185 : index
    %165 = vector.load %arg8[%c0_128, %c185] : memref<8x768xf32, #tpu.memory_space<vmem>>, vector<8x512xf32>
    %c20 = arith.constant 20 : index
    %c0_129 = arith.constant 0 : index
    %166 = vector.load %arg3[%c20, %c0_129] : memref<27x512xf32, #tpu.memory_space<vmem>>, vector<1x512xf32>
    %167 = vector.broadcast %166 : vector<1x512xf32> to vector<8x512xf32>
    %168 = arith.mulf %165, %167 : vector<8x512xf32>
    %c20_130 = arith.constant 20 : index
    %c0_131 = arith.constant 0 : index
    %c0_132 = arith.constant 0 : index
    %169 = vector.load %arg2[%c20_130, %c0_131, %c0_132] : memref<27x8x8xf32, #tpu.memory_space<vmem>>, vector<1x8x8xf32>
    %170 = vector.shape_cast %169 : vector<1x8x8xf32> to vector<8x8xf32>
    %cst_133 = arith.constant dense<0.000000e+00> : vector<8x512xf32>
    %171 = tpu.matmul %170, %168, %cst_133 {dimension_numbers = #tpu.dot_dimension_numbers<[1], [0], [0], [1], [0, 0, 1, 1], [], []>} : vector<8x8xf32>, vector<8x512xf32>, vector<8x512xf32> -> vector<8x512xf32>
    %172 = arith.addf %164, %171 : vector<8x512xf32>
    %c0_134 = arith.constant 0 : index
    %c191 = arith.constant 191 : index
    %173 = vector.load %arg8[%c0_134, %c191] : memref<8x768xf32, #tpu.memory_space<vmem>>, vector<8x512xf32>
    %c21 = arith.constant 21 : index
    %c0_135 = arith.constant 0 : index
    %174 = vector.load %arg3[%c21, %c0_135] : memref<27x512xf32, #tpu.memory_space<vmem>>, vector<1x512xf32>
    %175 = vector.broadcast %174 : vector<1x512xf32> to vector<8x512xf32>
    %176 = arith.mulf %173, %175 : vector<8x512xf32>
    %c21_136 = arith.constant 21 : index
    %c0_137 = arith.constant 0 : index
    %c0_138 = arith.constant 0 : index
    %177 = vector.load %arg2[%c21_136, %c0_137, %c0_138] : memref<27x8x8xf32, #tpu.memory_space<vmem>>, vector<1x8x8xf32>
    %178 = vector.shape_cast %177 : vector<1x8x8xf32> to vector<8x8xf32>
    %cst_139 = arith.constant dense<0.000000e+00> : vector<8x512xf32>
    %179 = tpu.matmul %178, %176, %cst_139 {dimension_numbers = #tpu.dot_dimension_numbers<[1], [0], [0], [1], [0, 0, 1, 1], [], []>} : vector<8x8xf32>, vector<8x512xf32>, vector<8x512xf32> -> vector<8x512xf32>
    %180 = arith.addf %172, %179 : vector<8x512xf32>
    %c0_140 = arith.constant 0 : index
    %c192 = arith.constant 192 : index
    %181 = vector.load %arg8[%c0_140, %c192] : memref<8x768xf32, #tpu.memory_space<vmem>>, vector<8x512xf32>
    %c22 = arith.constant 22 : index
    %c0_141 = arith.constant 0 : index
    %182 = vector.load %arg3[%c22, %c0_141] : memref<27x512xf32, #tpu.memory_space<vmem>>, vector<1x512xf32>
    %183 = vector.broadcast %182 : vector<1x512xf32> to vector<8x512xf32>
    %184 = arith.mulf %181, %183 : vector<8x512xf32>
    %c22_142 = arith.constant 22 : index
    %c0_143 = arith.constant 0 : index
    %c0_144 = arith.constant 0 : index
    %185 = vector.load %arg2[%c22_142, %c0_143, %c0_144] : memref<27x8x8xf32, #tpu.memory_space<vmem>>, vector<1x8x8xf32>
    %186 = vector.shape_cast %185 : vector<1x8x8xf32> to vector<8x8xf32>
    %cst_145 = arith.constant dense<0.000000e+00> : vector<8x512xf32>
    %187 = tpu.matmul %186, %184, %cst_145 {dimension_numbers = #tpu.dot_dimension_numbers<[1], [0], [0], [1], [0, 0, 1, 1], [], []>} : vector<8x8xf32>, vector<8x512xf32>, vector<8x512xf32> -> vector<8x512xf32>
    %188 = arith.addf %180, %187 : vector<8x512xf32>
    %c0_146 = arith.constant 0 : index
    %c193 = arith.constant 193 : index
    %189 = vector.load %arg8[%c0_146, %c193] : memref<8x768xf32, #tpu.memory_space<vmem>>, vector<8x512xf32>
    %c23 = arith.constant 23 : index
    %c0_147 = arith.constant 0 : index
    %190 = vector.load %arg3[%c23, %c0_147] : memref<27x512xf32, #tpu.memory_space<vmem>>, vector<1x512xf32>
    %191 = vector.broadcast %190 : vector<1x512xf32> to vector<8x512xf32>
    %192 = arith.mulf %189, %191 : vector<8x512xf32>
    %c23_148 = arith.constant 23 : index
    %c0_149 = arith.constant 0 : index
    %c0_150 = arith.constant 0 : index
    %193 = vector.load %arg2[%c23_148, %c0_149, %c0_150] : memref<27x8x8xf32, #tpu.memory_space<vmem>>, vector<1x8x8xf32>
    %194 = vector.shape_cast %193 : vector<1x8x8xf32> to vector<8x8xf32>
    %cst_151 = arith.constant dense<0.000000e+00> : vector<8x512xf32>
    %195 = tpu.matmul %194, %192, %cst_151 {dimension_numbers = #tpu.dot_dimension_numbers<[1], [0], [0], [1], [0, 0, 1, 1], [], []>} : vector<8x8xf32>, vector<8x512xf32>, vector<8x512xf32> -> vector<8x512xf32>
    %196 = arith.addf %188, %195 : vector<8x512xf32>
    %c0_152 = arith.constant 0 : index
    %c199 = arith.constant 199 : index
    %197 = vector.load %arg8[%c0_152, %c199] : memref<8x768xf32, #tpu.memory_space<vmem>>, vector<8x512xf32>
    %c24 = arith.constant 24 : index
    %c0_153 = arith.constant 0 : index
    %198 = vector.load %arg3[%c24, %c0_153] : memref<27x512xf32, #tpu.memory_space<vmem>>, vector<1x512xf32>
    %199 = vector.broadcast %198 : vector<1x512xf32> to vector<8x512xf32>
    %200 = arith.mulf %197, %199 : vector<8x512xf32>
    %c24_154 = arith.constant 24 : index
    %c0_155 = arith.constant 0 : index
    %c0_156 = arith.constant 0 : index
    %201 = vector.load %arg2[%c24_154, %c0_155, %c0_156] : memref<27x8x8xf32, #tpu.memory_space<vmem>>, vector<1x8x8xf32>
    %202 = vector.shape_cast %201 : vector<1x8x8xf32> to vector<8x8xf32>
    %cst_157 = arith.constant dense<0.000000e+00> : vector<8x512xf32>
    %203 = tpu.matmul %202, %200, %cst_157 {dimension_numbers = #tpu.dot_dimension_numbers<[1], [0], [0], [1], [0, 0, 1, 1], [], []>} : vector<8x8xf32>, vector<8x512xf32>, vector<8x512xf32> -> vector<8x512xf32>
    %204 = arith.addf %196, %203 : vector<8x512xf32>
    %c0_158 = arith.constant 0 : index
    %c200 = arith.constant 200 : index
    %205 = vector.load %arg8[%c0_158, %c200] : memref<8x768xf32, #tpu.memory_space<vmem>>, vector<8x512xf32>
    %c25 = arith.constant 25 : index
    %c0_159 = arith.constant 0 : index
    %206 = vector.load %arg3[%c25, %c0_159] : memref<27x512xf32, #tpu.memory_space<vmem>>, vector<1x512xf32>
    %207 = vector.broadcast %206 : vector<1x512xf32> to vector<8x512xf32>
    %208 = arith.mulf %205, %207 : vector<8x512xf32>
    %c25_160 = arith.constant 25 : index
    %c0_161 = arith.constant 0 : index
    %c0_162 = arith.constant 0 : index
    %209 = vector.load %arg2[%c25_160, %c0_161, %c0_162] : memref<27x8x8xf32, #tpu.memory_space<vmem>>, vector<1x8x8xf32>
    %210 = vector.shape_cast %209 : vector<1x8x8xf32> to vector<8x8xf32>
    %cst_163 = arith.constant dense<0.000000e+00> : vector<8x512xf32>
    %211 = tpu.matmul %210, %208, %cst_163 {dimension_numbers = #tpu.dot_dimension_numbers<[1], [0], [0], [1], [0, 0, 1, 1], [], []>} : vector<8x8xf32>, vector<8x512xf32>, vector<8x512xf32> -> vector<8x512xf32>
    %212 = arith.addf %204, %211 : vector<8x512xf32>
    %c0_164 = arith.constant 0 : index
    %c201 = arith.constant 201 : index
    %213 = vector.load %arg8[%c0_164, %c201] : memref<8x768xf32, #tpu.memory_space<vmem>>, vector<8x512xf32>
    %c26 = arith.constant 26 : index
    %c0_165 = arith.constant 0 : index
    %214 = vector.load %arg3[%c26, %c0_165] : memref<27x512xf32, #tpu.memory_space<vmem>>, vector<1x512xf32>
    %215 = vector.broadcast %214 : vector<1x512xf32> to vector<8x512xf32>
    %216 = arith.mulf %213, %215 : vector<8x512xf32>
    %c26_166 = arith.constant 26 : index
    %c0_167 = arith.constant 0 : index
    %c0_168 = arith.constant 0 : index
    %217 = vector.load %arg2[%c26_166, %c0_167, %c0_168] : memref<27x8x8xf32, #tpu.memory_space<vmem>>, vector<1x8x8xf32>
    %218 = vector.shape_cast %217 : vector<1x8x8xf32> to vector<8x8xf32>
    %cst_169 = arith.constant dense<0.000000e+00> : vector<8x512xf32>
    %219 = tpu.matmul %218, %216, %cst_169 {dimension_numbers = #tpu.dot_dimension_numbers<[1], [0], [0], [1], [0, 0, 1, 1], [], []>} : vector<8x8xf32>, vector<8x512xf32>, vector<8x512xf32> -> vector<8x512xf32>
    %220 = arith.addf %212, %219 : vector<8x512xf32>
    %c0_170 = arith.constant 0 : index
    %c0_171 = arith.constant 0 : index
    %221 = vector.load %arg4[%c0_170, %c0_171] : memref<8x1xf32, #tpu.memory_space<vmem>>, vector<8x1xf32>
    %222 = vector.broadcast %221 : vector<8x1xf32> to vector<8x512xf32>
    %223 = arith.addf %220, %222 : vector<8x512xf32>
    %cst_172 = arith.constant dense<0.000000e+00> : vector<8xf32>
    %224 = vector.multi_reduction <add>, %223, %cst_172 [1] : vector<8x512xf32> to vector<8xf32>
    %225 = vector.shape_cast %224 : vector<8xf32> to vector<8x1xf32>
    %226 = arith.mulf %223, %223 : vector<8x512xf32>
    %cst_173 = arith.constant dense<0.000000e+00> : vector<8xf32>
    %227 = vector.multi_reduction <add>, %226, %cst_173 [1] : vector<8x512xf32> to vector<8xf32>
    %228 = vector.shape_cast %227 : vector<8xf32> to vector<8x1xf32>
    %cst_174 = arith.constant 0.001953125 : f32
    %229 = vector.broadcast %cst_174 : f32 to vector<8x1xf32>
    %230 = arith.mulf %225, %229 : vector<8x1xf32>
    %cst_175 = arith.constant 0.001953125 : f32
    %231 = vector.broadcast %cst_175 : f32 to vector<8x1xf32>
    %232 = arith.mulf %228, %231 : vector<8x1xf32>
    %233 = arith.mulf %230, %230 : vector<8x1xf32>
    %234 = arith.subf %232, %233 : vector<8x1xf32>
    %cst_176 = arith.constant 0.000000e+00 : f32
    %235 = vector.broadcast %cst_176 : f32 to vector<8x1xf32>
    %236 = arith.maximumf %234, %235 : vector<8x1xf32>
    %cst_177 = arith.constant 9.99999974E-6 : f32
    %237 = vector.broadcast %cst_177 : f32 to vector<8x1xf32>
    %238 = arith.addf %236, %237 : vector<8x1xf32>
    %239 = math.rsqrt %238 : vector<8x1xf32>
    %c0_178 = arith.constant 0 : index
    %c0_179 = arith.constant 0 : index
    %240 = vector.load %arg5[%c0_178, %c0_179] : memref<8x1xf32, #tpu.memory_space<vmem>>, vector<8x1xf32>
    %241 = arith.mulf %240, %239 : vector<8x1xf32>
    %c0_180 = arith.constant 0 : index
    %c0_181 = arith.constant 0 : index
    %242 = vector.load %arg6[%c0_180, %c0_181] : memref<8x1xf32, #tpu.memory_space<vmem>>, vector<8x1xf32>
    %243 = arith.mulf %230, %241 : vector<8x1xf32>
    %244 = arith.subf %242, %243 : vector<8x1xf32>
    %245 = vector.broadcast %241 : vector<8x1xf32> to vector<8x512xf32>
    %246 = arith.mulf %223, %245 : vector<8x512xf32>
    %247 = vector.broadcast %244 : vector<8x1xf32> to vector<8x512xf32>
    %248 = arith.addf %246, %247 : vector<8x512xf32>
    %cst_182 = arith.constant 0.000000e+00 : f32
    %249 = vector.broadcast %cst_182 : f32 to vector<8x512xf32>
    %250 = arith.cmpf oge, %248, %249 : vector<8x512xf32>
    %cst_183 = arith.constant 0.00999999977 : f32
    %251 = vector.broadcast %cst_183 : f32 to vector<8x512xf32>
    %252 = arith.mulf %251, %248 : vector<8x512xf32>
    %253 = arith.select %250, %248, %252 : vector<8x512xi1>, vector<8x512xf32>
    %c0_184 = arith.constant 0 : index
    %c0_185 = arith.constant 0 : index
    %c0_186 = arith.constant 0 : index
    %254 = vector.load %arg7[%c0_184, %c0_185, %c0_186] : memref<1x8x512xf32, #tpu.memory_space<vmem>>, vector<1x8x512xf32>
    %255 = vector.shape_cast %254 : vector<1x8x512xf32> to vector<8x512xf32>
    %256 = vector.shape_cast %253 : vector<8x512xf32> to vector<1x8x512xf32>
    tpu.vector_store %arg7[%c0_184, %c0_185, %c0_186], %256 {strides = array<i32>} : memref<1x8x512xf32, #tpu.memory_space<vmem>>, vector<1x8x512xf32>,
    return
  }
  func.func @transform_0(%arg0: i32) -> (i32, i32, i32) {
    %c0_i32 = arith.constant 0 : i32
    %c0_i32_0 = arith.constant 0 : i32
    %c0_i32_1 = arith.constant 0 : i32
    return %arg0, %c0_i32, %c0_i32_0 : i32, i32, i32
  }
  func.func @transform_1(%arg0: i32) -> (i32, i32, i32) {
    %c0_i32 = arith.constant 0 : i32
    %c0_i32_0 = arith.constant 0 : i32
    %c0_i32_1 = arith.constant 0 : i32
    %c0_i32_2 = arith.constant 0 : i32
    return %c0_i32, %c0_i32_0, %c0_i32_1 : i32, i32, i32
  }
  func.func @transform_2(%arg0: i32) -> (i32, i32) {
    %c0_i32 = arith.constant 0 : i32
    %c0_i32_0 = arith.constant 0 : i32
    %c0_i32_1 = arith.constant 0 : i32
    return %c0_i32, %c0_i32_0 : i32, i32
  }
  func.func @transform_3(%arg0: i32) -> (i32, i32) {
    %c0_i32 = arith.constant 0 : i32
    %c0_i32_0 = arith.constant 0 : i32
    %c0_i32_1 = arith.constant 0 : i32
    return %c0_i32, %c0_i32_0 : i32, i32
  }
  func.func @transform_4(%arg0: i32) -> (i32, i32) {
    %c0_i32 = arith.constant 0 : i32
    %c0_i32_0 = arith.constant 0 : i32
    %c0_i32_1 = arith.constant 0 : i32
    return %c0_i32, %c0_i32_0 : i32, i32
  }
  func.func @transform_5(%arg0: i32) -> (i32, i32) {
    %c0_i32 = arith.constant 0 : i32
    %c0_i32_0 = arith.constant 0 : i32
    %c0_i32_1 = arith.constant 0 : i32
    return %c0_i32, %c0_i32_0 : i32, i32
  }
  func.func @transform_6(%arg0: i32) -> (i32, i32, i32) {
    %c0_i32 = arith.constant 0 : i32
    %c0_i32_0 = arith.constant 0 : i32
    %c0_i32_1 = arith.constant 0 : i32
    return %arg0, %c0_i32, %c0_i32_0 : i32, i32, i32
  }
}

</mosaic_0001>

<llo_original>
// kernel: tpu_custom_call.1
$region0: #{tpu_custom_call.1}
  #allocation0 [shape = 'u32[]', space=smem, size = 0x4, offset = 0x4, fixed_abs, tag = 'smem constant byte address 0x4 - core index']
  #allocation1 [shape = 'u32[144,128]{1,0:T(1,128)}', space=vmem, size = 0x12000, scoped, tag = 'internal scratch']
  #allocation2 [shape = 'f32[8,768]{1,0:T(8,128)}', space=vmem, size = 0x6000, scoped, tag = 'scratch operand']
  %s0 = inlined_call_operand.vmem [shape: f32[2,8,512], index: 0, kind: input, shape index: {}]
  %s1 = inlined_call_operand.vmem [shape: f32[27,8,8], index: 1, kind: input, shape index: {}]
  %s2 = inlined_call_operand.vmem [shape: f32[27,512], index: 2, kind: input, shape index: {}]
  %s3 = inlined_call_operand.vmem [shape: f32[8,1], index: 3, kind: input, shape index: {}]
  %s4 = inlined_call_operand.vmem [shape: f32[8,1], index: 4, kind: input, shape index: {}]
  %s5 = inlined_call_operand.vmem [shape: f32[8,1], index: 5, kind: input, shape index: {}]
  %s6 = inlined_call_operand.hbm [shape: f32[2,8,512], index: 6, kind: output, shape index: {}]
  %s7 = sld [smem:[#allocation0]]
  $region57: #{tpu_custom_call.1} parent=0
    _
  %s9 = ssub.s32 1, %s7
  %s10 = scalar_select 0, %s9, %s7
  $region1: #{tpu_custom_call.1} parent=0
    #allocation3 [shape = 'u8[32768]{0}', space=vmem, size = 0x8000, scoped, tag = 'output window, operand 0']
    #allocation4 [shape = 's32[2]{0}', space=sflag, size = 0x8, scoped, tag = 'scoped memory for tpu_custom_call.1']
    %11 = vsyncpa [#allocation4], 0
    %s12 = scalar_lea.sflag [#allocation4], 1
    %13 = vsyncpa %s12, 0
    loop: start=0, step=1, limit=4
    $region2: #{tpu_custom_call.1} parent=1 // loop_pre_header
      _
    $region3: #{tpu_custom_call.1} parent=1 // loop_header
      %s15 = sphi 0, %s19
      %p16 = scmp.ge.s32.totalorder %s15, 4
      %s25 = sphi 0, %s27
      %s28 = sphi 0, %s25
      %s29 = sphi 0, %s28
      %s45 = sphi 0, %s29
      %s49 = sphi 0, %s49
      %s51 = sphi 0, %s49
      %s52 = sphi 0, %s51
      %s66 = sphi 0, %s52
      %s70 = sphi 0, %s70
      %s72 = sphi 0, %s70
      %s73 = sphi 0, %s72
      %s87 = sphi 0, %s73
      %s91 = sphi 0, %s91
      %s93 = sphi 0, %s91
      %s94 = sphi 0, %s93
      %s108 = sphi 0, %s94
      %s112 = sphi 0, %s112
      %s114 = sphi 0, %s112
      %s115 = sphi 0, %s114
      %s129 = sphi 0, %s115
      %s133 = sphi 0, %s133
      %s135 = sphi 0, %s133
      %s136 = sphi 0, %s135
      %s150 = sphi 0, %s136
      %s156 = sphi 0, %s158
      %s159 = sphi 0, %s156
      %s160 = sphi 0, %s159
      %s176 = sphi 0, %s160
    $region4: #{tpu_custom_call.1} parent=1 // loop_header_branch
      %18 = sbr.rel (%p16) target = $region8
    $region5: #{tpu_custom_call.1} parent=1 // loop_body
      %s20 = ssub.s32 %s15, 1
      %s21 = ssub.s32 %s15, 2
      %s22 = sadd.s32 %s15, 1
      %s23 = ssub.s32 %s15, %s22
      %p24 = scmp.eq.s32.totalorder %s23, 0
      %s26 = sadd.s32 %s25, 1
      %s27 = scalar_select %p24, %s25, %s26
      %p30 = pneg %p24
      %p31 = scmp.eq.s32.totalorder %s15, 1
      %p32 = por %p30, %p31
      %p33 = scmp.ne.s32.totalorder %s25, %s28
      %p34 = scmp.eq.s32.totalorder %s15, 0
      %p35 = por %p33, %p34
      %p36 = scmp.ne.s32.totalorder %s25, %s28
      %p37 = scmp.eq.s32.totalorder %s20, 1
      %p38 = por %p36, %p37
      %p39 = scmp.ne.s32.totalorder %s28, %s29
      %p40 = scmp.eq.s32.totalorder %s20, 0
      %p41 = por %p39, %p40
      %p42 = scmp.ne.s32.totalorder %s28, %s29
      %p43 = scmp.eq.s32.totalorder %s21, 1
      %p44 = por %p42, %p43
      %p46 = scmp.ne.s32.totalorder %s29, %s45
      %p47 = scmp.eq.s32.totalorder %s21, 0
      %p48 = por %p46, %p47
      %s50 = sadd.s32 %s49, 1
      %p53 = scmp.eq.s32.totalorder %s15, 1
      %p54 = scmp.ne.s32.totalorder %s49, %s51
      %p55 = scmp.eq.s32.totalorder %s15, 0
      %p56 = por %p54, %p55
      %p57 = scmp.ne.s32.totalorder %s49, %s51
      %p58 = scmp.eq.s32.totalorder %s20, 1
      %p59 = por %p57, %p58
      %p60 = scmp.ne.s32.totalorder %s51, %s52
      %p61 = scmp.eq.s32.totalorder %s20, 0
      %p62 = por %p60, %p61
      %p63 = scmp.ne.s32.totalorder %s51, %s52
      %p64 = scmp.eq.s32.totalorder %s21, 1
      %p65 = por %p63, %p64
      %p67 = scmp.ne.s32.totalorder %s52, %s66
      %p68 = scmp.eq.s32.totalorder %s21, 0
      %p69 = por %p67, %p68
      %s71 = sadd.s32 %s70, 1
      %p74 = scmp.eq.s32.totalorder %s15, 1
      %p75 = scmp.ne.s32.totalorder %s70, %s72
      %p76 = scmp.eq.s32.totalorder %s15, 0
      %p77 = por %p75, %p76
      %p78 = scmp.ne.s32.totalorder %s70, %s72
      %p79 = scmp.eq.s32.totalorder %s20, 1
      %p80 = por %p78, %p79
      %p81 = scmp.ne.s32.totalorder %s72, %s73
      %p82 = scmp.eq.s32.totalorder %s20, 0
      %p83 = por %p81, %p82
      %p84 = scmp.ne.s32.totalorder %s72, %s73
      %p85 = scmp.eq.s32.totalorder %s21, 1
      %p86 = por %p84, %p85
      %p88 = scmp.ne.s32.totalorder %s73, %s87
      %p89 = scmp.eq.s32.totalorder %s21, 0
      %p90 = por %p88, %p89
      %s92 = sadd.s32 %s91, 1
      %p95 = scmp.eq.s32.totalorder %s15, 1
      %p96 = scmp.ne.s32.totalorder %s91, %s93
      %p97 = scmp.eq.s32.totalorder %s15, 0
      %p98 = por %p96, %p97
      %p99 = scmp.ne.s32.totalorder %s91, %s93
      %p100 = scmp.eq.s32.totalorder %s20, 1
      %p101 = por %p99, %p100
      %p102 = scmp.ne.s32.totalorder %s93, %s94
      %p103 = scmp.eq.s32.totalorder %s20, 0
      %p104 = por %p102, %p103
      %p105 = scmp.ne.s32.totalorder %s93, %s94
      %p106 = scmp.eq.s32.totalorder %s21, 1
      %p107 = por %p105, %p106
      %p109 = scmp.ne.s32.totalorder %s94, %s108
      %p110 = scmp.eq.s32.totalorder %s21, 0
      %p111 = por %p109, %p110
      %s113 = sadd.s32 %s112, 1
      %p116 = scmp.eq.s32.totalorder %s15, 1
      %p117 = scmp.ne.s32.totalorder %s112, %s114
      %p118 = scmp.eq.s32.totalorder %s15, 0
      %p119 = por %p117, %p118
      %p120 = scmp.ne.s32.totalorder %s112, %s114
      %p121 = scmp.eq.s32.totalorder %s20, 1
      %p122 = por %p120, %p121
      %p123 = scmp.ne.s32.totalorder %s114, %s115
      %p124 = scmp.eq.s32.totalorder %s20, 0
      %p125 = por %p123, %p124
      %p126 = scmp.ne.s32.totalorder %s114, %s115
      %p127 = scmp.eq.s32.totalorder %s21, 1
      %p128 = por %p126, %p127
      %p130 = scmp.ne.s32.totalorder %s115, %s129
      %p131 = scmp.eq.s32.totalorder %s21, 0
      %p132 = por %p130, %p131
      %s134 = sadd.s32 %s133, 1
      %p137 = scmp.eq.s32.totalorder %s15, 1
      %p138 = scmp.ne.s32.totalorder %s133, %s135
      %p139 = scmp.eq.s32.totalorder %s15, 0
      %p140 = por %p138, %p139
      %p141 = scmp.ne.s32.totalorder %s133, %s135
      %p142 = scmp.eq.s32.totalorder %s20, 1
      %p143 = por %p141, %p142
      %p144 = scmp.ne.s32.totalorder %s135, %s136
      %p145 = scmp.eq.s32.totalorder %s20, 0
      %p146 = por %p144, %p145
      %p147 = scmp.ne.s32.totalorder %s135, %s136
      %p148 = scmp.eq.s32.totalorder %s21, 1
      %p149 = por %p147, %p148
      %p151 = scmp.ne.s32.totalorder %s136, %s150
      %p152 = scmp.eq.s32.totalorder %s21, 0
      %p153 = por %p151, %p152
      %s154 = ssub.s32 %s15, %s22
      %p155 = scmp.eq.s32.totalorder %s154, 0
      %s157 = sadd.s32 %s156, 1
      %s158 = scalar_select %p155, %s156, %s157
      %p161 = pneg %p155
      %p162 = scmp.eq.s32.totalorder %s15, 1
      %p163 = por %p161, %p162
      %p164 = scmp.ne.s32.totalorder %s156, %s159
      %p165 = scmp.eq.s32.totalorder %s15, 0
      %p166 = por %p164, %p165
      %p167 = scmp.ne.s32.totalorder %s156, %s159
      %p168 = scmp.eq.s32.totalorder %s20, 1
      %p169 = por %p167, %p168
      %p170 = scmp.ne.s32.totalorder %s159, %s160
      %p171 = scmp.eq.s32.totalorder %s20, 0
      %p172 = por %p170, %p171
      %p173 = scmp.ne.s32.totalorder %s159, %s160
      %p174 = scmp.eq.s32.totalorder %s21, 1
      %p175 = por %p173, %p174
      %p177 = scmp.ne.s32.totalorder %s160, %s176
      %p178 = scmp.eq.s32.totalorder %s21, 0
      %p179 = por %p177, %p178
      %p180 = scmp.le.s32.totalorder 1, %s15
      %p181 = scmp.lt.s32.totalorder %s15, 3
      %p182 = pnand %p180, %p181
      %p183 = pneg %p182
      // Predicated region
      $region9: #{tpu_custom_call.1} parent=5 // pred_check
        _
      $region10: #{tpu_custom_call.1} parent=5 // pred_check_branch
        %185 = sbr.rel (%p182) target = $region12
      $region11: #{tpu_custom_call.1} parent=5 // pred_region
        %s186 = ssub.s32 %s15, 1
        // Predicated region
        $region13: #{tpu_custom_call.1} parent=11 // pred_check
          %p187 = pneg %p62
        $region14: #{tpu_custom_call.1} parent=11 // pred_check_branch
          %189 = sbr.rel (%p187) target = $region16
        $region15: #{tpu_custom_call.1} parent=11 // pred_region
          _
        $region16: #{tpu_custom_call.1} parent=11 // pred_fallthru
          _
        // Predicated region
        $region17: #{tpu_custom_call.1} parent=11 // pred_check
          %p190 = pneg %p83
        $region18: #{tpu_custom_call.1} parent=11 // pred_check_branch
          %192 = sbr.rel (%p190) target = $region20
        $region19: #{tpu_custom_call.1} parent=11 // pred_region
          _
        $region20: #{tpu_custom_call.1} parent=11 // pred_fallthru
          _
        // Predicated region
        $region21: #{tpu_custom_call.1} parent=11 // pred_check
          %p193 = pneg %p104
        $region22: #{tpu_custom_call.1} parent=11 // pred_check_branch
          %195 = sbr.rel (%p193) target = $region24
        $region23: #{tpu_custom_call.1} parent=11 // pred_region
          _
        $region24: #{tpu_custom_call.1} parent=11 // pred_fallthru
          _
        // Predicated region
        $region25: #{tpu_custom_call.1} parent=11 // pred_check
          %p196 = pneg %p125
        $region26: #{tpu_custom_call.1} parent=11 // pred_check_branch
          %198 = sbr.rel (%p196) target = $region28
        $region27: #{tpu_custom_call.1} parent=11 // pred_region
          _
        $region28: #{tpu_custom_call.1} parent=11 // pred_fallthru
          _
        // Predicated region
        $region29: #{tpu_custom_call.1} parent=11 // pred_check
          %p199 = pneg %p146
        $region30: #{tpu_custom_call.1} parent=11 // pred_check_branch
          %201 = sbr.rel (%p199) target = $region32
        $region31: #{tpu_custom_call.1} parent=11 // pred_region
          _
        $region32: #{tpu_custom_call.1} parent=11 // pred_fallthru
          _
      $region12: #{tpu_custom_call.1} parent=5 // pred_fallthru
        _
      %p202 = scmp.lt.s32.totalorder %s15, 2
      // Predicated region
      $region33: #{tpu_custom_call.1} parent=5 // pred_check
        %p203 = pneg %p202
      $region34: #{tpu_custom_call.1} parent=5 // pred_check_branch
        %205 = sbr.rel (%p203) target = $region36
      $region35: #{tpu_custom_call.1} parent=5 // pred_region
        // Predicated region
        $region37: #{tpu_custom_call.1} parent=35 // pred_check
          %p206 = pneg %p35
        $region38: #{tpu_custom_call.1} parent=35 // pred_check_branch
          %208 = sbr.rel (%p206) target = $region40
        $region39: #{tpu_custom_call.1} parent=35 // pred_region
          %p209 = scmp.lt.s32.totalorder %s15, 1
          %s210 = scalar_select %p209, %s15, 1
          %s211 = smul.addr %s210, 4
          %s212 = smul.addr %s211, 8
          %s213 = scalar_lea.vmem %s0, %s212
        $region40: #{tpu_custom_call.1} parent=35 // pred_fallthru
          _
      $region36: #{tpu_custom_call.1} parent=5 // pred_fallthru
        _
      %p214 = scmp.le.s32.totalorder 1, %s15
      %p215 = scmp.lt.s32.totalorder %s15, 3
      %p216 = pnand %p214, %p215
      %p217 = pneg %p216
      // Predicated region
      $region41: #{tpu_custom_call.1} parent=5 // pred_check
        _
      $region42: #{tpu_custom_call.1} parent=5 // pred_check_branch
        %219 = sbr.rel (%p216) target = $region44
      $region43: #{tpu_custom_call.1} parent=5 // pred_region
        %s220 = ssub.s32 %s15, 1
        %p221 = scmp.lt.s32.totalorder %s20, 1
        %s222 = scalar_select %p221, %s20, 1
        %s223 = smul.addr %s222, 4
        %s224 = smul.addr %s223, 8
        %s225 = scalar_lea.vmem %s0, %s224
        %p226 = pneg %p41
        %p227 = pneg %p38
        %p228 = pneg %p62
        %p229 = pneg %p59
        %p230 = pneg %p83
        %p231 = pneg %p80
        %p232 = pneg %p104
        %p233 = pneg %p101
        %p234 = pneg %p125
        %p235 = pneg %p122
        %p236 = pneg %p146
        %p237 = pneg %p143
        %p238 = pneg %p172
        %p239 = pneg %p169
        %s240 = sand.u32 %s159, 1
        %s241 = scalar_lea.sflag [#allocation4], %s240
        %s242 = sand.u32 %s159, 1
        %s243 = smul.addr %s242, 32
        %s244 = scalar_lea.vmem [#allocation3], %s243
        %p245 = scmp.lt.s32.totalorder %s20, 1
        %s246 = scalar_select %p245, %s20, 1
        %s247 = smul.addr %s246, 4
        %s248 = smul.addr %s247, 8
        %s249 = scalar_lea.vmem %s0, %s248
        %250 = vst [vmem:[#allocation2] sm:$0xff] 0.0
        %251 = vst [vmem:[#allocation2 + $0x28] sm:$0xff] 0.0
        %v252 = vld [vmem:[%s249] sm:$0xff]
        %v253 = vld [vmem:[%s249 + $0x8] sm:$0xff]
        %v254 = vld [vmem:[%s249 + $0x10] sm:$0xff]
        %v255 = vld [vmem:[%s249 + $0x18] sm:$0xff]
        %256 = vst [vmem:[#allocation2 + $0x8] sm:$0xff] %v252
        %257 = vst [vmem:[#allocation2 + $0x10] sm:$0xff] %v253
        %258 = vst [vmem:[#allocation2 + $0x18] sm:$0xff] %v254
        %259 = vst [vmem:[#allocation2 + $0x20] sm:$0xff] %v255
        %v260 = vld [vmem:[#allocation2] sm:$0xff]
        %v261 = vld [vmem:[#allocation2 + $0x8] sm:$0xff]
        %v262 = vld [vmem:[#allocation2 + $0x10] sm:$0xff]
        %v263 = vld [vmem:[#allocation2 + $0x18] sm:$0xff]
        %v264 = vld [vmem:[#allocation2 + $0x20] sm:$0xff]
        %v265 = vld [vmem:[%s2] ss:$8 sm:$0xf]
        %v267 = vlaneseq
        %v268 = vshrl.u32 %v267, 7
        %v269 = vsub.s32 0, %v268
        %v270 = vrot.slane %v265, %v269
        %v271 = vlaneseq
        %v272 = vshrl.u32 %v271, 7
        %v273 = vsub.s32 1, %v272
        %v274 = vrot.slane %v265, %v273
        %v275 = vlaneseq
        %v276 = vshrl.u32 %v275, 7
        %v277 = vsub.s32 2, %v276
        %v278 = vrot.slane %v265, %v277
        %v279 = vlaneseq
        %v280 = vshrl.u32 %v279, 7
        %v281 = vsub.s32 3, %v280
        %v282 = vrot.slane %v265, %v281
        %283 = vrot.lane.b32.xlu0 %v270, 55
        %v284 = vpop.permute.xlu0 %283
        %285 = vrot.lane.b32.xlu0 %v274, 55
        %v286 = vpop.permute.xlu0 %285
        %287 = vrot.lane.b32.xlu0 %v278, 55
        %v288 = vpop.permute.xlu0 %287
        %289 = vrot.lane.b32.xlu0 %v282, 55
        %v290 = vpop.permute.xlu0 %289
        %vm291 = vcmask 449536
        %v292 = vsel %vm291, %v284, %v286
        %v293 = vsel %vm291, %v286, %v288
        %v294 = vsel %vm291, %v288, %v290
        %v300 = vmul.f32 %v260, %v284
        %v301 = vmul.f32 %v261, %v292
        %v302 = vmul.f32 %v262, %v293
        %v303 = vmul.f32 %v263, %v294
        %v304 = vmul.f32 %v264, %v290
        %v305 = vld [vmem:[%s1] sm:$0xff]
        %s306 = scalar_lea.vmem %s2, 1
        %v307 = vld [vmem:[%s306] ss:$8 sm:$0xf]
        %v309 = vlaneseq
        %v310 = vshrl.u32 %v309, 7
        %v311 = vsub.s32 0, %v310
        %v312 = vrot.slane %v307, %v311
        %v313 = vlaneseq
        %v314 = vshrl.u32 %v313, 7
        %v315 = vsub.s32 1, %v314
        %v316 = vrot.slane %v307, %v315
        %v317 = vlaneseq
        %v318 = vshrl.u32 %v317, 7
        %v319 = vsub.s32 2, %v318
        %v320 = vrot.slane %v307, %v319
        %v321 = vlaneseq
        %v322 = vshrl.u32 %v321, 7
        %v323 = vsub.s32 3, %v322
        %v324 = vrot.slane %v307, %v323
        %325 = vrot.lane.b32.xlu0 %v312, 56
        %v326 = vpop.permute.xlu0 %325
        %327 = vrot.lane.b32.xlu0 %v316, 56
        %v328 = vpop.permute.xlu0 %327
        %329 = vrot.lane.b32.xlu0 %v320, 56
        %v330 = vpop.permute.xlu0 %329
        %331 = vrot.lane.b32.xlu0 %v324, 56
        %v332 = vpop.permute.xlu0 %331
        %vm333 = vcmask 457728
        %v334 = vsel %vm333, %v326, %v328
        %v335 = vsel %vm333, %v328, %v330
        %v336 = vsel %vm333, %v330, %v332
        %v342 = vmul.f32 %v260, %v326
        %v343 = vmul.f32 %v261, %v334
        %v344 = vmul.f32 %v262, %v335
        %v345 = vmul.f32 %v263, %v336
        %v346 = vmul.f32 %v264, %v332
        %s347 = scalar_lea.vmem %s1, 8
        %v348 = vld [vmem:[%s347] sm:$0xff]
        %354 = vrot.lane.b32.xlu0 %v342, 72
        %v355 = vpop.permute.xlu0 %354
        %356 = vrot.lane.b32.xlu0 %v343, 72
        %v357 = vpop.permute.xlu0 %356
        %358 = vrot.lane.b32.xlu0 %v344, 72
        %v359 = vpop.permute.xlu0 %358
        %360 = vrot.lane.b32.xlu0 %v345, 72
        %v361 = vpop.permute.xlu0 %360
        %362 = vrot.lane.b32.xlu0 %v346, 72
        %v363 = vpop.permute.xlu0 %362
        %vm364 = vcmask 588800
        %v365 = vsel %vm364, %v355, %v357
        %v366 = vsel %vm364, %v357, %v359
        %v367 = vsel %vm364, %v359, %v361
        %v368 = vsel %vm364, %v361, %v363
        %vm373 = vcmask 64512
        %v375 = vsel %vm373, %v348, 0
        %377 = vmatprep.subr.mxu0 %v366
        %378 = vmatpush1.msra.mxu0 %v365
        %379 = vmatprep.subr.mxu0 0.0
        %380 = vmatpush1.msra.mxu0 0.0
        %381 = vmatprep.subr.mxu0 0.0
        %382 = vmatpush1.msra.mxu0 0.0
        %383 = vmatprep.subr.mxu0 0.0
        %384 = vmatpush1.msra.mxu0 0.0
        %385 = vmatprep.subr.mxu0 0.0
        %386 = vmatpush1.msra.mxu0 0.0
        %387 = vmatprep.subr.mxu0 0.0
        %388 = vmatpush1.msra.mxu0 0.0
        %389 = vmatprep.subr.mxu0 0.0
        %390 = vmatpush1.msra.mxu0 0.0
        %391 = vmatprep.subr.mxu0 0.0
        %392 = vmatpush1.msra.mxu0 0.0
        %393 = vmatprep.subr.mxu0 0.0
        %394 = vmatpush1.msra.mxu0 0.0
        %395 = vmatprep.subr.mxu0 0.0
        %396 = vmatpush1.msra.mxu0 0.0
        %397 = vmatprep.subr.mxu0 0.0
        %398 = vmatpush1.msra.mxu0 0.0
        %399 = vmatprep.subr.mxu0 0.0
        %400 = vmatpush1.msra.mxu0 0.0
        %401 = vmatprep.subr.mxu0 0.0
        %402 = vmatpush1.msra.mxu0 0.0
        %403 = vmatprep.subr.mxu0 0.0
        %404 = vmatpush1.msra.mxu0 0.0
        %405 = vmatprep.subr.mxu0 0.0
        %406 = vmatpush1.msra.mxu0 0.0
        %407 = vmatprep.subr.mxu0 0.0
        %408 = vmatpush1.msra.mxu0 0.0
        %409 = vmatprep.subr.mxu0 0.0
        %410 = vmatpush1.msra.mxu0 0.0
        %411 = vmatprep.subr.mxu0 0.0
        %412 = vmatpush1.msra.mxu0 0.0
        %413 = vmatprep.subr.mxu0 0.0
        %414 = vmatpush1.msra.mxu0 0.0
        %415 = vmatprep.subr.mxu0 0.0
        %416 = vmatpush1.msra.mxu0 0.0
        %417 = vmatprep.subr.mxu0 0.0
        %418 = vmatpush1.msra.mxu0 0.0
        %419 = vmatprep.subr.mxu0 0.0
        %420 = vmatpush1.msra.mxu0 0.0
        %421 = vmatprep.subr.mxu0 0.0
        %422 = vmatpush1.msra.mxu0 0.0
        %423 = vmatprep.subr.mxu0 0.0
        %424 = vmatpush1.msra.mxu0 0.0
        %425 = vmatprep.subr.mxu0 0.0
        %426 = vmatpush1.msra.mxu0 0.0
        %427 = vmatprep.subr.mxu0 0.0
        %428 = vmatpush1.msra.mxu0 0.0
        %429 = vmatprep.subr.mxu0 0.0
        %430 = vmatpush1.msra.mxu0 0.0
        %431 = vmatprep.subr.mxu0 0.0
        %432 = vmatpush1.msra.mxu0 0.0
        %433 = vmatprep.subr.mxu0 0.0
        %434 = vmatpush1.msra.mxu0 0.0
        %435 = vmatprep.subr.mxu0 0.0
        %436 = vmatpush1.msra.mxu0 0.0
        %437 = vmatprep.subr.mxu0 0.0
        %438 = vmatpush1.msra.mxu0 0.0
        %439 = vmatprep.subr.mxu0 0.0
        %440 = vmatpush1.msra.mxu0 0.0
        %441 = vmatprep.mubr.f32.mxu0 0.0
        %442 = vmatmul.mubr.f32.gmra.mrb[0].mxu0 %v375
        %v443 = vpop.f32.mrb[0].mxu0
        %v444 = vadd.f32 0.0, %v443
        %v445 = vpop.f32.mrb[0].mxu0
        %v446 = vadd.f32 0.0, %v445
        %447 = vdwg.mxu0
        %448 = vmatprep.subr.mxu0 %v368
        %449 = vmatpush1.msra.mxu0 %v367
        %450 = vmatprep.subr.mxu0 0.0
        %451 = vmatpush1.msra.mxu0 0.0
        %452 = vmatprep.subr.mxu0 0.0
        %453 = vmatpush1.msra.mxu0 0.0
        %454 = vmatprep.subr.mxu0 0.0
        %455 = vmatpush1.msra.mxu0 0.0
        %456 = vmatprep.subr.mxu0 0.0
        %457 = vmatpush1.msra.mxu0 0.0
        %458 = vmatprep.subr.mxu0 0.0
        %459 = vmatpush1.msra.mxu0 0.0
        %460 = vmatprep.subr.mxu0 0.0
        %461 = vmatpush1.msra.mxu0 0.0
        %462 = vmatprep.subr.mxu0 0.0
        %463 = vmatpush1.msra.mxu0 0.0
        %464 = vmatprep.subr.mxu0 0.0
        %465 = vmatpush1.msra.mxu0 0.0
        %466 = vmatprep.subr.mxu0 0.0
        %467 = vmatpush1.msra.mxu0 0.0
        %468 = vmatprep.subr.mxu0 0.0
        %469 = vmatpush1.msra.mxu0 0.0
        %470 = vmatprep.subr.mxu0 0.0
        %471 = vmatpush1.msra.mxu0 0.0
        %472 = vmatprep.subr.mxu0 0.0
        %473 = vmatpush1.msra.mxu0 0.0
        %474 = vmatprep.subr.mxu0 0.0
        %475 = vmatpush1.msra.mxu0 0.0
        %476 = vmatprep.subr.mxu0 0.0
        %477 = vmatpush1.msra.mxu0 0.0
        %478 = vmatprep.subr.mxu0 0.0
        %479 = vmatpush1.msra.mxu0 0.0
        %480 = vmatprep.subr.mxu0 0.0
        %481 = vmatpush1.msra.mxu0 0.0
        %482 = vmatprep.subr.mxu0 0.0
        %483 = vmatpush1.msra.mxu0 0.0
        %484 = vmatprep.subr.mxu0 0.0
        %485 = vmatpush1.msra.mxu0 0.0
        %486 = vmatprep.subr.mxu0 0.0
        %487 = vmatpush1.msra.mxu0 0.0
        %488 = vmatprep.subr.mxu0 0.0
        %489 = vmatpush1.msra.mxu0 0.0
        %490 = vmatprep.subr.mxu0 0.0
        %491 = vmatpush1.msra.mxu0 0.0
        %492 = vmatprep.subr.mxu0 0.0
        %493 = vmatpush1.msra.mxu0 0.0
        %494 = vmatprep.subr.mxu0 0.0
        %495 = vmatpush1.msra.mxu0 0.0
        %496 = vmatprep.subr.mxu0 0.0
        %497 = vmatpush1.msra.mxu0 0.0
        %498 = vmatprep.subr.mxu0 0.0
        %499 = vmatpush1.msra.mxu0 0.0
        %500 = vmatprep.subr.mxu0 0.0
        %501 = vmatpush1.msra.mxu0 0.0
        %502 = vmatprep.subr.mxu0 0.0
        %503 = vmatpush1.msra.mxu0 0.0
        %504 = vmatprep.subr.mxu0 0.0
        %505 = vmatpush1.msra.mxu0 0.0
        %506 = vmatprep.subr.mxu0 0.0
        %507 = vmatpush1.msra.mxu0 0.0
        %508 = vmatprep.subr.mxu0 0.0
        %509 = vmatpush1.msra.mxu0 0.0
        %510 = vmatprep.subr.mxu0 0.0
        %511 = vmatpush1.msra.mxu0 0.0
        %512 = vmatprep.mubr.f32.mxu0 0.0
        %513 = vmatmul.mubr.f32.gmra.mrb[0].mxu0 %v375
        %v514 = vpop.f32.mrb[0].mxu0
        %v515 = vadd.f32 0.0, %v514
        %v516 = vpop.f32.mrb[0].mxu0
        %v517 = vadd.f32 0.0, %v516
        %518 = vdwg.mxu0
        %524 = vrot.lane.b32.xlu0 %v300, 73
        %v525 = vpop.permute.xlu0 %524
        %526 = vrot.lane.b32.xlu0 %v301, 73
        %v527 = vpop.permute.xlu0 %526
        %528 = vrot.lane.b32.xlu0 %v302, 73
        %v529 = vpop.permute.xlu0 %528
        %530 = vrot.lane.b32.xlu0 %v303, 73
        %v531 = vpop.permute.xlu0 %530
        %532 = vrot.lane.b32.xlu0 %v304, 73
        %v533 = vpop.permute.xlu0 %532
        %vm534 = vcmask 596992
        %v535 = vsel %vm534, %v525, %v527
        %v536 = vsel %vm534, %v527, %v529
        %v537 = vsel %vm534, %v529, %v531
        %v538 = vsel %vm534, %v531, %v533
        %v544 = vsel %vm373, %v305, 0
        %546 = vmatprep.subr.mxu0 %v536
        %547 = vmatpush1.msra.mxu0 %v535
        %548 = vmatprep.subr.mxu0 0.0
        %549 = vmatpush1.msra.mxu0 0.0
        %550 = vmatprep.subr.mxu0 0.0
        %551 = vmatpush1.msra.mxu0 0.0
        %552 = vmatprep.subr.mxu0 0.0
        %553 = vmatpush1.msra.mxu0 0.0
        %554 = vmatprep.subr.mxu0 0.0
        %555 = vmatpush1.msra.mxu0 0.0
        %556 = vmatprep.subr.mxu0 0.0
        %557 = vmatpush1.msra.mxu0 0.0
        %558 = vmatprep.subr.mxu0 0.0
        %559 = vmatpush1.msra.mxu0 0.0
        %560 = vmatprep.subr.mxu0 0.0
        %561 = vmatpush1.msra.mxu0 0.0
        %562 = vmatprep.subr.mxu0 0.0
        %563 = vmatpush1.msra.mxu0 0.0
        %564 = vmatprep.subr.mxu0 0.0
        %565 = vmatpush1.msra.mxu0 0.0
        %566 = vmatprep.subr.mxu0 0.0
        %567 = vmatpush1.msra.mxu0 0.0
        %568 = vmatprep.subr.mxu0 0.0
        %569 = vmatpush1.msra.mxu0 0.0
        %570 = vmatprep.subr.mxu0 0.0
        %571 = vmatpush1.msra.mxu0 0.0
        %572 = vmatprep.subr.mxu0 0.0
        %573 = vmatpush1.msra.mxu0 0.0
        %574 = vmatprep.subr.mxu0 0.0
        %575 = vmatpush1.msra.mxu0 0.0
        %576 = vmatprep.subr.mxu0 0.0
        %577 = vmatpush1.msra.mxu0 0.0
        %578 = vmatprep.subr.mxu0 0.0
        %579 = vmatpush1.msra.mxu0 0.0
        %580 = vmatprep.subr.mxu0 0.0
        %581 = vmatpush1.msra.mxu0 0.0
        %582 = vmatprep.subr.mxu0 0.0
        %583 = vmatpush1.msra.mxu0 0.0
        %584 = vmatprep.subr.mxu0 0.0
        %585 = vmatpush1.msra.mxu0 0.0
        %586 = vmatprep.subr.mxu0 0.0
        %587 = vmatpush1.msra.mxu0 0.0
        %588 = vmatprep.subr.mxu0 0.0
        %589 = vmatpush1.msra.mxu0 0.0
        %590 = vmatprep.subr.mxu0 0.0
        %591 = vmatpush1.msra.mxu0 0.0
        %592 = vmatprep.subr.mxu0 0.0
        %593 = vmatpush1.msra.mxu0 0.0
        %594 = vmatprep.subr.mxu0 0.0
        %595 = vmatpush1.msra.mxu0 0.0
        %596 = vmatprep.subr.mxu0 0.0
        %597 = vmatpush1.msra.mxu0 0.0
        %598 = vmatprep.subr.mxu0 0.0
        %599 = vmatpush1.msra.mxu0 0.0
        %600 = vmatprep.subr.mxu0 0.0
        %601 = vmatpush1.msra.mxu0 0.0
        %602 = vmatprep.subr.mxu0 0.0
        %603 = vmatpush1.msra.mxu0 0.0
        %604 = vmatprep.subr.mxu0 0.0
        %605 = vmatpush1.msra.mxu0 0.0
        %606 = vmatprep.subr.mxu0 0.0
        %607 = vmatpush1.msra.mxu0 0.0
        %608 = vmatprep.subr.mxu0 0.0
        %609 = vmatpush1.msra.mxu0 0.0
        %610 = vmatprep.mubr.f32.mxu0 0.0
        %611 = vmatmul.mubr.f32.gmra.mrb[0].mxu0 %v544
        %v612 = vpop.f32.mrb[0].mxu0
        %v613 = vadd.f32 %v444, %v612
        %v614 = vpop.f32.mrb[0].mxu0
        %v615 = vadd.f32 %v446, %v614
        %616 = vdwg.mxu0
        %617 = vmatprep.subr.mxu0 %v538
        %618 = vmatpush1.msra.mxu0 %v537
        %619 = vmatprep.subr.mxu0 0.0
        %620 = vmatpush1.msra.mxu0 0.0
        %621 = vmatprep.subr.mxu0 0.0
        %622 = vmatpush1.msra.mxu0 0.0
        %623 = vmatprep.subr.mxu0 0.0
        %624 = vmatpush1.msra.mxu0 0.0
        %625 = vmatprep.subr.mxu0 0.0
        %626 = vmatpush1.msra.mxu0 0.0
        %627 = vmatprep.subr.mxu0 0.0
        %628 = vmatpush1.msra.mxu0 0.0
        %629 = vmatprep.subr.mxu0 0.0
        %630 = vmatpush1.msra.mxu0 0.0
        %631 = vmatprep.subr.mxu0 0.0
        %632 = vmatpush1.msra.mxu0 0.0
        %633 = vmatprep.subr.mxu0 0.0
        %634 = vmatpush1.msra.mxu0 0.0
        %635 = vmatprep.subr.mxu0 0.0
        %636 = vmatpush1.msra.mxu0 0.0
        %637 = vmatprep.subr.mxu0 0.0
        %638 = vmatpush1.msra.mxu0 0.0
        %639 = vmatprep.subr.mxu0 0.0
        %640 = vmatpush1.msra.mxu0 0.0
        %641 = vmatprep.subr.mxu0 0.0
        %642 = vmatpush1.msra.mxu0 0.0
        %643 = vmatprep.subr.mxu0 0.0
        %644 = vmatpush1.msra.mxu0 0.0
        %645 = vmatprep.subr.mxu0 0.0
        %646 = vmatpush1.msra.mxu0 0.0
        %647 = vmatprep.subr.mxu0 0.0
        %648 = vmatpush1.msra.mxu0 0.0
        %649 = vmatprep.subr.mxu0 0.0
        %650 = vmatpush1.msra.mxu0 0.0
        %651 = vmatprep.subr.mxu0 0.0
        %652 = vmatpush1.msra.mxu0 0.0
        %653 = vmatprep.subr.mxu0 0.0
        %654 = vmatpush1.msra.mxu0 0.0
        %655 = vmatprep.subr.mxu0 0.0
        %656 = vmatpush1.msra.mxu0 0.0
        %657 = vmatprep.subr.mxu0 0.0
        %658 = vmatpush1.msra.mxu0 0.0
        %659 = vmatprep.subr.mxu0 0.0
        %660 = vmatpush1.msra.mxu0 0.0
        %661 = vmatprep.subr.mxu0 0.0
        %662 = vmatpush1.msra.mxu0 0.0
        %663 = vmatprep.subr.mxu0 0.0
        %664 = vmatpush1.msra.mxu0 0.0
        %665 = vmatprep.subr.mxu0 0.0
        %666 = vmatpush1.msra.mxu0 0.0
        %667 = vmatprep.subr.mxu0 0.0
        %668 = vmatpush1.msra.mxu0 0.0
        %669 = vmatprep.subr.mxu0 0.0
        %670 = vmatpush1.msra.mxu0 0.0
        %671 = vmatprep.subr.mxu0 0.0
        %672 = vmatpush1.msra.mxu0 0.0
        %673 = vmatprep.subr.mxu0 0.0
        %674 = vmatpush1.msra.mxu0 0.0
        %675 = vmatprep.subr.mxu0 0.0
        %676 = vmatpush1.msra.mxu0 0.0
        %677 = vmatprep.subr.mxu0 0.0
        %678 = vmatpush1.msra.mxu0 0.0
        %679 = vmatprep.subr.mxu0 0.0
        %680 = vmatpush1.msra.mxu0 0.0
        %681 = vmatprep.mubr.f32.mxu0 0.0
        %682 = vmatmul.mubr.f32.gmra.mrb[0].mxu0 %v544
        %v683 = vpop.f32.mrb[0].mxu0
        %v684 = vadd.f32 %v515, %v683
        %v685 = vpop.f32.mrb[0].mxu0
        %v686 = vadd.f32 %v517, %v685
        %687 = vdwg.mxu0
        %s688 = scalar_lea.vmem %s2, 2
        %v689 = vld [vmem:[%s688] ss:$8 sm:$0xf]
        %v691 = vlaneseq
        %v692 = vshrl.u32 %v691, 7
        %v693 = vsub.s32 0, %v692
        %v694 = vrot.slane %v689, %v693
        %v695 = vlaneseq
        %v696 = vshrl.u32 %v695, 7
        %v697 = vsub.s32 1, %v696
        %v698 = vrot.slane %v689, %v697
        %v699 = vlaneseq
        %v700 = vshrl.u32 %v699, 7
        %v701 = vsub.s32 2, %v700
        %v702 = vrot.slane %v689, %v701
        %v703 = vlaneseq
        %v704 = vshrl.u32 %v703, 7
        %v705 = vsub.s32 3, %v704
        %v706 = vrot.slane %v689, %v705
        %707 = vrot.lane.b32.xlu0 %v694, 57
        %v708 = vpop.permute.xlu0 %707
        %709 = vrot.lane.b32.xlu0 %v698, 57
        %v710 = vpop.permute.xlu0 %709
        %711 = vrot.lane.b32.xlu0 %v702, 57
        %v712 = vpop.permute.xlu0 %711
        %713 = vrot.lane.b32.xlu0 %v706, 57
        %v714 = vpop.permute.xlu0 %713
        %vm715 = vcmask 465920
        %v716 = vsel %vm715, %v708, %v710
        %v717 = vsel %vm715, %v710, %v712
        %v718 = vsel %vm715, %v712, %v714
        %v724 = vmul.f32 %v260, %v708
        %v725 = vmul.f32 %v261, %v716
        %v726 = vmul.f32 %v262, %v717
        %v727 = vmul.f32 %v263, %v718
        %v728 = vmul.f32 %v264, %v714
        %s729 = scalar_lea.vmem %s1, 16
        %v730 = vld [vmem:[%s729] sm:$0xff]
        %736 = vrot.lane.b32.xlu0 %v724, 71
        %v737 = vpop.permute.xlu0 %736
        %738 = vrot.lane.b32.xlu0 %v725, 71
        %v739 = vpop.permute.xlu0 %738
        %740 = vrot.lane.b32.xlu0 %v726, 71
        %v741 = vpop.permute.xlu0 %740
        %742 = vrot.lane.b32.xlu0 %v727, 71
        %v743 = vpop.permute.xlu0 %742
        %744 = vrot.lane.b32.xlu0 %v728, 71
        %v745 = vpop.permute.xlu0 %744
        %vm746 = vcmask 580608
        %v747 = vsel %vm746, %v737, %v739
        %v748 = vsel %vm746, %v739, %v741
        %v749 = vsel %vm746, %v741, %v743
        %v750 = vsel %vm746, %v743, %v745
        %v756 = vsel %vm373, %v730, 0
        %758 = vmatprep.subr.mxu0 %v748
        %759 = vmatpush1.msra.mxu0 %v747
        %760 = vmatprep.subr.mxu0 0.0
        %761 = vmatpush1.msra.mxu0 0.0
        %762 = vmatprep.subr.mxu0 0.0
        %763 = vmatpush1.msra.mxu0 0.0
        %764 = vmatprep.subr.mxu0 0.0
        %765 = vmatpush1.msra.mxu0 0.0
        %766 = vmatprep.subr.mxu0 0.0
        %767 = vmatpush1.msra.mxu0 0.0
        %768 = vmatprep.subr.mxu0 0.0
        %769 = vmatpush1.msra.mxu0 0.0
        %770 = vmatprep.subr.mxu0 0.0
        %771 = vmatpush1.msra.mxu0 0.0
        %772 = vmatprep.subr.mxu0 0.0
        %773 = vmatpush1.msra.mxu0 0.0
        %774 = vmatprep.subr.mxu0 0.0
        %775 = vmatpush1.msra.mxu0 0.0
        %776 = vmatprep.subr.mxu0 0.0
        %777 = vmatpush1.msra.mxu0 0.0
        %778 = vmatprep.subr.mxu0 0.0
        %779 = vmatpush1.msra.mxu0 0.0
        %780 = vmatprep.subr.mxu0 0.0
        %781 = vmatpush1.msra.mxu0 0.0
        %782 = vmatprep.subr.mxu0 0.0
        %783 = vmatpush1.msra.mxu0 0.0
        %784 = vmatprep.subr.mxu0 0.0
        %785 = vmatpush1.msra.mxu0 0.0
        %786 = vmatprep.subr.mxu0 0.0
        %787 = vmatpush1.msra.mxu0 0.0
        %788 = vmatprep.subr.mxu0 0.0
        %789 = vmatpush1.msra.mxu0 0.0
        %790 = vmatprep.subr.mxu0 0.0
        %791 = vmatpush1.msra.mxu0 0.0
        %792 = vmatprep.subr.mxu0 0.0
        %793 = vmatpush1.msra.mxu0 0.0
        %794 = vmatprep.subr.mxu0 0.0
        %795 = vmatpush1.msra.mxu0 0.0
        %796 = vmatprep.subr.mxu0 0.0
        %797 = vmatpush1.msra.mxu0 0.0
        %798 = vmatprep.subr.mxu0 0.0
        %799 = vmatpush1.msra.mxu0 0.0
        %800 = vmatprep.subr.mxu0 0.0
        %801 = vmatpush1.msra.mxu0 0.0
        %802 = vmatprep.subr.mxu0 0.0
        %803 = vmatpush1.msra.mxu0 0.0
        %804 = vmatprep.subr.mxu0 0.0
        %805 = vmatpush1.msra.mxu0 0.0
        %806 = vmatprep.subr.mxu0 0.0
        %807 = vmatpush1.msra.mxu0 0.0
        %808 = vmatprep.subr.mxu0 0.0
        %809 = vmatpush1.msra.mxu0 0.0
        %810 = vmatprep.subr.mxu0 0.0
        %811 = vmatpush1.msra.mxu0 0.0
        %812 = vmatprep.subr.mxu0 0.0
        %813 = vmatpush1.msra.mxu0 0.0
        %814 = vmatprep.subr.mxu0 0.0
        %815 = vmatpush1.msra.mxu0 0.0
        %816 = vmatprep.subr.mxu0 0.0
        %817 = vmatpush1.msra.mxu0 0.0
        %818 = vmatprep.subr.mxu0 0.0
        %819 = vmatpush1.msra.mxu0 0.0
        %820 = vmatprep.subr.mxu0 0.0
        %821 = vmatpush1.msra.mxu0 0.0
        %822 = vmatprep.mubr.f32.mxu0 0.0
        %823 = vmatmul.mubr.f32.gmra.mrb[0].mxu0 %v756
        %v824 = vpop.f32.mrb[0].mxu0
        %v825 = vadd.f32 0.0, %v824
        %v826 = vpop.f32.mrb[0].mxu0
        %v827 = vadd.f32 0.0, %v826
        %828 = vdwg.mxu0
        %829 = vmatprep.subr.mxu0 %v750
        %830 = vmatpush1.msra.mxu0 %v749
        %831 = vmatprep.subr.mxu0 0.0
        %832 = vmatpush1.msra.mxu0 0.0
        %833 = vmatprep.subr.mxu0 0.0
        %834 = vmatpush1.msra.mxu0 0.0
        %835 = vmatprep.subr.mxu0 0.0
        %836 = vmatpush1.msra.mxu0 0.0
        %837 = vmatprep.subr.mxu0 0.0
        %838 = vmatpush1.msra.mxu0 0.0
        %839 = vmatprep.subr.mxu0 0.0
        %840 = vmatpush1.msra.mxu0 0.0
        %841 = vmatprep.subr.mxu0 0.0
        %842 = vmatpush1.msra.mxu0 0.0
        %843 = vmatprep.subr.mxu0 0.0
        %844 = vmatpush1.msra.mxu0 0.0
        %845 = vmatprep.subr.mxu0 0.0
        %846 = vmatpush1.msra.mxu0 0.0
        %847 = vmatprep.subr.mxu0 0.0
        %848 = vmatpush1.msra.mxu0 0.0
        %849 = vmatprep.subr.mxu0 0.0
        %850 = vmatpush1.msra.mxu0 0.0
        %851 = vmatprep.subr.mxu0 0.0
        %852 = vmatpush1.msra.mxu0 0.0
        %853 = vmatprep.subr.mxu0 0.0
        %854 = vmatpush1.msra.mxu0 0.0
        %855 = vmatprep.subr.mxu0 0.0
        %856 = vmatpush1.msra.mxu0 0.0
        %857 = vmatprep.subr.mxu0 0.0
        %858 = vmatpush1.msra.mxu0 0.0
        %859 = vmatprep.subr.mxu0 0.0
        %860 = vmatpush1.msra.mxu0 0.0
        %861 = vmatprep.subr.mxu0 0.0
        %862 = vmatpush1.msra.mxu0 0.0
        %863 = vmatprep.subr.mxu0 0.0
        %864 = vmatpush1.msra.mxu0 0.0
        %865 = vmatprep.subr.mxu0 0.0
        %866 = vmatpush1.msra.mxu0 0.0
        %867 = vmatprep.subr.mxu0 0.0
        %868 = vmatpush1.msra.mxu0 0.0
        %869 = vmatprep.subr.mxu0 0.0
        %870 = vmatpush1.msra.mxu0 0.0
        %871 = vmatprep.subr.mxu0 0.0
        %872 = vmatpush1.msra.mxu0 0.0
        %873 = vmatprep.subr.mxu0 0.0
        %874 = vmatpush1.msra.mxu0 0.0
        %875 = vmatprep.subr.mxu0 0.0
        %876 = vmatpush1.msra.mxu0 0.0
        %877 = vmatprep.subr.mxu0 0.0
        %878 = vmatpush1.msra.mxu0 0.0
        %879 = vmatprep.subr.mxu0 0.0
        %880 = vmatpush1.msra.mxu0 0.0
        %881 = vmatprep.subr.mxu0 0.0
        %882 = vmatpush1.msra.mxu0 0.0
        %883 = vmatprep.subr.mxu0 0.0
        %884 = vmatpush1.msra.mxu0 0.0
        %885 = vmatprep.subr.mxu0 0.0
        %886 = vmatpush1.msra.mxu0 0.0
        %887 = vmatprep.subr.mxu0 0.0
        %888 = vmatpush1.msra.mxu0 0.0
        %889 = vmatprep.subr.mxu0 0.0
        %890 = vmatpush1.msra.mxu0 0.0
        %891 = vmatprep.subr.mxu0 0.0
        %892 = vmatpush1.msra.mxu0 0.0
        %893 = vmatprep.mubr.f32.mxu0 0.0
        %894 = vmatmul.mubr.f32.gmra.mrb[0].mxu0 %v756
        %v895 = vpop.f32.mrb[0].mxu0
        %v896 = vadd.f32 0.0, %v895
        %v897 = vpop.f32.mrb[0].mxu0
        %v898 = vadd.f32 0.0, %v897
        %899 = vdwg.mxu0
        %v900 = vadd.f32 %v613, %v825
        %v901 = vadd.f32 %v615, %v827
        %v902 = vadd.f32 %v684, %v896
        %v903 = vadd.f32 %v686, %v898
        %s904 = scalar_lea.vmem %s2, 3
        %v905 = vld [vmem:[%s904] ss:$8 sm:$0xf]
        %v907 = vlaneseq
        %v908 = vshrl.u32 %v907, 7
        %v909 = vsub.s32 0, %v908
        %v910 = vrot.slane %v905, %v909
        %v911 = vlaneseq
        %v912 = vshrl.u32 %v911, 7
        %v913 = vsub.s32 1, %v912
        %v914 = vrot.slane %v905, %v913
        %v915 = vlaneseq
        %v916 = vshrl.u32 %v915, 7
        %v917 = vsub.s32 2, %v916
        %v918 = vrot.slane %v905, %v917
        %v919 = vlaneseq
        %v920 = vshrl.u32 %v919, 7
        %v921 = vsub.s32 3, %v920
        %v922 = vrot.slane %v905, %v921
        %923 = vrot.lane.b32.xlu0 %v910, 63
        %v924 = vpop.permute.xlu0 %923
        %925 = vrot.lane.b32.xlu0 %v914, 63
        %v926 = vpop.permute.xlu0 %925
        %927 = vrot.lane.b32.xlu0 %v918, 63
        %v928 = vpop.permute.xlu0 %927
        %929 = vrot.lane.b32.xlu0 %v922, 63
        %v930 = vpop.permute.xlu0 %929
        %vm931 = vcmask 515072
        %v932 = vsel %vm931, %v924, %v926
        %v933 = vsel %vm931, %v926, %v928
        %v934 = vsel %vm931, %v928, %v930
        %v940 = vmul.f32 %v260, %v924
        %v941 = vmul.f32 %v261, %v932
        %v942 = vmul.f32 %v262, %v933
        %v943 = vmul.f32 %v263, %v934
        %v944 = vmul.f32 %v264, %v930
        %s945 = scalar_lea.vmem %s1, 24
        %v946 = vld [vmem:[%s945] sm:$0xff]
        %952 = vrot.lane.b32.xlu0 %v940, 65
        %v953 = vpop.permute.xlu0 %952
        %954 = vrot.lane.b32.xlu0 %v941, 65
        %v955 = vpop.permute.xlu0 %954
        %956 = vrot.lane.b32.xlu0 %v942, 65
        %v957 = vpop.permute.xlu0 %956
        %958 = vrot.lane.b32.xlu0 %v943, 65
        %v959 = vpop.permute.xlu0 %958
        %960 = vrot.lane.b32.xlu0 %v944, 65
        %v961 = vpop.permute.xlu0 %960
        %vm962 = vcmask 531456
        %v963 = vsel %vm962, %v953, %v955
        %v964 = vsel %vm962, %v955, %v957
        %v965 = vsel %vm962, %v957, %v959
        %v966 = vsel %vm962, %v959, %v961
        %v972 = vsel %vm373, %v946, 0
        %974 = vmatprep.subr.mxu0 %v964
        %975 = vmatpush1.msra.mxu0 %v963
        %976 = vmatprep.subr.mxu0 0.0
        %977 = vmatpush1.msra.mxu0 0.0
        %978 = vmatprep.subr.mxu0 0.0
        %979 = vmatpush1.msra.mxu0 0.0
        %980 = vmatprep.subr.mxu0 0.0
        %981 = vmatpush1.msra.mxu0 0.0
        %982 = vmatprep.subr.mxu0 0.0
        %983 = vmatpush1.msra.mxu0 0.0
        %984 = vmatprep.subr.mxu0 0.0
        %985 = vmatpush1.msra.mxu0 0.0
        %986 = vmatprep.subr.mxu0 0.0
        %987 = vmatpush1.msra.mxu0 0.0
        %988 = vmatprep.subr.mxu0 0.0
        %989 = vmatpush1.msra.mxu0 0.0
        %990 = vmatprep.subr.mxu0 0.0
        %991 = vmatpush1.msra.mxu0 0.0
        %992 = vmatprep.subr.mxu0 0.0
        %993 = vmatpush1.msra.mxu0 0.0
        %994 = vmatprep.subr.mxu0 0.0
        %995 = vmatpush1.msra.mxu0 0.0
        %996 = vmatprep.subr.mxu0 0.0
        %997 = vmatpush1.msra.mxu0 0.0
        %998 = vmatprep.subr.mxu0 0.0
        %999 = vmatpush1.msra.mxu0 0.0
        %1000 = vmatprep.subr.mxu0 0.0
        %1001 = vmatpush1.msra.mxu0 0.0
        %1002 = vmatprep.subr.mxu0 0.0
        %1003 = vmatpush1.msra.mxu0 0.0
        %1004 = vmatprep.subr.mxu0 0.0
        %1005 = vmatpush1.msra.mxu0 0.0
        %1006 = vmatprep.subr.mxu0 0.0
        %1007 = vmatpush1.msra.mxu0 0.0
        %1008 = vmatprep.subr.mxu0 0.0
        %1009 = vmatpush1.msra.mxu0 0.0
        %1010 = vmatprep.subr.mxu0 0.0
        %1011 = vmatpush1.msra.mxu0 0.0
        %1012 = vmatprep.subr.mxu0 0.0
        %1013 = vmatpush1.msra.mxu0 0.0
        %1014 = vmatprep.subr.mxu0 0.0
        %1015 = vmatpush1.msra.mxu0 0.0
        %1016 = vmatprep.subr.mxu0 0.0
        %1017 = vmatpush1.msra.mxu0 0.0
        %1018 = vmatprep.subr.mxu0 0.0
        %1019 = vmatpush1.msra.mxu0 0.0
        %1020 = vmatprep.subr.mxu0 0.0
        %1021 = vmatpush1.msra.mxu0 0.0
        %1022 = vmatprep.subr.mxu0 0.0
        %1023 = vmatpush1.msra.mxu0 0.0
        %1024 = vmatprep.subr.mxu0 0.0
        %1025 = vmatpush1.msra.mxu0 0.0
        %1026 = vmatprep.subr.mxu0 0.0
        %1027 = vmatpush1.msra.mxu0 0.0
        %1028 = vmatprep.subr.mxu0 0.0
        %1029 = vmatpush1.msra.mxu0 0.0
        %1030 = vmatprep.subr.mxu0 0.0
        %1031 = vmatpush1.msra.mxu0 0.0
        %1032 = vmatprep.subr.mxu0 0.0
        %1033 = vmatpush1.msra.mxu0 0.0
        %1034 = vmatprep.subr.mxu0 0.0
        %1035 = vmatpush1.msra.mxu0 0.0
        %1036 = vmatprep.subr.mxu0 0.0
        %1037 = vmatpush1.msra.mxu0 0.0
        %1038 = vmatprep.mubr.f32.mxu0 0.0
        %1039 = vmatmul.mubr.f32.gmra.mrb[0].mxu0 %v972
        %v1040 = vpop.f32.mrb[0].mxu0
        %v1041 = vadd.f32 0.0, %v1040
        %v1042 = vpop.f32.mrb[0].mxu0
        %v1043 = vadd.f32 0.0, %v1042
        %1044 = vdwg.mxu0
        %1045 = vmatprep.subr.mxu0 %v966
        %1046 = vmatpush1.msra.mxu0 %v965
        %1047 = vmatprep.subr.mxu0 0.0
        %1048 = vmatpush1.msra.mxu0 0.0
        %1049 = vmatprep.subr.mxu0 0.0
        %1050 = vmatpush1.msra.mxu0 0.0
        %1051 = vmatprep.subr.mxu0 0.0
        %1052 = vmatpush1.msra.mxu0 0.0
        %1053 = vmatprep.subr.mxu0 0.0
        %1054 = vmatpush1.msra.mxu0 0.0
        %1055 = vmatprep.subr.mxu0 0.0
        %1056 = vmatpush1.msra.mxu0 0.0
        %1057 = vmatprep.subr.mxu0 0.0
        %1058 = vmatpush1.msra.mxu0 0.0
        %1059 = vmatprep.subr.mxu0 0.0
        %1060 = vmatpush1.msra.mxu0 0.0
        %1061 = vmatprep.subr.mxu0 0.0
        %1062 = vmatpush1.msra.mxu0 0.0
        %1063 = vmatprep.subr.mxu0 0.0
        %1064 = vmatpush1.msra.mxu0 0.0
        %1065 = vmatprep.subr.mxu0 0.0
        %1066 = vmatpush1.msra.mxu0 0.0
        %1067 = vmatprep.subr.mxu0 0.0
        %1068 = vmatpush1.msra.mxu0 0.0
        %1069 = vmatprep.subr.mxu0 0.0
        %1070 = vmatpush1.msra.mxu0 0.0
        %1071 = vmatprep.subr.mxu0 0.0
        %1072 = vmatpush1.msra.mxu0 0.0
        %1073 = vmatprep.subr.mxu0 0.0
        %1074 = vmatpush1.msra.mxu0 0.0
        %1075 = vmatprep.subr.mxu0 0.0
        %1076 = vmatpush1.msra.mxu0 0.0
        %1077 = vmatprep.subr.mxu0 0.0
        %1078 = vmatpush1.msra.mxu0 0.0
        %1079 = vmatprep.subr.mxu0 0.0
        %1080 = vmatpush1.msra.mxu0 0.0
        %1081 = vmatprep.subr.mxu0 0.0
        %1082 = vmatpush1.msra.mxu0 0.0
        %1083 = vmatprep.subr.mxu0 0.0
        %1084 = vmatpush1.msra.mxu0 0.0
        %1085 = vmatprep.subr.mxu0 0.0
        %1086 = vmatpush1.msra.mxu0 0.0
        %1087 = vmatprep.subr.mxu0 0.0
        %1088 = vmatpush1.msra.mxu0 0.0
        %1089 = vmatprep.subr.mxu0 0.0
        %1090 = vmatpush1.msra.mxu0 0.0
        %1091 = vmatprep.subr.mxu0 0.0
        %1092 = vmatpush1.msra.mxu0 0.0
        %1093 = vmatprep.subr.mxu0 0.0
        %1094 = vmatpush1.msra.mxu0 0.0
        %1095 = vmatprep.subr.mxu0 0.0
        %1096 = vmatpush1.msra.mxu0 0.0
        %1097 = vmatprep.subr.mxu0 0.0
        %1098 = vmatpush1.msra.mxu0 0.0
        %1099 = vmatprep.subr.mxu0 0.0
        %1100 = vmatpush1.msra.mxu0 0.0
        %1101 = vmatprep.subr.mxu0 0.0
        %1102 = vmatpush1.msra.mxu0 0.0
        %1103 = vmatprep.subr.mxu0 0.0
        %1104 = vmatpush1.msra.mxu0 0.0
        %1105 = vmatprep.subr.mxu0 0.0
        %1106 = vmatpush1.msra.mxu0 0.0
        %1107 = vmatprep.subr.mxu0 0.0
        %1108 = vmatpush1.msra.mxu0 0.0
        %1109 = vmatprep.mubr.f32.mxu0 0.0
        %1110 = vmatmul.mubr.f32.gmra.mrb[0].mxu0 %v972
        %v1111 = vpop.f32.mrb[0].mxu0
        %v1112 = vadd.f32 0.0, %v1111
        %v1113 = vpop.f32.mrb[0].mxu0
        %v1114 = vadd.f32 0.0, %v1113
        %1115 = vdwg.mxu0
        %v1116 = vadd.f32 %v900, %v1041
        %v1117 = vadd.f32 %v901, %v1043
        %v1118 = vadd.f32 %v902, %v1112
        %v1119 = vadd.f32 %v903, %v1114
        %s1120 = scalar_lea.vmem %s2, 4
        %v1121 = vld [vmem:[%s1120] ss:$8 sm:$0xf]
        %v1123 = vlaneseq
        %v1124 = vshrl.u32 %v1123, 7
        %v1125 = vsub.s32 0, %v1124
        %v1126 = vrot.slane %v1121, %v1125
        %v1127 = vlaneseq
        %v1128 = vshrl.u32 %v1127, 7
        %v1129 = vsub.s32 1, %v1128
        %v1130 = vrot.slane %v1121, %v1129
        %v1131 = vlaneseq
        %v1132 = vshrl.u32 %v1131, 7
        %v1133 = vsub.s32 2, %v1132
        %v1134 = vrot.slane %v1121, %v1133
        %v1135 = vlaneseq
        %v1136 = vshrl.u32 %v1135, 7
        %v1137 = vsub.s32 3, %v1136
        %v1138 = vrot.slane %v1121, %v1137
        %1139 = vrot.lane.b32.xlu0 %v1126, 64
        %v1140 = vpop.permute.xlu0 %1139
        %1141 = vrot.lane.b32.xlu0 %v1130, 64
        %v1142 = vpop.permute.xlu0 %1141
        %1143 = vrot.lane.b32.xlu0 %v1134, 64
        %v1144 = vpop.permute.xlu0 %1143
        %1145 = vrot.lane.b32.xlu0 %v1138, 64
        %v1146 = vpop.permute.xlu0 %1145
        %vm1147 = vcmask 523264
        %v1148 = vsel %vm1147, %v1140, %v1142
        %v1149 = vsel %vm1147, %v1142, %v1144
        %v1150 = vsel %vm1147, %v1144, %v1146
        %v1156 = vmul.f32 %v260, %v1140
        %v1157 = vmul.f32 %v261, %v1148
        %v1158 = vmul.f32 %v262, %v1149
        %v1159 = vmul.f32 %v263, %v1150
        %v1160 = vmul.f32 %v264, %v1146
        %s1161 = scalar_lea.vmem %s1, 32
        %v1162 = vld [vmem:[%s1161] sm:$0xff]
        %1168 = vrot.lane.b32.xlu0 %v1156, 64
        %v1169 = vpop.permute.xlu0 %1168
        %1170 = vrot.lane.b32.xlu0 %v1157, 64
        %v1171 = vpop.permute.xlu0 %1170
        %1172 = vrot.lane.b32.xlu0 %v1158, 64
        %v1173 = vpop.permute.xlu0 %1172
        %1174 = vrot.lane.b32.xlu0 %v1159, 64
        %v1175 = vpop.permute.xlu0 %1174
        %1176 = vrot.lane.b32.xlu0 %v1160, 64
        %v1177 = vpop.permute.xlu0 %1176
        %v1178 = vsel %vm1147, %v1169, %v1171
        %v1179 = vsel %vm1147, %v1171, %v1173
        %v1180 = vsel %vm1147, %v1173, %v1175
        %v1181 = vsel %vm1147, %v1175, %v1177
        %v1187 = vsel %vm373, %v1162, 0
        %1189 = vmatprep.subr.mxu0 %v1179
        %1190 = vmatpush1.msra.mxu0 %v1178
        %1191 = vmatprep.subr.mxu0 0.0
        %1192 = vmatpush1.msra.mxu0 0.0
        %1193 = vmatprep.subr.mxu0 0.0
        %1194 = vmatpush1.msra.mxu0 0.0
        %1195 = vmatprep.subr.mxu0 0.0
        %1196 = vmatpush1.msra.mxu0 0.0
        %1197 = vmatprep.subr.mxu0 0.0
        %1198 = vmatpush1.msra.mxu0 0.0
        %1199 = vmatprep.subr.mxu0 0.0
        %1200 = vmatpush1.msra.mxu0 0.0
        %1201 = vmatprep.subr.mxu0 0.0
        %1202 = vmatpush1.msra.mxu0 0.0
        %1203 = vmatprep.subr.mxu0 0.0
        %1204 = vmatpush1.msra.mxu0 0.0
        %1205 = vmatprep.subr.mxu0 0.0
        %1206 = vmatpush1.msra.mxu0 0.0
        %1207 = vmatprep.subr.mxu0 0.0
        %1208 = vmatpush1.msra.mxu0 0.0
        %1209 = vmatprep.subr.mxu0 0.0
        %1210 = vmatpush1.msra.mxu0 0.0
        %1211 = vmatprep.subr.mxu0 0.0
        %1212 = vmatpush1.msra.mxu0 0.0
        %1213 = vmatprep.subr.mxu0 0.0
        %1214 = vmatpush1.msra.mxu0 0.0
        %1215 = vmatprep.subr.mxu0 0.0
        %1216 = vmatpush1.msra.mxu0 0.0
        %1217 = vmatprep.subr.mxu0 0.0
        %1218 = vmatpush1.msra.mxu0 0.0
        %1219 = vmatprep.subr.mxu0 0.0
        %1220 = vmatpush1.msra.mxu0 0.0
        %1221 = vmatprep.subr.mxu0 0.0
        %1222 = vmatpush1.msra.mxu0 0.0
        %1223 = vmatprep.subr.mxu0 0.0
        %1224 = vmatpush1.msra.mxu0 0.0
        %1225 = vmatprep.subr.mxu0 0.0
        %1226 = vmatpush1.msra.mxu0 0.0
        %1227 = vmatprep.subr.mxu0 0.0
        %1228 = vmatpush1.msra.mxu0 0.0
        %1229 = vmatprep.subr.mxu0 0.0
        %1230 = vmatpush1.msra.mxu0 0.0
        %1231 = vmatprep.subr.mxu0 0.0
        %1232 = vmatpush1.msra.mxu0 0.0
        %1233 = vmatprep.subr.mxu0 0.0
        %1234 = vmatpush1.msra.mxu0 0.0
        %1235 = vmatprep.subr.mxu0 0.0
        %1236 = vmatpush1.msra.mxu0 0.0
        %1237 = vmatprep.subr.mxu0 0.0
        %1238 = vmatpush1.msra.mxu0 0.0
        %1239 = vmatprep.subr.mxu0 0.0
        %1240 = vmatpush1.msra.mxu0 0.0
        %1241 = vmatprep.subr.mxu0 0.0
        %1242 = vmatpush1.msra.mxu0 0.0
        %1243 = vmatprep.subr.mxu0 0.0
        %1244 = vmatpush1.msra.mxu0 0.0
        %1245 = vmatprep.subr.mxu0 0.0
        %1246 = vmatpush1.msra.mxu0 0.0
        %1247 = vmatprep.subr.mxu0 0.0
        %1248 = vmatpush1.msra.mxu0 0.0
        %1249 = vmatprep.subr.mxu0 0.0
        %1250 = vmatpush1.msra.mxu0 0.0
        %1251 = vmatprep.subr.mxu0 0.0
        %1252 = vmatpush1.msra.mxu0 0.0
        %1253 = vmatprep.mubr.f32.mxu0 0.0
        %1254 = vmatmul.mubr.f32.gmra.mrb[0].mxu0 %v1187
        %v1255 = vpop.f32.mrb[0].mxu0
        %v1256 = vadd.f32 0.0, %v1255
        %v1257 = vpop.f32.mrb[0].mxu0
        %v1258 = vadd.f32 0.0, %v1257
        %1259 = vdwg.mxu0
        %1260 = vmatprep.subr.mxu0 %v1181
        %1261 = vmatpush1.msra.mxu0 %v1180
        %1262 = vmatprep.subr.mxu0 0.0
        %1263 = vmatpush1.msra.mxu0 0.0
        %1264 = vmatprep.subr.mxu0 0.0
        %1265 = vmatpush1.msra.mxu0 0.0
        %1266 = vmatprep.subr.mxu0 0.0
        %1267 = vmatpush1.msra.mxu0 0.0
        %1268 = vmatprep.subr.mxu0 0.0
        %1269 = vmatpush1.msra.mxu0 0.0
        %1270 = vmatprep.subr.mxu0 0.0
        %1271 = vmatpush1.msra.mxu0 0.0
        %1272 = vmatprep.subr.mxu0 0.0
        %1273 = vmatpush1.msra.mxu0 0.0
        %1274 = vmatprep.subr.mxu0 0.0
        %1275 = vmatpush1.msra.mxu0 0.0
        %1276 = vmatprep.subr.mxu0 0.0
        %1277 = vmatpush1.msra.mxu0 0.0
        %1278 = vmatprep.subr.mxu0 0.0
        %1279 = vmatpush1.msra.mxu0 0.0
        %1280 = vmatprep.subr.mxu0 0.0
        %1281 = vmatpush1.msra.mxu0 0.0
        %1282 = vmatprep.subr.mxu0 0.0
        %1283 = vmatpush1.msra.mxu0 0.0
        %1284 = vmatprep.subr.mxu0 0.0
        %1285 = vmatpush1.msra.mxu0 0.0
        %1286 = vmatprep.subr.mxu0 0.0
        %1287 = vmatpush1.msra.mxu0 0.0
        %1288 = vmatprep.subr.mxu0 0.0
        %1289 = vmatpush1.msra.mxu0 0.0
        %1290 = vmatprep.subr.mxu0 0.0
        %1291 = vmatpush1.msra.mxu0 0.0
        %1292 = vmatprep.subr.mxu0 0.0
        %1293 = vmatpush1.msra.mxu0 0.0
        %1294 = vmatprep.subr.mxu0 0.0
        %1295 = vmatpush1.msra.mxu0 0.0
        %1296 = vmatprep.subr.mxu0 0.0
        %1297 = vmatpush1.msra.mxu0 0.0
        %1298 = vmatprep.subr.mxu0 0.0
        %1299 = vmatpush1.msra.mxu0 0.0
        %1300 = vmatprep.subr.mxu0 0.0
        %1301 = vmatpush1.msra.mxu0 0.0
        %1302 = vmatprep.subr.mxu0 0.0
        %1303 = vmatpush1.msra.mxu0 0.0
        %1304 = vmatprep.subr.mxu0 0.0
        %1305 = vmatpush1.msra.mxu0 0.0
        %1306 = vmatprep.subr.mxu0 0.0
        %1307 = vmatpush1.msra.mxu0 0.0
        %1308 = vmatprep.subr.mxu0 0.0
        %1309 = vmatpush1.msra.mxu0 0.0
        %1310 = vmatprep.subr.mxu0 0.0
        %1311 = vmatpush1.msra.mxu0 0.0
        %1312 = vmatprep.subr.mxu0 0.0
        %1313 = vmatpush1.msra.mxu0 0.0
        %1314 = vmatprep.subr.mxu0 0.0
        %1315 = vmatpush1.msra.mxu0 0.0
        %1316 = vmatprep.subr.mxu0 0.0
        %1317 = vmatpush1.msra.mxu0 0.0
        %1318 = vmatprep.subr.mxu0 0.0
        %1319 = vmatpush1.msra.mxu0 0.0
        %1320 = vmatprep.subr.mxu0 0.0
        %1321 = vmatpush1.msra.mxu0 0.0
        %1322 = vmatprep.subr.mxu0 0.0
        %1323 = vmatpush1.msra.mxu0 0.0
        %1324 = vmatprep.mubr.f32.mxu0 0.0
        %1325 = vmatmul.mubr.f32.gmra.mrb[0].mxu0 %v1187
        %v1326 = vpop.f32.mrb[0].mxu0
        %v1327 = vadd.f32 0.0, %v1326
        %v1328 = vpop.f32.mrb[0].mxu0
        %v1329 = vadd.f32 0.0, %v1328
        %1330 = vdwg.mxu0
        %v1331 = vadd.f32 %v1116, %v1256
        %v1332 = vadd.f32 %v1117, %v1258
        %v1333 = vadd.f32 %v1118, %v1327
        %v1334 = vadd.f32 %v1119, %v1329
        %s1335 = scalar_lea.vmem %s2, 5
        %v1336 = vld [vmem:[%s1335] ss:$8 sm:$0xf]
        %v1338 = vlaneseq
        %v1339 = vshrl.u32 %v1338, 7
        %v1340 = vsub.s32 0, %v1339
        %v1341 = vrot.slane %v1336, %v1340
        %v1342 = vlaneseq
        %v1343 = vshrl.u32 %v1342, 7
        %v1344 = vsub.s32 1, %v1343
        %v1345 = vrot.slane %v1336, %v1344
        %v1346 = vlaneseq
        %v1347 = vshrl.u32 %v1346, 7
        %v1348 = vsub.s32 2, %v1347
        %v1349 = vrot.slane %v1336, %v1348
        %v1350 = vlaneseq
        %v1351 = vshrl.u32 %v1350, 7
        %v1352 = vsub.s32 3, %v1351
        %v1353 = vrot.slane %v1336, %v1352
        %1354 = vrot.lane.b32.xlu0 %v1341, 65
        %v1355 = vpop.permute.xlu0 %1354
        %1356 = vrot.lane.b32.xlu0 %v1345, 65
        %v1357 = vpop.permute.xlu0 %1356
        %1358 = vrot.lane.b32.xlu0 %v1349, 65
        %v1359 = vpop.permute.xlu0 %1358
        %1360 = vrot.lane.b32.xlu0 %v1353, 65
        %v1361 = vpop.permute.xlu0 %1360
        %v1362 = vsel %vm962, %v1355, %v1357
        %v1363 = vsel %vm962, %v1357, %v1359
        %v1364 = vsel %vm962, %v1359, %v1361
        %v1370 = vmul.f32 %v260, %v1355
        %v1371 = vmul.f32 %v261, %v1362
        %v1372 = vmul.f32 %v262, %v1363
        %v1373 = vmul.f32 %v263, %v1364
        %v1374 = vmul.f32 %v264, %v1361
        %s1375 = scalar_lea.vmem %s1, 40
        %v1376 = vld [vmem:[%s1375] sm:$0xff]
        %1382 = vrot.lane.b32.xlu0 %v1370, 63
        %v1383 = vpop.permute.xlu0 %1382
        %1384 = vrot.lane.b32.xlu0 %v1371, 63
        %v1385 = vpop.permute.xlu0 %1384
        %1386 = vrot.lane.b32.xlu0 %v1372, 63
        %v1387 = vpop.permute.xlu0 %1386
        %1388 = vrot.lane.b32.xlu0 %v1373, 63
        %v1389 = vpop.permute.xlu0 %1388
        %1390 = vrot.lane.b32.xlu0 %v1374, 63
        %v1391 = vpop.permute.xlu0 %1390
        %v1392 = vsel %vm931, %v1383, %v1385
        %v1393 = vsel %vm931, %v1385, %v1387
        %v1394 = vsel %vm931, %v1387, %v1389
        %v1395 = vsel %vm931, %v1389, %v1391
        %v1401 = vsel %vm373, %v1376, 0
        %1403 = vmatprep.subr.mxu0 %v1393
        %1404 = vmatpush1.msra.mxu0 %v1392
        %1405 = vmatprep.subr.mxu0 0.0
        %1406 = vmatpush1.msra.mxu0 0.0
        %1407 = vmatprep.subr.mxu0 0.0
        %1408 = vmatpush1.msra.mxu0 0.0
        %1409 = vmatprep.subr.mxu0 0.0
        %1410 = vmatpush1.msra.mxu0 0.0
        %1411 = vmatprep.subr.mxu0 0.0
        %1412 = vmatpush1.msra.mxu0 0.0
        %1413 = vmatprep.subr.mxu0 0.0
        %1414 = vmatpush1.msra.mxu0 0.0
        %1415 = vmatprep.subr.mxu0 0.0
        %1416 = vmatpush1.msra.mxu0 0.0
        %1417 = vmatprep.subr.mxu0 0.0
        %1418 = vmatpush1.msra.mxu0 0.0
        %1419 = vmatprep.subr.mxu0 0.0
        %1420 = vmatpush1.msra.mxu0 0.0
        %1421 = vmatprep.subr.mxu0 0.0
        %1422 = vmatpush1.msra.mxu0 0.0
        %1423 = vmatprep.subr.mxu0 0.0
        %1424 = vmatpush1.msra.mxu0 0.0
        %1425 = vmatprep.subr.mxu0 0.0
        %1426 = vmatpush1.msra.mxu0 0.0
        %1427 = vmatprep.subr.mxu0 0.0
        %1428 = vmatpush1.msra.mxu0 0.0
        %1429 = vmatprep.subr.mxu0 0.0
        %1430 = vmatpush1.msra.mxu0 0.0
        %1431 = vmatprep.subr.mxu0 0.0
        %1432 = vmatpush1.msra.mxu0 0.0
        %1433 = vmatprep.subr.mxu0 0.0
        %1434 = vmatpush1.msra.mxu0 0.0
        %1435 = vmatprep.subr.mxu0 0.0
        %1436 = vmatpush1.msra.mxu0 0.0
        %1437 = vmatprep.subr.mxu0 0.0
        %1438 = vmatpush1.msra.mxu0 0.0
        %1439 = vmatprep.subr.mxu0 0.0
        %1440 = vmatpush1.msra.mxu0 0.0
        %1441 = vmatprep.subr.mxu0 0.0
        %1442 = vmatpush1.msra.mxu0 0.0
        %1443 = vmatprep.subr.mxu0 0.0
        %1444 = vmatpush1.msra.mxu0 0.0
        %1445 = vmatprep.subr.mxu0 0.0
        %1446 = vmatpush1.msra.mxu0 0.0
        %1447 = vmatprep.subr.mxu0 0.0
        %1448 = vmatpush1.msra.mxu0 0.0
        %1449 = vmatprep.subr.mxu0 0.0
        %1450 = vmatpush1.msra.mxu0 0.0
        %1451 = vmatprep.subr.mxu0 0.0
        %1452 = vmatpush1.msra.mxu0 0.0
        %1453 = vmatprep.subr.mxu0 0.0
        %1454 = vmatpush1.msra.mxu0 0.0
        %1455 = vmatprep.subr.mxu0 0.0
        %1456 = vmatpush1.msra.mxu0 0.0
        %1457 = vmatprep.subr.mxu0 0.0
        %1458 = vmatpush1.msra.mxu0 0.0
        %1459 = vmatprep.subr.mxu0 0.0
        %1460 = vmatpush1.msra.mxu0 0.0
        %1461 = vmatprep.subr.mxu0 0.0
        %1462 = vmatpush1.msra.mxu0 0.0
        %1463 = vmatprep.subr.mxu0 0.0
        %1464 = vmatpush1.msra.mxu0 0.0
        %1465 = vmatprep.subr.mxu0 0.0
        %1466 = vmatpush1.msra.mxu0 0.0
        %1467 = vmatprep.mubr.f32.mxu0 0.0
        %1468 = vmatmul.mubr.f32.gmra.mrb[0].mxu0 %v1401
        %v1469 = vpop.f32.mrb[0].mxu0
        %v1470 = vadd.f32 0.0, %v1469
        %v1471 = vpop.f32.mrb[0].mxu0
        %v1472 = vadd.f32 0.0, %v1471
        %1473 = vdwg.mxu0
        %1474 = vmatprep.subr.mxu0 %v1395
        %1475 = vmatpush1.msra.mxu0 %v1394
        %1476 = vmatprep.subr.mxu0 0.0
        %1477 = vmatpush1.msra.mxu0 0.0
        %1478 = vmatprep.subr.mxu0 0.0
        %1479 = vmatpush1.msra.mxu0 0.0
        %1480 = vmatprep.subr.mxu0 0.0
        %1481 = vmatpush1.msra.mxu0 0.0
        %1482 = vmatprep.subr.mxu0 0.0
        %1483 = vmatpush1.msra.mxu0 0.0
        %1484 = vmatprep.subr.mxu0 0.0
        %1485 = vmatpush1.msra.mxu0 0.0
        %1486 = vmatprep.subr.mxu0 0.0
        %1487 = vmatpush1.msra.mxu0 0.0
        %1488 = vmatprep.subr.mxu0 0.0
        %1489 = vmatpush1.msra.mxu0 0.0
        %1490 = vmatprep.subr.mxu0 0.0
        %1491 = vmatpush1.msra.mxu0 0.0
        %1492 = vmatprep.subr.mxu0 0.0
        %1493 = vmatpush1.msra.mxu0 0.0
        %1494 = vmatprep.subr.mxu0 0.0
        %1495 = vmatpush1.msra.mxu0 0.0
        %1496 = vmatprep.subr.mxu0 0.0
        %1497 = vmatpush1.msra.mxu0 0.0
        %1498 = vmatprep.subr.mxu0 0.0
        %1499 = vmatpush1.msra.mxu0 0.0
        %1500 = vmatprep.subr.mxu0 0.0
        %1501 = vmatpush1.msra.mxu0 0.0
        %1502 = vmatprep.subr.mxu0 0.0
        %1503 = vmatpush1.msra.mxu0 0.0
        %1504 = vmatprep.subr.mxu0 0.0
        %1505 = vmatpush1.msra.mxu0 0.0
        %1506 = vmatprep.subr.mxu0 0.0
        %1507 = vmatpush1.msra.mxu0 0.0
        %1508 = vmatprep.subr.mxu0 0.0
        %1509 = vmatpush1.msra.mxu0 0.0
        %1510 = vmatprep.subr.mxu0 0.0
        %1511 = vmatpush1.msra.mxu0 0.0
        %1512 = vmatprep.subr.mxu0 0.0
        %1513 = vmatpush1.msra.mxu0 0.0
        %1514 = vmatprep.subr.mxu0 0.0
        %1515 = vmatpush1.msra.mxu0 0.0
        %1516 = vmatprep.subr.mxu0 0.0
        %1517 = vmatpush1.msra.mxu0 0.0
        %1518 = vmatprep.subr.mxu0 0.0
        %1519 = vmatpush1.msra.mxu0 0.0
        %1520 = vmatprep.subr.mxu0 0.0
        %1521 = vmatpush1.msra.mxu0 0.0
        %1522 = vmatprep.subr.mxu0 0.0
        %1523 = vmatpush1.msra.mxu0 0.0
        %1524 = vmatprep.subr.mxu0 0.0
        %1525 = vmatpush1.msra.mxu0 0.0
        %1526 = vmatprep.subr.mxu0 0.0
        %1527 = vmatpush1.msra.mxu0 0.0
        %1528 = vmatprep.subr.mxu0 0.0
        %1529 = vmatpush1.msra.mxu0 0.0
        %1530 = vmatprep.subr.mxu0 0.0
        %1531 = vmatpush1.msra.mxu0 0.0
        %1532 = vmatprep.subr.mxu0 0.0
        %1533 = vmatpush1.msra.mxu0 0.0
        %1534 = vmatprep.subr.mxu0 0.0
        %1535 = vmatpush1.msra.mxu0 0.0
        %1536 = vmatprep.subr.mxu0 0.0
        %1537 = vmatpush1.msra.mxu0 0.0
        %1538 = vmatprep.mubr.f32.mxu0 0.0
        %1539 = vmatmul.mubr.f32.gmra.mrb[0].mxu0 %v1401
        %v1540 = vpop.f32.mrb[0].mxu0
        %v1541 = vadd.f32 0.0, %v1540
        %v1542 = vpop.f32.mrb[0].mxu0
        %v1543 = vadd.f32 0.0, %v1542
        %1544 = vdwg.mxu0
        %v1545 = vadd.f32 %v1331, %v1470
        %v1546 = vadd.f32 %v1332, %v1472
        %v1547 = vadd.f32 %v1333, %v1541
        %v1548 = vadd.f32 %v1334, %v1543
        %s1549 = scalar_lea.vmem %s2, 6
        %v1550 = vld [vmem:[%s1549] ss:$8 sm:$0xf]
        %v1552 = vlaneseq
        %v1553 = vshrl.u32 %v1552, 7
        %v1554 = vsub.s32 0, %v1553
        %v1555 = vrot.slane %v1550, %v1554
        %v1556 = vlaneseq
        %v1557 = vshrl.u32 %v1556, 7
        %v1558 = vsub.s32 1, %v1557
        %v1559 = vrot.slane %v1550, %v1558
        %v1560 = vlaneseq
        %v1561 = vshrl.u32 %v1560, 7
        %v1562 = vsub.s32 2, %v1561
        %v1563 = vrot.slane %v1550, %v1562
        %v1564 = vlaneseq
        %v1565 = vshrl.u32 %v1564, 7
        %v1566 = vsub.s32 3, %v1565
        %v1567 = vrot.slane %v1550, %v1566
        %1568 = vrot.lane.b32.xlu0 %v1555, 71
        %v1569 = vpop.permute.xlu0 %1568
        %1570 = vrot.lane.b32.xlu0 %v1559, 71
        %v1571 = vpop.permute.xlu0 %1570
        %1572 = vrot.lane.b32.xlu0 %v1563, 71
        %v1573 = vpop.permute.xlu0 %1572
        %1574 = vrot.lane.b32.xlu0 %v1567, 71
        %v1575 = vpop.permute.xlu0 %1574
        %v1576 = vsel %vm746, %v1569, %v1571
        %v1577 = vsel %vm746, %v1571, %v1573
        %v1578 = vsel %vm746, %v1573, %v1575
        %v1584 = vmul.f32 %v260, %v1569
        %v1585 = vmul.f32 %v261, %v1576
        %v1586 = vmul.f32 %v262, %v1577
        %v1587 = vmul.f32 %v263, %v1578
        %v1588 = vmul.f32 %v264, %v1575
        %s1589 = scalar_lea.vmem %s1, 48
        %v1590 = vld [vmem:[%s1589] sm:$0xff]
        %1596 = vrot.lane.b32.xlu0 %v1584, 57
        %v1597 = vpop.permute.xlu0 %1596
        %1598 = vrot.lane.b32.xlu0 %v1585, 57
        %v1599 = vpop.permute.xlu0 %1598
        %1600 = vrot.lane.b32.xlu0 %v1586, 57
        %v1601 = vpop.permute.xlu0 %1600
        %1602 = vrot.lane.b32.xlu0 %v1587, 57
        %v1603 = vpop.permute.xlu0 %1602
        %1604 = vrot.lane.b32.xlu0 %v1588, 57
        %v1605 = vpop.permute.xlu0 %1604
        %v1606 = vsel %vm715, %v1597, %v1599
        %v1607 = vsel %vm715, %v1599, %v1601
        %v1608 = vsel %vm715, %v1601, %v1603
        %v1609 = vsel %vm715, %v1603, %v1605
        %v1615 = vsel %vm373, %v1590, 0
        %1617 = vmatprep.subr.mxu0 %v1607
        %1618 = vmatpush1.msra.mxu0 %v1606
        %1619 = vmatprep.subr.mxu0 0.0
        %1620 = vmatpush1.msra.mxu0 0.0
        %1621 = vmatprep.subr.mxu0 0.0
        %1622 = vmatpush1.msra.mxu0 0.0
        %1623 = vmatprep.subr.mxu0 0.0
        %1624 = vmatpush1.msra.mxu0 0.0
        %1625 = vmatprep.subr.mxu0 0.0
        %1626 = vmatpush1.msra.mxu0 0.0
        %1627 = vmatprep.subr.mxu0 0.0
        %1628 = vmatpush1.msra.mxu0 0.0
        %1629 = vmatprep.subr.mxu0 0.0
        %1630 = vmatpush1.msra.mxu0 0.0
        %1631 = vmatprep.subr.mxu0 0.0
        %1632 = vmatpush1.msra.mxu0 0.0
        %1633 = vmatprep.subr.mxu0 0.0
        %1634 = vmatpush1.msra.mxu0 0.0
        %1635 = vmatprep.subr.mxu0 0.0
        %1636 = vmatpush1.msra.mxu0 0.0
        %1637 = vmatprep.subr.mxu0 0.0
        %1638 = vmatpush1.msra.mxu0 0.0
        %1639 = vmatprep.subr.mxu0 0.0
        %1640 = vmatpush1.msra.mxu0 0.0
        %1641 = vmatprep.subr.mxu0 0.0
        %1642 = vmatpush1.msra.mxu0 0.0
        %1643 = vmatprep.subr.mxu0 0.0
        %1644 = vmatpush1.msra.mxu0 0.0
        %1645 = vmatprep.subr.mxu0 0.0
        %1646 = vmatpush1.msra.mxu0 0.0
        %1647 = vmatprep.subr.mxu0 0.0
        %1648 = vmatpush1.msra.mxu0 0.0
        %1649 = vmatprep.subr.mxu0 0.0
        %1650 = vmatpush1.msra.mxu0 0.0
        %1651 = vmatprep.subr.mxu0 0.0
        %1652 = vmatpush1.msra.mxu0 0.0
        %1653 = vmatprep.subr.mxu0 0.0
        %1654 = vmatpush1.msra.mxu0 0.0
        %1655 = vmatprep.subr.mxu0 0.0
        %1656 = vmatpush1.msra.mxu0 0.0
        %1657 = vmatprep.subr.mxu0 0.0
        %1658 = vmatpush1.msra.mxu0 0.0
        %1659 = vmatprep.subr.mxu0 0.0
        %1660 = vmatpush1.msra.mxu0 0.0
        %1661 = vmatprep.subr.mxu0 0.0
        %1662 = vmatpush1.msra.mxu0 0.0
        %1663 = vmatprep.subr.mxu0 0.0
        %1664 = vmatpush1.msra.mxu0 0.0
        %1665 = vmatprep.subr.mxu0 0.0
        %1666 = vmatpush1.msra.mxu0 0.0
        %1667 = vmatprep.subr.mxu0 0.0
        %1668 = vmatpush1.msra.mxu0 0.0
        %1669 = vmatprep.subr.mxu0 0.0
        %1670 = vmatpush1.msra.mxu0 0.0
        %1671 = vmatprep.subr.mxu0 0.0
        %1672 = vmatpush1.msra.mxu0 0.0
        %1673 = vmatprep.subr.mxu0 0.0
        %1674 = vmatpush1.msra.mxu0 0.0
        %1675 = vmatprep.subr.mxu0 0.0
        %1676 = vmatpush1.msra.mxu0 0.0
        %1677 = vmatprep.subr.mxu0 0.0
        %1678 = vmatpush1.msra.mxu0 0.0
        %1679 = vmatprep.subr.mxu0 0.0
        %1680 = vmatpush1.msra.mxu0 0.0
        %1681 = vmatprep.mubr.f32.mxu0 0.0
        %1682 = vmatmul.mubr.f32.gmra.mrb[0].mxu0 %v1615
        %v1683 = vpop.f32.mrb[0].mxu0
        %v1684 = vadd.f32 0.0, %v1683
        %v1685 = vpop.f32.mrb[0].mxu0
        %v1686 = vadd.f32 0.0, %v1685
        %1687 = vdwg.mxu0
        %1688 = vmatprep.subr.mxu0 %v1609
        %1689 = vmatpush1.msra.mxu0 %v1608
        %1690 = vmatprep.subr.mxu0 0.0
        %1691 = vmatpush1.msra.mxu0 0.0
        %1692 = vmatprep.subr.mxu0 0.0
        %1693 = vmatpush1.msra.mxu0 0.0
        %1694 = vmatprep.subr.mxu0 0.0
        %1695 = vmatpush1.msra.mxu0 0.0
        %1696 = vmatprep.subr.mxu0 0.0
        %1697 = vmatpush1.msra.mxu0 0.0
        %1698 = vmatprep.subr.mxu0 0.0
        %1699 = vmatpush1.msra.mxu0 0.0
        %1700 = vmatprep.subr.mxu0 0.0
        %1701 = vmatpush1.msra.mxu0 0.0
        %1702 = vmatprep.subr.mxu0 0.0
        %1703 = vmatpush1.msra.mxu0 0.0
        %1704 = vmatprep.subr.mxu0 0.0
        %1705 = vmatpush1.msra.mxu0 0.0
        %1706 = vmatprep.subr.mxu0 0.0
        %1707 = vmatpush1.msra.mxu0 0.0
        %1708 = vmatprep.subr.mxu0 0.0
        %1709 = vmatpush1.msra.mxu0 0.0
        %1710 = vmatprep.subr.mxu0 0.0
        %1711 = vmatpush1.msra.mxu0 0.0
        %1712 = vmatprep.subr.mxu0 0.0
        %1713 = vmatpush1.msra.mxu0 0.0
        %1714 = vmatprep.subr.mxu0 0.0
        %1715 = vmatpush1.msra.mxu0 0.0
        %1716 = vmatprep.subr.mxu0 0.0
        %1717 = vmatpush1.msra.mxu0 0.0
        %1718 = vmatprep.subr.mxu0 0.0
        %1719 = vmatpush1.msra.mxu0 0.0
        %1720 = vmatprep.subr.mxu0 0.0
        %1721 = vmatpush1.msra.mxu0 0.0
        %1722 = vmatprep.subr.mxu0 0.0
        %1723 = vmatpush1.msra.mxu0 0.0
        %1724 = vmatprep.subr.mxu0 0.0
        %1725 = vmatpush1.msra.mxu0 0.0
        %1726 = vmatprep.subr.mxu0 0.0
        %1727 = vmatpush1.msra.mxu0 0.0
        %1728 = vmatprep.subr.mxu0 0.0
        %1729 = vmatpush1.msra.mxu0 0.0
        %1730 = vmatprep.subr.mxu0 0.0
        %1731 = vmatpush1.msra.mxu0 0.0
        %1732 = vmatprep.subr.mxu0 0.0
        %1733 = vmatpush1.msra.mxu0 0.0
        %1734 = vmatprep.subr.mxu0 0.0
        %1735 = vmatpush1.msra.mxu0 0.0
        %1736 = vmatprep.subr.mxu0 0.0
        %1737 = vmatpush1.msra.mxu0 0.0
        %1738 = vmatprep.subr.mxu0 0.0
        %1739 = vmatpush1.msra.mxu0 0.0
        %1740 = vmatprep.subr.mxu0 0.0
        %1741 = vmatpush1.msra.mxu0 0.0
        %1742 = vmatprep.subr.mxu0 0.0
        %1743 = vmatpush1.msra.mxu0 0.0
        %1744 = vmatprep.subr.mxu0 0.0
        %1745 = vmatpush1.msra.mxu0 0.0
        %1746 = vmatprep.subr.mxu0 0.0
        %1747 = vmatpush1.msra.mxu0 0.0
        %1748 = vmatprep.subr.mxu0 0.0
        %1749 = vmatpush1.msra.mxu0 0.0
        %1750 = vmatprep.subr.mxu0 0.0
        %1751 = vmatpush1.msra.mxu0 0.0
        %1752 = vmatprep.mubr.f32.mxu0 0.0
        %1753 = vmatmul.mubr.f32.gmra.mrb[0].mxu0 %v1615
        %v1754 = vpop.f32.mrb[0].mxu0
        %v1755 = vadd.f32 0.0, %v1754
        %v1756 = vpop.f32.mrb[0].mxu0
        %v1757 = vadd.f32 0.0, %v1756
        %1758 = vdwg.mxu0
        %v1759 = vadd.f32 %v1545, %v1684
        %v1760 = vadd.f32 %v1546, %v1686
        %v1761 = vadd.f32 %v1547, %v1755
        %v1762 = vadd.f32 %v1548, %v1757
        %s1763 = scalar_lea.vmem %s2, 7
        %v1764 = vld [vmem:[%s1763] ss:$8 sm:$0xf]
        %v1766 = vlaneseq
        %v1767 = vshrl.u32 %v1766, 7
        %v1768 = vsub.s32 0, %v1767
        %v1769 = vrot.slane %v1764, %v1768
        %v1770 = vlaneseq
        %v1771 = vshrl.u32 %v1770, 7
        %v1772 = vsub.s32 1, %v1771
        %v1773 = vrot.slane %v1764, %v1772
        %v1774 = vlaneseq
        %v1775 = vshrl.u32 %v1774, 7
        %v1776 = vsub.s32 2, %v1775
        %v1777 = vrot.slane %v1764, %v1776
        %v1778 = vlaneseq
        %v1779 = vshrl.u32 %v1778, 7
        %v1780 = vsub.s32 3, %v1779
        %v1781 = vrot.slane %v1764, %v1780
        %1782 = vrot.lane.b32.xlu0 %v1769, 72
        %v1783 = vpop.permute.xlu0 %1782
        %1784 = vrot.lane.b32.xlu0 %v1773, 72
        %v1785 = vpop.permute.xlu0 %1784
        %1786 = vrot.lane.b32.xlu0 %v1777, 72
        %v1787 = vpop.permute.xlu0 %1786
        %1788 = vrot.lane.b32.xlu0 %v1781, 72
        %v1789 = vpop.permute.xlu0 %1788
        %v1790 = vsel %vm364, %v1783, %v1785
        %v1791 = vsel %vm364, %v1785, %v1787
        %v1792 = vsel %vm364, %v1787, %v1789
        %v1798 = vmul.f32 %v260, %v1783
        %v1799 = vmul.f32 %v261, %v1790
        %v1800 = vmul.f32 %v262, %v1791
        %v1801 = vmul.f32 %v263, %v1792
        %v1802 = vmul.f32 %v264, %v1789
        %s1803 = scalar_lea.vmem %s1, 56
        %v1804 = vld [vmem:[%s1803] sm:$0xff]
        %1810 = vrot.lane.b32.xlu0 %v1798, 56
        %v1811 = vpop.permute.xlu0 %1810
        %1812 = vrot.lane.b32.xlu0 %v1799, 56
        %v1813 = vpop.permute.xlu0 %1812
        %1814 = vrot.lane.b32.xlu0 %v1800, 56
        %v1815 = vpop.permute.xlu0 %1814
        %1816 = vrot.lane.b32.xlu0 %v1801, 56
        %v1817 = vpop.permute.xlu0 %1816
        %1818 = vrot.lane.b32.xlu0 %v1802, 56
        %v1819 = vpop.permute.xlu0 %1818
        %v1820 = vsel %vm333, %v1811, %v1813
        %v1821 = vsel %vm333, %v1813, %v1815
        %v1822 = vsel %vm333, %v1815, %v1817
        %v1823 = vsel %vm333, %v1817, %v1819
        %v1829 = vsel %vm373, %v1804, 0
        %1831 = vmatprep.subr.mxu0 %v1821
        %1832 = vmatpush1.msra.mxu0 %v1820
        %1833 = vmatprep.subr.mxu0 0.0
        %1834 = vmatpush1.msra.mxu0 0.0
        %1835 = vmatprep.subr.mxu0 0.0
        %1836 = vmatpush1.msra.mxu0 0.0
        %1837 = vmatprep.subr.mxu0 0.0
        %1838 = vmatpush1.msra.mxu0 0.0
        %1839 = vmatprep.subr.mxu0 0.0
        %1840 = vmatpush1.msra.mxu0 0.0
        %1841 = vmatprep.subr.mxu0 0.0
        %1842 = vmatpush1.msra.mxu0 0.0
        %1843 = vmatprep.subr.mxu0 0.0
        %1844 = vmatpush1.msra.mxu0 0.0
        %1845 = vmatprep.subr.mxu0 0.0
        %1846 = vmatpush1.msra.mxu0 0.0
        %1847 = vmatprep.subr.mxu0 0.0
        %1848 = vmatpush1.msra.mxu0 0.0
        %1849 = vmatprep.subr.mxu0 0.0
        %1850 = vmatpush1.msra.mxu0 0.0
        %1851 = vmatprep.subr.mxu0 0.0
        %1852 = vmatpush1.msra.mxu0 0.0
        %1853 = vmatprep.subr.mxu0 0.0
        %1854 = vmatpush1.msra.mxu0 0.0
        %1855 = vmatprep.subr.mxu0 0.0
        %1856 = vmatpush1.msra.mxu0 0.0
        %1857 = vmatprep.subr.mxu0 0.0
        %1858 = vmatpush1.msra.mxu0 0.0
        %1859 = vmatprep.subr.mxu0 0.0
        %1860 = vmatpush1.msra.mxu0 0.0
        %1861 = vmatprep.subr.mxu0 0.0
        %1862 = vmatpush1.msra.mxu0 0.0
        %1863 = vmatprep.subr.mxu0 0.0
        %1864 = vmatpush1.msra.mxu0 0.0
        %1865 = vmatprep.subr.mxu0 0.0
        %1866 = vmatpush1.msra.mxu0 0.0
        %1867 = vmatprep.subr.mxu0 0.0
        %1868 = vmatpush1.msra.mxu0 0.0
        %1869 = vmatprep.subr.mxu0 0.0
        %1870 = vmatpush1.msra.mxu0 0.0
        %1871 = vmatprep.subr.mxu0 0.0
        %1872 = vmatpush1.msra.mxu0 0.0
        %1873 = vmatprep.subr.mxu0 0.0
        %1874 = vmatpush1.msra.mxu0 0.0
        %1875 = vmatprep.subr.mxu0 0.0
        %1876 = vmatpush1.msra.mxu0 0.0
        %1877 = vmatprep.subr.mxu0 0.0
        %1878 = vmatpush1.msra.mxu0 0.0
        %1879 = vmatprep.subr.mxu0 0.0
        %1880 = vmatpush1.msra.mxu0 0.0
        %1881 = vmatprep.subr.mxu0 0.0
        %1882 = vmatpush1.msra.mxu0 0.0
        %1883 = vmatprep.subr.mxu0 0.0
        %1884 = vmatpush1.msra.mxu0 0.0
        %1885 = vmatprep.subr.mxu0 0.0
        %1886 = vmatpush1.msra.mxu0 0.0
        %1887 = vmatprep.subr.mxu0 0.0
        %1888 = vmatpush1.msra.mxu0 0.0
        %1889 = vmatprep.subr.mxu0 0.0
        %1890 = vmatpush1.msra.mxu0 0.0
        %1891 = vmatprep.subr.mxu0 0.0
        %1892 = vmatpush1.msra.mxu0 0.0
        %1893 = vmatprep.subr.mxu0 0.0
        %1894 = vmatpush1.msra.mxu0 0.0
        %1895 = vmatprep.mubr.f32.mxu0 0.0
        %1896 = vmatmul.mubr.f32.gmra.mrb[0].mxu0 %v1829
        %v1897 = vpop.f32.mrb[0].mxu0
        %v1898 = vadd.f32 0.0, %v1897
        %v1899 = vpop.f32.mrb[0].mxu0
        %v1900 = vadd.f32 0.0, %v1899
        %1901 = vdwg.mxu0
        %1902 = vmatprep.subr.mxu0 %v1823
        %1903 = vmatpush1.msra.mxu0 %v1822
        %1904 = vmatprep.subr.mxu0 0.0
        %1905 = vmatpush1.msra.mxu0 0.0
        %1906 = vmatprep.subr.mxu0 0.0
        %1907 = vmatpush1.msra.mxu0 0.0
        %1908 = vmatprep.subr.mxu0 0.0
        %1909 = vmatpush1.msra.mxu0 0.0
        %1910 = vmatprep.subr.mxu0 0.0
        %1911 = vmatpush1.msra.mxu0 0.0
        %1912 = vmatprep.subr.mxu0 0.0
        %1913 = vmatpush1.msra.mxu0 0.0
        %1914 = vmatprep.subr.mxu0 0.0
        %1915 = vmatpush1.msra.mxu0 0.0
        %1916 = vmatprep.subr.mxu0 0.0
        %1917 = vmatpush1.msra.mxu0 0.0
        %1918 = vmatprep.subr.mxu0 0.0
        %1919 = vmatpush1.msra.mxu0 0.0
        %1920 = vmatprep.subr.mxu0 0.0
        %1921 = vmatpush1.msra.mxu0 0.0
        %1922 = vmatprep.subr.mxu0 0.0
        %1923 = vmatpush1.msra.mxu0 0.0
        %1924 = vmatprep.subr.mxu0 0.0
        %1925 = vmatpush1.msra.mxu0 0.0
        %1926 = vmatprep.subr.mxu0 0.0
        %1927 = vmatpush1.msra.mxu0 0.0
        %1928 = vmatprep.subr.mxu0 0.0
        %1929 = vmatpush1.msra.mxu0 0.0
        %1930 = vmatprep.subr.mxu0 0.0
        %1931 = vmatpush1.msra.mxu0 0.0
        %1932 = vmatprep.subr.mxu0 0.0
        %1933 = vmatpush1.msra.mxu0 0.0
        %1934 = vmatprep.subr.mxu0 0.0
        %1935 = vmatpush1.msra.mxu0 0.0
        %1936 = vmatprep.subr.mxu0 0.0
        %1937 = vmatpush1.msra.mxu0 0.0
        %1938 = vmatprep.subr.mxu0 0.0
        %1939 = vmatpush1.msra.mxu0 0.0
        %1940 = vmatprep.subr.mxu0 0.0
        %1941 = vmatpush1.msra.mxu0 0.0
        %1942 = vmatprep.subr.mxu0 0.0
        %1943 = vmatpush1.msra.mxu0 0.0
        %1944 = vmatprep.subr.mxu0 0.0
        %1945 = vmatpush1.msra.mxu0 0.0
        %1946 = vmatprep.subr.mxu0 0.0
        %1947 = vmatpush1.msra.mxu0 0.0
        %1948 = vmatprep.subr.mxu0 0.0
        %1949 = vmatpush1.msra.mxu0 0.0
        %1950 = vmatprep.subr.mxu0 0.0
        %1951 = vmatpush1.msra.mxu0 0.0
        %1952 = vmatprep.subr.mxu0 0.0
        %1953 = vmatpush1.msra.mxu0 0.0
        %1954 = vmatprep.subr.mxu0 0.0
        %1955 = vmatpush1.msra.mxu0 0.0
        %1956 = vmatprep.subr.mxu0 0.0
        %1957 = vmatpush1.msra.mxu0 0.0
        %1958 = vmatprep.subr.mxu0 0.0
        %1959 = vmatpush1.msra.mxu0 0.0
        %1960 = vmatprep.subr.mxu0 0.0
        %1961 = vmatpush1.msra.mxu0 0.0
        %1962 = vmatprep.subr.mxu0 0.0
        %1963 = vmatpush1.msra.mxu0 0.0
        %1964 = vmatprep.subr.mxu0 0.0
        %1965 = vmatpush1.msra.mxu0 0.0
        %1966 = vmatprep.mubr.f32.mxu0 0.0
        %1967 = vmatmul.mubr.f32.gmra.mrb[0].mxu0 %v1829
        %v1968 = vpop.f32.mrb[0].mxu0
        %v1969 = vadd.f32 0.0, %v1968
        %v1970 = vpop.f32.mrb[0].mxu0
        %v1971 = vadd.f32 0.0, %v1970
        %1972 = vdwg.mxu0
        %v1973 = vadd.f32 %v1759, %v1898
        %v1974 = vadd.f32 %v1760, %v1900
        %v1975 = vadd.f32 %v1761, %v1969
        %v1976 = vadd.f32 %v1762, %v1971
        %s1977 = scalar_lea.vmem %s2, 32
        %v1978 = vld [vmem:[%s1977] ss:$8 sm:$0xf]
        %v1980 = vlaneseq
        %v1981 = vshrl.u32 %v1980, 7
        %v1982 = vsub.s32 0, %v1981
        %v1983 = vrot.slane %v1978, %v1982
        %v1984 = vlaneseq
        %v1985 = vshrl.u32 %v1984, 7
        %v1986 = vsub.s32 1, %v1985
        %v1987 = vrot.slane %v1978, %v1986
        %v1988 = vlaneseq
        %v1989 = vshrl.u32 %v1988, 7
        %v1990 = vsub.s32 2, %v1989
        %v1991 = vrot.slane %v1978, %v1990
        %v1992 = vlaneseq
        %v1993 = vshrl.u32 %v1992, 7
        %v1994 = vsub.s32 3, %v1993
        %v1995 = vrot.slane %v1978, %v1994
        %1996 = vrot.lane.b32.xlu0 %v1983, 73
        %v1997 = vpop.permute.xlu0 %1996
        %1998 = vrot.lane.b32.xlu0 %v1987, 73
        %v1999 = vpop.permute.xlu0 %1998
        %2000 = vrot.lane.b32.xlu0 %v1991, 73
        %v2001 = vpop.permute.xlu0 %2000
        %2002 = vrot.lane.b32.xlu0 %v1995, 73
        %v2003 = vpop.permute.xlu0 %2002
        %v2004 = vsel %vm534, %v1997, %v1999
        %v2005 = vsel %vm534, %v1999, %v2001
        %v2006 = vsel %vm534, %v2001, %v2003
        %v2012 = vmul.f32 %v260, %v1997
        %v2013 = vmul.f32 %v261, %v2004
        %v2014 = vmul.f32 %v262, %v2005
        %v2015 = vmul.f32 %v263, %v2006
        %v2016 = vmul.f32 %v264, %v2003
        %s2017 = scalar_lea.vmem %s1, 64
        %v2018 = vld [vmem:[%s2017] sm:$0xff]
        %2024 = vrot.lane.b32.xlu0 %v2012, 55
        %v2025 = vpop.permute.xlu0 %2024
        %2026 = vrot.lane.b32.xlu0 %v2013, 55
        %v2027 = vpop.permute.xlu0 %2026
        %2028 = vrot.lane.b32.xlu0 %v2014, 55
        %v2029 = vpop.permute.xlu0 %2028
        %2030 = vrot.lane.b32.xlu0 %v2015, 55
        %v2031 = vpop.permute.xlu0 %2030
        %2032 = vrot.lane.b32.xlu0 %v2016, 55
        %v2033 = vpop.permute.xlu0 %2032
        %v2034 = vsel %vm291, %v2025, %v2027
        %v2035 = vsel %vm291, %v2027, %v2029
        %v2036 = vsel %vm291, %v2029, %v2031
        %v2037 = vsel %vm291, %v2031, %v2033
        %v2043 = vsel %vm373, %v2018, 0
        %2045 = vmatprep.subr.mxu0 %v2035
        %2046 = vmatpush1.msra.mxu0 %v2034
        %2047 = vmatprep.subr.mxu0 0.0
        %2048 = vmatpush1.msra.mxu0 0.0
        %2049 = vmatprep.subr.mxu0 0.0
        %2050 = vmatpush1.msra.mxu0 0.0
        %2051 = vmatprep.subr.mxu0 0.0
        %2052 = vmatpush1.msra.mxu0 0.0
        %2053 = vmatprep.subr.mxu0 0.0
        %2054 = vmatpush1.msra.mxu0 0.0
        %2055 = vmatprep.subr.mxu0 0.0
        %2056 = vmatpush1.msra.mxu0 0.0
        %2057 = vmatprep.subr.mxu0 0.0
        %2058 = vmatpush1.msra.mxu0 0.0
        %2059 = vmatprep.subr.mxu0 0.0
        %2060 = vmatpush1.msra.mxu0 0.0
        %2061 = vmatprep.subr.mxu0 0.0
        %2062 = vmatpush1.msra.mxu0 0.0
        %2063 = vmatprep.subr.mxu0 0.0
        %2064 = vmatpush1.msra.mxu0 0.0
        %2065 = vmatprep.subr.mxu0 0.0
        %2066 = vmatpush1.msra.mxu0 0.0
        %2067 = vmatprep.subr.mxu0 0.0
        %2068 = vmatpush1.msra.mxu0 0.0
        %2069 = vmatprep.subr.mxu0 0.0
        %2070 = vmatpush1.msra.mxu0 0.0
        %2071 = vmatprep.subr.mxu0 0.0
        %2072 = vmatpush1.msra.mxu0 0.0
        %2073 = vmatprep.subr.mxu0 0.0
        %2074 = vmatpush1.msra.mxu0 0.0
        %2075 = vmatprep.subr.mxu0 0.0
        %2076 = vmatpush1.msra.mxu0 0.0
        %2077 = vmatprep.subr.mxu0 0.0
        %2078 = vmatpush1.msra.mxu0 0.0
        %2079 = vmatprep.subr.mxu0 0.0
        %2080 = vmatpush1.msra.mxu0 0.0
        %2081 = vmatprep.subr.mxu0 0.0
        %2082 = vmatpush1.msra.mxu0 0.0
        %2083 = vmatprep.subr.mxu0 0.0
        %2084 = vmatpush1.msra.mxu0 0.0
        %2085 = vmatprep.subr.mxu0 0.0
        %2086 = vmatpush1.msra.mxu0 0.0
        %2087 = vmatprep.subr.mxu0 0.0
        %2088 = vmatpush1.msra.mxu0 0.0
        %2089 = vmatprep.subr.mxu0 0.0
        %2090 = vmatpush1.msra.mxu0 0.0
        %2091 = vmatprep.subr.mxu0 0.0
        %2092 = vmatpush1.msra.mxu0 0.0
        %2093 = vmatprep.subr.mxu0 0.0
        %2094 = vmatpush1.msra.mxu0 0.0
        %2095 = vmatprep.subr.mxu0 0.0
        %2096 = vmatpush1.msra.mxu0 0.0
        %2097 = vmatprep.subr.mxu0 0.0
        %2098 = vmatpush1.msra.mxu0 0.0
        %2099 = vmatprep.subr.mxu0 0.0
        %2100 = vmatpush1.msra.mxu0 0.0
        %2101 = vmatprep.subr.mxu0 0.0
        %2102 = vmatpush1.msra.mxu0 0.0
        %2103 = vmatprep.subr.mxu0 0.0
        %2104 = vmatpush1.msra.mxu0 0.0
        %2105 = vmatprep.subr.mxu0 0.0
        %2106 = vmatpush1.msra.mxu0 0.0
        %2107 = vmatprep.subr.mxu0 0.0
        %2108 = vmatpush1.msra.mxu0 0.0
        %2109 = vmatprep.mubr.f32.mxu0 0.0
        %2110 = vmatmul.mubr.f32.gmra.mrb[0].mxu0 %v2043
        %v2111 = vpop.f32.mrb[0].mxu0
        %v2112 = vadd.f32 0.0, %v2111
        %v2113 = vpop.f32.mrb[0].mxu0
        %v2114 = vadd.f32 0.0, %v2113
        %2115 = vdwg.mxu0
        %2116 = vmatprep.subr.mxu0 %v2037
        %2117 = vmatpush1.msra.mxu0 %v2036
        %2118 = vmatprep.subr.mxu0 0.0
        %2119 = vmatpush1.msra.mxu0 0.0
        %2120 = vmatprep.subr.mxu0 0.0
        %2121 = vmatpush1.msra.mxu0 0.0
        %2122 = vmatprep.subr.mxu0 0.0
        %2123 = vmatpush1.msra.mxu0 0.0
        %2124 = vmatprep.subr.mxu0 0.0
        %2125 = vmatpush1.msra.mxu0 0.0
        %2126 = vmatprep.subr.mxu0 0.0
        %2127 = vmatpush1.msra.mxu0 0.0
        %2128 = vmatprep.subr.mxu0 0.0
        %2129 = vmatpush1.msra.mxu0 0.0
        %2130 = vmatprep.subr.mxu0 0.0
        %2131 = vmatpush1.msra.mxu0 0.0
        %2132 = vmatprep.subr.mxu0 0.0
        %2133 = vmatpush1.msra.mxu0 0.0
        %2134 = vmatprep.subr.mxu0 0.0
        %2135 = vmatpush1.msra.mxu0 0.0
        %2136 = vmatprep.subr.mxu0 0.0
        %2137 = vmatpush1.msra.mxu0 0.0
        %2138 = vmatprep.subr.mxu0 0.0
        %2139 = vmatpush1.msra.mxu0 0.0
        %2140 = vmatprep.subr.mxu0 0.0
        %2141 = vmatpush1.msra.mxu0 0.0
        %2142 = vmatprep.subr.mxu0 0.0
        %2143 = vmatpush1.msra.mxu0 0.0
        %2144 = vmatprep.subr.mxu0 0.0
        %2145 = vmatpush1.msra.mxu0 0.0
        %2146 = vmatprep.subr.mxu0 0.0
        %2147 = vmatpush1.msra.mxu0 0.0
        %2148 = vmatprep.subr.mxu0 0.0
        %2149 = vmatpush1.msra.mxu0 0.0
        %2150 = vmatprep.subr.mxu0 0.0
        %2151 = vmatpush1.msra.mxu0 0.0
        %2152 = vmatprep.subr.mxu0 0.0
        %2153 = vmatpush1.msra.mxu0 0.0
        %2154 = vmatprep.subr.mxu0 0.0
        %2155 = vmatpush1.msra.mxu0 0.0
        %2156 = vmatprep.subr.mxu0 0.0
        %2157 = vmatpush1.msra.mxu0 0.0
        %2158 = vmatprep.subr.mxu0 0.0
        %2159 = vmatpush1.msra.mxu0 0.0
        %2160 = vmatprep.subr.mxu0 0.0
        %2161 = vmatpush1.msra.mxu0 0.0
        %2162 = vmatprep.subr.mxu0 0.0
        %2163 = vmatpush1.msra.mxu0 0.0
        %2164 = vmatprep.subr.mxu0 0.0
        %2165 = vmatpush1.msra.mxu0 0.0
        %2166 = vmatprep.subr.mxu0 0.0
        %2167 = vmatpush1.msra.mxu0 0.0
        %2168 = vmatprep.subr.mxu0 0.0
        %2169 = vmatpush1.msra.mxu0 0.0
        %2170 = vmatprep.subr.mxu0 0.0
        %2171 = vmatpush1.msra.mxu0 0.0
        %2172 = vmatprep.subr.mxu0 0.0
        %2173 = vmatpush1.msra.mxu0 0.0
        %2174 = vmatprep.subr.mxu0 0.0
        %2175 = vmatpush1.msra.mxu0 0.0
        %2176 = vmatprep.subr.mxu0 0.0
        %2177 = vmatpush1.msra.mxu0 0.0
        %2178 = vmatprep.subr.mxu0 0.0
        %2179 = vmatpush1.msra.mxu0 0.0
        %2180 = vmatprep.mubr.f32.mxu0 0.0
        %2181 = vmatmul.mubr.f32.gmra.mrb[0].mxu0 %v2043
        %v2182 = vpop.f32.mrb[0].mxu0
        %v2183 = vadd.f32 0.0, %v2182
        %v2184 = vpop.f32.mrb[0].mxu0
        %v2185 = vadd.f32 0.0, %v2184
        %2186 = vdwg.mxu0
        %v2187 = vadd.f32 %v1973, %v2112
        %v2188 = vadd.f32 %v1974, %v2114
        %v2189 = vadd.f32 %v1975, %v2183
        %v2190 = vadd.f32 %v1976, %v2185
        %s2191 = scalar_lea.vmem %s2, 33
        %v2192 = vld [vmem:[%s2191] ss:$8 sm:$0xf]
        %v2194 = vlaneseq
        %v2195 = vshrl.u32 %v2194, 7
        %v2196 = vsub.s32 0, %v2195
        %v2197 = vrot.slane %v2192, %v2196
        %v2198 = vlaneseq
        %v2199 = vshrl.u32 %v2198, 7
        %v2200 = vsub.s32 1, %v2199
        %v2201 = vrot.slane %v2192, %v2200
        %v2202 = vlaneseq
        %v2203 = vshrl.u32 %v2202, 7
        %v2204 = vsub.s32 2, %v2203
        %v2205 = vrot.slane %v2192, %v2204
        %v2206 = vlaneseq
        %v2207 = vshrl.u32 %v2206, 7
        %v2208 = vsub.s32 3, %v2207
        %v2209 = vrot.slane %v2192, %v2208
        %2210 = vrot.lane.b32.xlu0 %v2197, 119
        %v2211 = vpop.permute.xlu0 %2210
        %2212 = vrot.lane.b32.xlu0 %v2201, 119
        %v2213 = vpop.permute.xlu0 %2212
        %2214 = vrot.lane.b32.xlu0 %v2205, 119
        %v2215 = vpop.permute.xlu0 %2214
        %2216 = vrot.lane.b32.xlu0 %v2209, 119
        %v2217 = vpop.permute.xlu0 %2216
        %vm2218 = vcmask 973824
        %v2219 = vsel %vm2218, %v2211, %v2213
        %v2220 = vsel %vm2218, %v2213, %v2215
        %v2221 = vsel %vm2218, %v2215, %v2217
        %v2227 = vmul.f32 %v260, %v2211
        %v2228 = vmul.f32 %v261, %v2219
        %v2229 = vmul.f32 %v262, %v2220
        %v2230 = vmul.f32 %v263, %v2221
        %v2231 = vmul.f32 %v264, %v2217
        %s2232 = scalar_lea.vmem %s1, 72
        %v2233 = vld [vmem:[%s2232] sm:$0xff]
        %2239 = vrot.lane.b32.xlu0 %v2227, 9
        %v2240 = vpop.permute.xlu0 %2239
        %2241 = vrot.lane.b32.xlu0 %v2228, 9
        %v2242 = vpop.permute.xlu0 %2241
        %2243 = vrot.lane.b32.xlu0 %v2229, 9
        %v2244 = vpop.permute.xlu0 %2243
        %2245 = vrot.lane.b32.xlu0 %v2230, 9
        %v2246 = vpop.permute.xlu0 %2245
        %2247 = vrot.lane.b32.xlu0 %v2231, 9
        %v2248 = vpop.permute.xlu0 %2247
        %vm2249 = vcmask 72704
        %v2250 = vsel %vm2249, %v2240, %v2242
        %v2251 = vsel %vm2249, %v2242, %v2244
        %v2252 = vsel %vm2249, %v2244, %v2246
        %v2253 = vsel %vm2249, %v2246, %v2248
        %v2259 = vsel %vm373, %v2233, 0
        %2261 = vmatprep.subr.mxu0 %v2251
        %2262 = vmatpush1.msra.mxu0 %v2250
        %2263 = vmatprep.subr.mxu0 0.0
        %2264 = vmatpush1.msra.mxu0 0.0
        %2265 = vmatprep.subr.mxu0 0.0
        %2266 = vmatpush1.msra.mxu0 0.0
        %2267 = vmatprep.subr.mxu0 0.0
        %2268 = vmatpush1.msra.mxu0 0.0
        %2269 = vmatprep.subr.mxu0 0.0
        %2270 = vmatpush1.msra.mxu0 0.0
        %2271 = vmatprep.subr.mxu0 0.0
        %2272 = vmatpush1.msra.mxu0 0.0
        %2273 = vmatprep.subr.mxu0 0.0
        %2274 = vmatpush1.msra.mxu0 0.0
        %2275 = vmatprep.subr.mxu0 0.0
        %2276 = vmatpush1.msra.mxu0 0.0
        %2277 = vmatprep.subr.mxu0 0.0
        %2278 = vmatpush1.msra.mxu0 0.0
        %2279 = vmatprep.subr.mxu0 0.0
        %2280 = vmatpush1.msra.mxu0 0.0
        %2281 = vmatprep.subr.mxu0 0.0
        %2282 = vmatpush1.msra.mxu0 0.0
        %2283 = vmatprep.subr.mxu0 0.0
        %2284 = vmatpush1.msra.mxu0 0.0
        %2285 = vmatprep.subr.mxu0 0.0
        %2286 = vmatpush1.msra.mxu0 0.0
        %2287 = vmatprep.subr.mxu0 0.0
        %2288 = vmatpush1.msra.mxu0 0.0
        %2289 = vmatprep.subr.mxu0 0.0
        %2290 = vmatpush1.msra.mxu0 0.0
        %2291 = vmatprep.subr.mxu0 0.0
        %2292 = vmatpush1.msra.mxu0 0.0
        %2293 = vmatprep.subr.mxu0 0.0
        %2294 = vmatpush1.msra.mxu0 0.0
        %2295 = vmatprep.subr.mxu0 0.0
        %2296 = vmatpush1.msra.mxu0 0.0
        %2297 = vmatprep.subr.mxu0 0.0
        %2298 = vmatpush1.msra.mxu0 0.0
        %2299 = vmatprep.subr.mxu0 0.0
        %2300 = vmatpush1.msra.mxu0 0.0
        %2301 = vmatprep.subr.mxu0 0.0
        %2302 = vmatpush1.msra.mxu0 0.0
        %2303 = vmatprep.subr.mxu0 0.0
        %2304 = vmatpush1.msra.mxu0 0.0
        %2305 = vmatprep.subr.mxu0 0.0
        %2306 = vmatpush1.msra.mxu0 0.0
        %2307 = vmatprep.subr.mxu0 0.0
        %2308 = vmatpush1.msra.mxu0 0.0
        %2309 = vmatprep.subr.mxu0 0.0
        %2310 = vmatpush1.msra.mxu0 0.0
        %2311 = vmatprep.subr.mxu0 0.0
        %2312 = vmatpush1.msra.mxu0 0.0
        %2313 = vmatprep.subr.mxu0 0.0
        %2314 = vmatpush1.msra.mxu0 0.0
        %2315 = vmatprep.subr.mxu0 0.0
        %2316 = vmatpush1.msra.mxu0 0.0
        %2317 = vmatprep.subr.mxu0 0.0
        %2318 = vmatpush1.msra.mxu0 0.0
        %2319 = vmatprep.subr.mxu0 0.0
        %2320 = vmatpush1.msra.mxu0 0.0
        %2321 = vmatprep.subr.mxu0 0.0
        %2322 = vmatpush1.msra.mxu0 0.0
        %2323 = vmatprep.subr.mxu0 0.0
        %2324 = vmatpush1.msra.mxu0 0.0
        %2325 = vmatprep.mubr.f32.mxu0 0.0
        %2326 = vmatmul.mubr.f32.gmra.mrb[0].mxu0 %v2259
        %v2327 = vpop.f32.mrb[0].mxu0
        %v2328 = vadd.f32 0.0, %v2327
        %v2329 = vpop.f32.mrb[0].mxu0
        %v2330 = vadd.f32 0.0, %v2329
        %2331 = vdwg.mxu0
        %2332 = vmatprep.subr.mxu0 %v2253
        %2333 = vmatpush1.msra.mxu0 %v2252
        %2334 = vmatprep.subr.mxu0 0.0
        %2335 = vmatpush1.msra.mxu0 0.0
        %2336 = vmatprep.subr.mxu0 0.0
        %2337 = vmatpush1.msra.mxu0 0.0
        %2338 = vmatprep.subr.mxu0 0.0
        %2339 = vmatpush1.msra.mxu0 0.0
        %2340 = vmatprep.subr.mxu0 0.0
        %2341 = vmatpush1.msra.mxu0 0.0
        %2342 = vmatprep.subr.mxu0 0.0
        %2343 = vmatpush1.msra.mxu0 0.0
        %2344 = vmatprep.subr.mxu0 0.0
        %2345 = vmatpush1.msra.mxu0 0.0
        %2346 = vmatprep.subr.mxu0 0.0
        %2347 = vmatpush1.msra.mxu0 0.0
        %2348 = vmatprep.subr.mxu0 0.0
        %2349 = vmatpush1.msra.mxu0 0.0
        %2350 = vmatprep.subr.mxu0 0.0
        %2351 = vmatpush1.msra.mxu0 0.0
        %2352 = vmatprep.subr.mxu0 0.0
        %2353 = vmatpush1.msra.mxu0 0.0
        %2354 = vmatprep.subr.mxu0 0.0
        %2355 = vmatpush1.msra.mxu0 0.0
        %2356 = vmatprep.subr.mxu0 0.0
        %2357 = vmatpush1.msra.mxu0 0.0
        %2358 = vmatprep.subr.mxu0 0.0
        %2359 = vmatpush1.msra.mxu0 0.0
        %2360 = vmatprep.subr.mxu0 0.0
        %2361 = vmatpush1.msra.mxu0 0.0
        %2362 = vmatprep.subr.mxu0 0.0
        %2363 = vmatpush1.msra.mxu0 0.0
        %2364 = vmatprep.subr.mxu0 0.0
        %2365 = vmatpush1.msra.mxu0 0.0
        %2366 = vmatprep.subr.mxu0 0.0
        %2367 = vmatpush1.msra.mxu0 0.0
        %2368 = vmatprep.subr.mxu0 0.0
        %2369 = vmatpush1.msra.mxu0 0.0
        %2370 = vmatprep.subr.mxu0 0.0
        %2371 = vmatpush1.msra.mxu0 0.0
        %2372 = vmatprep.subr.mxu0 0.0
        %2373 = vmatpush1.msra.mxu0 0.0
        %2374 = vmatprep.subr.mxu0 0.0
        %2375 = vmatpush1.msra.mxu0 0.0
        %2376 = vmatprep.subr.mxu0 0.0
        %2377 = vmatpush1.msra.mxu0 0.0
        %2378 = vmatprep.subr.mxu0 0.0
        %2379 = vmatpush1.msra.mxu0 0.0
        %2380 = vmatprep.subr.mxu0 0.0
        %2381 = vmatpush1.msra.mxu0 0.0
        %2382 = vmatprep.subr.mxu0 0.0
        %2383 = vmatpush1.msra.mxu0 0.0
        %2384 = vmatprep.subr.mxu0 0.0
        %2385 = vmatpush1.msra.mxu0 0.0
        %2386 = vmatprep.subr.mxu0 0.0
        %2387 = vmatpush1.msra.mxu0 0.0
        %2388 = vmatprep.subr.mxu0 0.0
        %2389 = vmatpush1.msra.mxu0 0.0
        %2390 = vmatprep.subr.mxu0 0.0
        %2391 = vmatpush1.msra.mxu0 0.0
        %2392 = vmatprep.subr.mxu0 0.0
        %2393 = vmatpush1.msra.mxu0 0.0
        %2394 = vmatprep.subr.mxu0 0.0
        %2395 = vmatpush1.msra.mxu0 0.0
        %2396 = vmatprep.mubr.f32.mxu0 0.0
        %2397 = vmatmul.mubr.f32.gmra.mrb[0].mxu0 %v2259
        %v2398 = vpop.f32.mrb[0].mxu0
        %v2399 = vadd.f32 0.0, %v2398
        %v2400 = vpop.f32.mrb[0].mxu0
        %v2401 = vadd.f32 0.0, %v2400
        %2402 = vdwg.mxu0
        %v2403 = vadd.f32 %v2187, %v2328
        %v2404 = vadd.f32 %v2188, %v2330
        %v2405 = vadd.f32 %v2189, %v2399
        %v2406 = vadd.f32 %v2190, %v2401
        %s2407 = scalar_lea.vmem %s2, 34
        %v2408 = vld [vmem:[%s2407] ss:$8 sm:$0xf]
        %v2410 = vlaneseq
        %v2411 = vshrl.u32 %v2410, 7
        %v2412 = vsub.s32 0, %v2411
        %v2413 = vrot.slane %v2408, %v2412
        %v2414 = vlaneseq
        %v2415 = vshrl.u32 %v2414, 7
        %v2416 = vsub.s32 1, %v2415
        %v2417 = vrot.slane %v2408, %v2416
        %v2418 = vlaneseq
        %v2419 = vshrl.u32 %v2418, 7
        %v2420 = vsub.s32 2, %v2419
        %v2421 = vrot.slane %v2408, %v2420
        %v2422 = vlaneseq
        %v2423 = vshrl.u32 %v2422, 7
        %v2424 = vsub.s32 3, %v2423
        %v2425 = vrot.slane %v2408, %v2424
        %2426 = vrot.lane.b32.xlu0 %v2413, 120
        %v2427 = vpop.permute.xlu0 %2426
        %2428 = vrot.lane.b32.xlu0 %v2417, 120
        %v2429 = vpop.permute.xlu0 %2428
        %2430 = vrot.lane.b32.xlu0 %v2421, 120
        %v2431 = vpop.permute.xlu0 %2430
        %2432 = vrot.lane.b32.xlu0 %v2425, 120
        %v2433 = vpop.permute.xlu0 %2432
        %vm2434 = vcmask 982016
        %v2435 = vsel %vm2434, %v2427, %v2429
        %v2436 = vsel %vm2434, %v2429, %v2431
        %v2437 = vsel %vm2434, %v2431, %v2433
        %v2443 = vmul.f32 %v260, %v2427
        %v2444 = vmul.f32 %v261, %v2435
        %v2445 = vmul.f32 %v262, %v2436
        %v2446 = vmul.f32 %v263, %v2437
        %v2447 = vmul.f32 %v264, %v2433
        %s2448 = scalar_lea.vmem %s1, 80
        %v2449 = vld [vmem:[%s2448] sm:$0xff]
        %2455 = vrot.lane.b32.xlu0 %v2443, 8
        %v2456 = vpop.permute.xlu0 %2455
        %2457 = vrot.lane.b32.xlu0 %v2444, 8
        %v2458 = vpop.permute.xlu0 %2457
        %2459 = vrot.lane.b32.xlu0 %v2445, 8
        %v2460 = vpop.permute.xlu0 %2459
        %2461 = vrot.lane.b32.xlu0 %v2446, 8
        %v2462 = vpop.permute.xlu0 %2461
        %2463 = vrot.lane.b32.xlu0 %v2447, 8
        %v2464 = vpop.permute.xlu0 %2463
        %v2465 = vsel %vm373, %v2456, %v2458
        %v2466 = vsel %vm373, %v2458, %v2460
        %v2467 = vsel %vm373, %v2460, %v2462
        %v2468 = vsel %vm373, %v2462, %v2464
        %v2474 = vsel %vm373, %v2449, 0
        %2476 = vmatprep.subr.mxu0 %v2466
        %2477 = vmatpush1.msra.mxu0 %v2465
        %2478 = vmatprep.subr.mxu0 0.0
        %2479 = vmatpush1.msra.mxu0 0.0
        %2480 = vmatprep.subr.mxu0 0.0
        %2481 = vmatpush1.msra.mxu0 0.0
        %2482 = vmatprep.subr.mxu0 0.0
        %2483 = vmatpush1.msra.mxu0 0.0
        %2484 = vmatprep.subr.mxu0 0.0
        %2485 = vmatpush1.msra.mxu0 0.0
        %2486 = vmatprep.subr.mxu0 0.0
        %2487 = vmatpush1.msra.mxu0 0.0
        %2488 = vmatprep.subr.mxu0 0.0
        %2489 = vmatpush1.msra.mxu0 0.0
        %2490 = vmatprep.subr.mxu0 0.0
        %2491 = vmatpush1.msra.mxu0 0.0
        %2492 = vmatprep.subr.mxu0 0.0
        %2493 = vmatpush1.msra.mxu0 0.0
        %2494 = vmatprep.subr.mxu0 0.0
        %2495 = vmatpush1.msra.mxu0 0.0
        %2496 = vmatprep.subr.mxu0 0.0
        %2497 = vmatpush1.msra.mxu0 0.0
        %2498 = vmatprep.subr.mxu0 0.0
        %2499 = vmatpush1.msra.mxu0 0.0
        %2500 = vmatprep.subr.mxu0 0.0
        %2501 = vmatpush1.msra.mxu0 0.0
        %2502 = vmatprep.subr.mxu0 0.0
        %2503 = vmatpush1.msra.mxu0 0.0
        %2504 = vmatprep.subr.mxu0 0.0
        %2505 = vmatpush1.msra.mxu0 0.0
        %2506 = vmatprep.subr.mxu0 0.0
        %2507 = vmatpush1.msra.mxu0 0.0
        %2508 = vmatprep.subr.mxu0 0.0
        %2509 = vmatpush1.msra.mxu0 0.0
        %2510 = vmatprep.subr.mxu0 0.0
        %2511 = vmatpush1.msra.mxu0 0.0
        %2512 = vmatprep.subr.mxu0 0.0
        %2513 = vmatpush1.msra.mxu0 0.0
        %2514 = vmatprep.subr.mxu0 0.0
        %2515 = vmatpush1.msra.mxu0 0.0
        %2516 = vmatprep.subr.mxu0 0.0
        %2517 = vmatpush1.msra.mxu0 0.0
        %2518 = vmatprep.subr.mxu0 0.0
        %2519 = vmatpush1.msra.mxu0 0.0
        %2520 = vmatprep.subr.mxu0 0.0
        %2521 = vmatpush1.msra.mxu0 0.0
        %2522 = vmatprep.subr.mxu0 0.0
        %2523 = vmatpush1.msra.mxu0 0.0
        %2524 = vmatprep.subr.mxu0 0.0
        %2525 = vmatpush1.msra.mxu0 0.0
        %2526 = vmatprep.subr.mxu0 0.0
        %2527 = vmatpush1.msra.mxu0 0.0
        %2528 = vmatprep.subr.mxu0 0.0
        %2529 = vmatpush1.msra.mxu0 0.0
        %2530 = vmatprep.subr.mxu0 0.0
        %2531 = vmatpush1.msra.mxu0 0.0
        %2532 = vmatprep.subr.mxu0 0.0
        %2533 = vmatpush1.msra.mxu0 0.0
        %2534 = vmatprep.subr.mxu0 0.0
        %2535 = vmatpush1.msra.mxu0 0.0
        %2536 = vmatprep.subr.mxu0 0.0
        %2537 = vmatpush1.msra.mxu0 0.0
        %2538 = vmatprep.subr.mxu0 0.0
        %2539 = vmatpush1.msra.mxu0 0.0
        %2540 = vmatprep.mubr.f32.mxu0 0.0
        %2541 = vmatmul.mubr.f32.gmra.mrb[0].mxu0 %v2474
        %v2542 = vpop.f32.mrb[0].mxu0
        %v2543 = vadd.f32 0.0, %v2542
        %v2544 = vpop.f32.mrb[0].mxu0
        %v2545 = vadd.f32 0.0, %v2544
        %2546 = vdwg.mxu0
        %2547 = vmatprep.subr.mxu0 %v2468
        %2548 = vmatpush1.msra.mxu0 %v2467
        %2549 = vmatprep.subr.mxu0 0.0
        %2550 = vmatpush1.msra.mxu0 0.0
        %2551 = vmatprep.subr.mxu0 0.0
        %2552 = vmatpush1.msra.mxu0 0.0
        %2553 = vmatprep.subr.mxu0 0.0
        %2554 = vmatpush1.msra.mxu0 0.0
        %2555 = vmatprep.subr.mxu0 0.0
        %2556 = vmatpush1.msra.mxu0 0.0
        %2557 = vmatprep.subr.mxu0 0.0
        %2558 = vmatpush1.msra.mxu0 0.0
        %2559 = vmatprep.subr.mxu0 0.0
        %2560 = vmatpush1.msra.mxu0 0.0
        %2561 = vmatprep.subr.mxu0 0.0
        %2562 = vmatpush1.msra.mxu0 0.0
        %2563 = vmatprep.subr.mxu0 0.0
        %2564 = vmatpush1.msra.mxu0 0.0
        %2565 = vmatprep.subr.mxu0 0.0
        %2566 = vmatpush1.msra.mxu0 0.0
        %2567 = vmatprep.subr.mxu0 0.0
        %2568 = vmatpush1.msra.mxu0 0.0
        %2569 = vmatprep.subr.mxu0 0.0
        %2570 = vmatpush1.msra.mxu0 0.0
        %2571 = vmatprep.subr.mxu0 0.0
        %2572 = vmatpush1.msra.mxu0 0.0
        %2573 = vmatprep.subr.mxu0 0.0
        %2574 = vmatpush1.msra.mxu0 0.0
        %2575 = vmatprep.subr.mxu0 0.0
        %2576 = vmatpush1.msra.mxu0 0.0
        %2577 = vmatprep.subr.mxu0 0.0
        %2578 = vmatpush1.msra.mxu0 0.0
        %2579 = vmatprep.subr.mxu0 0.0
        %2580 = vmatpush1.msra.mxu0 0.0
        %2581 = vmatprep.subr.mxu0 0.0
        %2582 = vmatpush1.msra.mxu0 0.0
        %2583 = vmatprep.subr.mxu0 0.0
        %2584 = vmatpush1.msra.mxu0 0.0
        %2585 = vmatprep.subr.mxu0 0.0
        %2586 = vmatpush1.msra.mxu0 0.0
        %2587 = vmatprep.subr.mxu0 0.0
        %2588 = vmatpush1.msra.mxu0 0.0
        %2589 = vmatprep.subr.mxu0 0.0
        %2590 = vmatpush1.msra.mxu0 0.0
        %2591 = vmatprep.subr.mxu0 0.0
        %2592 = vmatpush1.msra.mxu0 0.0
        %2593 = vmatprep.subr.mxu0 0.0
        %2594 = vmatpush1.msra.mxu0 0.0
        %2595 = vmatprep.subr.mxu0 0.0
        %2596 = vmatpush1.msra.mxu0 0.0
        %2597 = vmatprep.subr.mxu0 0.0
        %2598 = vmatpush1.msra.mxu0 0.0
        %2599 = vmatprep.subr.mxu0 0.0
        %2600 = vmatpush1.msra.mxu0 0.0
        %2601 = vmatprep.subr.mxu0 0.0
        %2602 = vmatpush1.msra.mxu0 0.0
        %2603 = vmatprep.subr.mxu0 0.0
        %2604 = vmatpush1.msra.mxu0 0.0
        %2605 = vmatprep.subr.mxu0 0.0
        %2606 = vmatpush1.msra.mxu0 0.0
        %2607 = vmatprep.subr.mxu0 0.0
        %2608 = vmatpush1.msra.mxu0 0.0
        %2609 = vmatprep.subr.mxu0 0.0
        %2610 = vmatpush1.msra.mxu0 0.0
        %2611 = vmatprep.mubr.f32.mxu0 0.0
        %2612 = vmatmul.mubr.f32.gmra.mrb[0].mxu0 %v2474
        %v2613 = vpop.f32.mrb[0].mxu0
        %v2614 = vadd.f32 0.0, %v2613
        %v2615 = vpop.f32.mrb[0].mxu0
        %v2616 = vadd.f32 0.0, %v2615
        %2617 = vdwg.mxu0
        %v2618 = vadd.f32 %v2403, %v2543
        %v2619 = vadd.f32 %v2404, %v2545
        %v2620 = vadd.f32 %v2405, %v2614
        %v2621 = vadd.f32 %v2406, %v2616
        %s2622 = scalar_lea.vmem %s2, 35
        %v2623 = vld [vmem:[%s2622] ss:$8 sm:$0xf]
        %v2625 = vlaneseq
        %v2626 = vshrl.u32 %v2625, 7
        %v2627 = vsub.s32 0, %v2626
        %v2628 = vrot.slane %v2623, %v2627
        %v2629 = vlaneseq
        %v2630 = vshrl.u32 %v2629, 7
        %v2631 = vsub.s32 1, %v2630
        %v2632 = vrot.slane %v2623, %v2631
        %v2633 = vlaneseq
        %v2634 = vshrl.u32 %v2633, 7
        %v2635 = vsub.s32 2, %v2634
        %v2636 = vrot.slane %v2623, %v2635
        %v2637 = vlaneseq
        %v2638 = vshrl.u32 %v2637, 7
        %v2639 = vsub.s32 3, %v2638
        %v2640 = vrot.slane %v2623, %v2639
        %2641 = vrot.lane.b32.xlu0 %v2628, 121
        %v2642 = vpop.permute.xlu0 %2641
        %2643 = vrot.lane.b32.xlu0 %v2632, 121
        %v2644 = vpop.permute.xlu0 %2643
        %2645 = vrot.lane.b32.xlu0 %v2636, 121
        %v2646 = vpop.permute.xlu0 %2645
        %2647 = vrot.lane.b32.xlu0 %v2640, 121
        %v2648 = vpop.permute.xlu0 %2647
        %vm2649 = vcmask 990208
        %v2650 = vsel %vm2649, %v2642, %v2644
        %v2651 = vsel %vm2649, %v2644, %v2646
        %v2652 = vsel %vm2649, %v2646, %v2648
        %v2658 = vmul.f32 %v260, %v2642
        %v2659 = vmul.f32 %v261, %v2650
        %v2660 = vmul.f32 %v262, %v2651
        %v2661 = vmul.f32 %v263, %v2652
        %v2662 = vmul.f32 %v264, %v2648
        %s2663 = scalar_lea.vmem %s1, 88
        %v2664 = vld [vmem:[%s2663] sm:$0xff]
        %2670 = vrot.lane.b32.xlu0 %v2658, 7
        %v2671 = vpop.permute.xlu0 %2670
        %2672 = vrot.lane.b32.xlu0 %v2659, 7
        %v2673 = vpop.permute.xlu0 %2672
        %2674 = vrot.lane.b32.xlu0 %v2660, 7
        %v2675 = vpop.permute.xlu0 %2674
        %2676 = vrot.lane.b32.xlu0 %v2661, 7
        %v2677 = vpop.permute.xlu0 %2676
        %2678 = vrot.lane.b32.xlu0 %v2662, 7
        %v2679 = vpop.permute.xlu0 %2678
        %vm2680 = vcmask 56320
        %v2681 = vsel %vm2680, %v2671, %v2673
        %v2682 = vsel %vm2680, %v2673, %v2675
        %v2683 = vsel %vm2680, %v2675, %v2677
        %v2684 = vsel %vm2680, %v2677, %v2679
        %v2690 = vsel %vm373, %v2664, 0
        %2692 = vmatprep.subr.mxu0 %v2682
        %2693 = vmatpush1.msra.mxu0 %v2681
        %2694 = vmatprep.subr.mxu0 0.0
        %2695 = vmatpush1.msra.mxu0 0.0
        %2696 = vmatprep.subr.mxu0 0.0
        %2697 = vmatpush1.msra.mxu0 0.0
        %2698 = vmatprep.subr.mxu0 0.0
        %2699 = vmatpush1.msra.mxu0 0.0
        %2700 = vmatprep.subr.mxu0 0.0
        %2701 = vmatpush1.msra.mxu0 0.0
        %2702 = vmatprep.subr.mxu0 0.0
        %2703 = vmatpush1.msra.mxu0 0.0
        %2704 = vmatprep.subr.mxu0 0.0
        %2705 = vmatpush1.msra.mxu0 0.0
        %2706 = vmatprep.subr.mxu0 0.0
        %2707 = vmatpush1.msra.mxu0 0.0
        %2708 = vmatprep.subr.mxu0 0.0
        %2709 = vmatpush1.msra.mxu0 0.0
        %2710 = vmatprep.subr.mxu0 0.0
        %2711 = vmatpush1.msra.mxu0 0.0
        %2712 = vmatprep.subr.mxu0 0.0
        %2713 = vmatpush1.msra.mxu0 0.0
        %2714 = vmatprep.subr.mxu0 0.0
        %2715 = vmatpush1.msra.mxu0 0.0
        %2716 = vmatprep.subr.mxu0 0.0
        %2717 = vmatpush1.msra.mxu0 0.0
        %2718 = vmatprep.subr.mxu0 0.0
        %2719 = vmatpush1.msra.mxu0 0.0
        %2720 = vmatprep.subr.mxu0 0.0
        %2721 = vmatpush1.msra.mxu0 0.0
        %2722 = vmatprep.subr.mxu0 0.0
        %2723 = vmatpush1.msra.mxu0 0.0
        %2724 = vmatprep.subr.mxu0 0.0
        %2725 = vmatpush1.msra.mxu0 0.0
        %2726 = vmatprep.subr.mxu0 0.0
        %2727 = vmatpush1.msra.mxu0 0.0
        %2728 = vmatprep.subr.mxu0 0.0
        %2729 = vmatpush1.msra.mxu0 0.0
        %2730 = vmatprep.subr.mxu0 0.0
        %2731 = vmatpush1.msra.mxu0 0.0
        %2732 = vmatprep.subr.mxu0 0.0
        %2733 = vmatpush1.msra.mxu0 0.0
        %2734 = vmatprep.subr.mxu0 0.0
        %2735 = vmatpush1.msra.mxu0 0.0
        %2736 = vmatprep.subr.mxu0 0.0
        %2737 = vmatpush1.msra.mxu0 0.0
        %2738 = vmatprep.subr.mxu0 0.0
        %2739 = vmatpush1.msra.mxu0 0.0
        %2740 = vmatprep.subr.mxu0 0.0
        %2741 = vmatpush1.msra.mxu0 0.0
        %2742 = vmatprep.subr.mxu0 0.0
        %2743 = vmatpush1.msra.mxu0 0.0
        %2744 = vmatprep.subr.mxu0 0.0
        %2745 = vmatpush1.msra.mxu0 0.0
        %2746 = vmatprep.subr.mxu0 0.0
        %2747 = vmatpush1.msra.mxu0 0.0
        %2748 = vmatprep.subr.mxu0 0.0
        %2749 = vmatpush1.msra.mxu0 0.0
        %2750 = vmatprep.subr.mxu0 0.0
        %2751 = vmatpush1.msra.mxu0 0.0
        %2752 = vmatprep.subr.mxu0 0.0
        %2753 = vmatpush1.msra.mxu0 0.0
        %2754 = vmatprep.subr.mxu0 0.0
        %2755 = vmatpush1.msra.mxu0 0.0
        %2756 = vmatprep.mubr.f32.mxu0 0.0
        %2757 = vmatmul.mubr.f32.gmra.mrb[0].mxu0 %v2690
        %v2758 = vpop.f32.mrb[0].mxu0
        %v2759 = vadd.f32 0.0, %v2758
        %v2760 = vpop.f32.mrb[0].mxu0
        %v2761 = vadd.f32 0.0, %v2760
        %2762 = vdwg.mxu0
        %2763 = vmatprep.subr.mxu0 %v2684
        %2764 = vmatpush1.msra.mxu0 %v2683
        %2765 = vmatprep.subr.mxu0 0.0
        %2766 = vmatpush1.msra.mxu0 0.0
        %2767 = vmatprep.subr.mxu0 0.0
        %2768 = vmatpush1.msra.mxu0 0.0
        %2769 = vmatprep.subr.mxu0 0.0
        %2770 = vmatpush1.msra.mxu0 0.0
        %2771 = vmatprep.subr.mxu0 0.0
        %2772 = vmatpush1.msra.mxu0 0.0
        %2773 = vmatprep.subr.mxu0 0.0
        %2774 = vmatpush1.msra.mxu0 0.0
        %2775 = vmatprep.subr.mxu0 0.0
        %2776 = vmatpush1.msra.mxu0 0.0
        %2777 = vmatprep.subr.mxu0 0.0
        %2778 = vmatpush1.msra.mxu0 0.0
        %2779 = vmatprep.subr.mxu0 0.0
        %2780 = vmatpush1.msra.mxu0 0.0
        %2781 = vmatprep.subr.mxu0 0.0
        %2782 = vmatpush1.msra.mxu0 0.0
        %2783 = vmatprep.subr.mxu0 0.0
        %2784 = vmatpush1.msra.mxu0 0.0
        %2785 = vmatprep.subr.mxu0 0.0
        %2786 = vmatpush1.msra.mxu0 0.0
        %2787 = vmatprep.subr.mxu0 0.0
        %2788 = vmatpush1.msra.mxu0 0.0
        %2789 = vmatprep.subr.mxu0 0.0
        %2790 = vmatpush1.msra.mxu0 0.0
        %2791 = vmatprep.subr.mxu0 0.0
        %2792 = vmatpush1.msra.mxu0 0.0
        %2793 = vmatprep.subr.mxu0 0.0
        %2794 = vmatpush1.msra.mxu0 0.0
        %2795 = vmatprep.subr.mxu0 0.0
        %2796 = vmatpush1.msra.mxu0 0.0
        %2797 = vmatprep.subr.mxu0 0.0
        %2798 = vmatpush1.msra.mxu0 0.0
        %2799 = vmatprep.subr.mxu0 0.0
        %2800 = vmatpush1.msra.mxu0 0.0
        %2801 = vmatprep.subr.mxu0 0.0
        %2802 = vmatpush1.msra.mxu0 0.0
        %2803 = vmatprep.subr.mxu0 0.0
        %2804 = vmatpush1.msra.mxu0 0.0
        %2805 = vmatprep.subr.mxu0 0.0
        %2806 = vmatpush1.msra.mxu0 0.0
        %2807 = vmatprep.subr.mxu0 0.0
        %2808 = vmatpush1.msra.mxu0 0.0
        %2809 = vmatprep.subr.mxu0 0.0
        %2810 = vmatpush1.msra.mxu0 0.0
        %2811 = vmatprep.subr.mxu0 0.0
        %2812 = vmatpush1.msra.mxu0 0.0
        %2813 = vmatprep.subr.mxu0 0.0
        %2814 = vmatpush1.msra.mxu0 0.0
        %2815 = vmatprep.subr.mxu0 0.0
        %2816 = vmatpush1.msra.mxu0 0.0
        %2817 = vmatprep.subr.mxu0 0.0
        %2818 = vmatpush1.msra.mxu0 0.0
        %2819 = vmatprep.subr.mxu0 0.0
        %2820 = vmatpush1.msra.mxu0 0.0
        %2821 = vmatprep.subr.mxu0 0.0
        %2822 = vmatpush1.msra.mxu0 0.0
        %2823 = vmatprep.subr.mxu0 0.0
        %2824 = vmatpush1.msra.mxu0 0.0
        %2825 = vmatprep.subr.mxu0 0.0
        %2826 = vmatpush1.msra.mxu0 0.0
        %2827 = vmatprep.mubr.f32.mxu0 0.0
        %2828 = vmatmul.mubr.f32.gmra.mrb[0].mxu0 %v2690
        %v2829 = vpop.f32.mrb[0].mxu0
        %v2830 = vadd.f32 0.0, %v2829
        %v2831 = vpop.f32.mrb[0].mxu0
        %v2832 = vadd.f32 0.0, %v2831
        %2833 = vdwg.mxu0
        %v2834 = vadd.f32 %v2618, %v2759
        %v2835 = vadd.f32 %v2619, %v2761
        %v2836 = vadd.f32 %v2620, %v2830
        %v2837 = vadd.f32 %v2621, %v2832
        %s2838 = scalar_lea.vmem %s2, 36
        %v2839 = vld [vmem:[%s2838] ss:$8 sm:$0xf]
        %v2841 = vlaneseq
        %v2842 = vshrl.u32 %v2841, 7
        %v2843 = vsub.s32 0, %v2842
        %v2844 = vrot.slane %v2839, %v2843
        %v2845 = vlaneseq
        %v2846 = vshrl.u32 %v2845, 7
        %v2847 = vsub.s32 1, %v2846
        %v2848 = vrot.slane %v2839, %v2847
        %v2849 = vlaneseq
        %v2850 = vshrl.u32 %v2849, 7
        %v2851 = vsub.s32 2, %v2850
        %v2852 = vrot.slane %v2839, %v2851
        %v2853 = vlaneseq
        %v2854 = vshrl.u32 %v2853, 7
        %v2855 = vsub.s32 3, %v2854
        %v2856 = vrot.slane %v2839, %v2855
        %2857 = vrot.lane.b32.xlu0 %v2844, 127
        %v2858 = vpop.permute.xlu0 %2857
        %2859 = vrot.lane.b32.xlu0 %v2848, 127
        %v2860 = vpop.permute.xlu0 %2859
        %2861 = vrot.lane.b32.xlu0 %v2852, 127
        %v2862 = vpop.permute.xlu0 %2861
        %2863 = vrot.lane.b32.xlu0 %v2856, 127
        %v2864 = vpop.permute.xlu0 %2863
        %vm2865 = vcmask 1039360
        %v2866 = vsel %vm2865, %v2858, %v2860
        %v2867 = vsel %vm2865, %v2860, %v2862
        %v2868 = vsel %vm2865, %v2862, %v2864
        %v2874 = vmul.f32 %v260, %v2858
        %v2875 = vmul.f32 %v261, %v2866
        %v2876 = vmul.f32 %v262, %v2867
        %v2877 = vmul.f32 %v263, %v2868
        %v2878 = vmul.f32 %v264, %v2864
        %s2879 = scalar_lea.vmem %s1, 96
        %v2880 = vld [vmem:[%s2879] sm:$0xff]
        %2886 = vrot.lane.b32.xlu0 %v2874, 1
        %v2887 = vpop.permute.xlu0 %2886
        %2888 = vrot.lane.b32.xlu0 %v2875, 1
        %v2889 = vpop.permute.xlu0 %2888
        %2890 = vrot.lane.b32.xlu0 %v2876, 1
        %v2891 = vpop.permute.xlu0 %2890
        %2892 = vrot.lane.b32.xlu0 %v2877, 1
        %v2893 = vpop.permute.xlu0 %2892
        %2894 = vrot.lane.b32.xlu0 %v2878, 1
        %v2895 = vpop.permute.xlu0 %2894
        %vm2896 = vcmask 7168
        %v2897 = vsel %vm2896, %v2887, %v2889
        %v2898 = vsel %vm2896, %v2889, %v2891
        %v2899 = vsel %vm2896, %v2891, %v2893
        %v2900 = vsel %vm2896, %v2893, %v2895
        %v2906 = vsel %vm373, %v2880, 0
        %2908 = vmatprep.subr.mxu0 %v2898
        %2909 = vmatpush1.msra.mxu0 %v2897
        %2910 = vmatprep.subr.mxu0 0.0
        %2911 = vmatpush1.msra.mxu0 0.0
        %2912 = vmatprep.subr.mxu0 0.0
        %2913 = vmatpush1.msra.mxu0 0.0
        %2914 = vmatprep.subr.mxu0 0.0
        %2915 = vmatpush1.msra.mxu0 0.0
        %2916 = vmatprep.subr.mxu0 0.0
        %2917 = vmatpush1.msra.mxu0 0.0
        %2918 = vmatprep.subr.mxu0 0.0
        %2919 = vmatpush1.msra.mxu0 0.0
        %2920 = vmatprep.subr.mxu0 0.0
        %2921 = vmatpush1.msra.mxu0 0.0
        %2922 = vmatprep.subr.mxu0 0.0
        %2923 = vmatpush1.msra.mxu0 0.0
        %2924 = vmatprep.subr.mxu0 0.0
        %2925 = vmatpush1.msra.mxu0 0.0
        %2926 = vmatprep.subr.mxu0 0.0
        %2927 = vmatpush1.msra.mxu0 0.0
        %2928 = vmatprep.subr.mxu0 0.0
        %2929 = vmatpush1.msra.mxu0 0.0
        %2930 = vmatprep.subr.mxu0 0.0
        %2931 = vmatpush1.msra.mxu0 0.0
        %2932 = vmatprep.subr.mxu0 0.0
        %2933 = vmatpush1.msra.mxu0 0.0
        %2934 = vmatprep.subr.mxu0 0.0
        %2935 = vmatpush1.msra.mxu0 0.0
        %2936 = vmatprep.subr.mxu0 0.0
        %2937 = vmatpush1.msra.mxu0 0.0
        %2938 = vmatprep.subr.mxu0 0.0
        %2939 = vmatpush1.msra.mxu0 0.0
        %2940 = vmatprep.subr.mxu0 0.0
        %2941 = vmatpush1.msra.mxu0 0.0
        %2942 = vmatprep.subr.mxu0 0.0
        %2943 = vmatpush1.msra.mxu0 0.0
        %2944 = vmatprep.subr.mxu0 0.0
        %2945 = vmatpush1.msra.mxu0 0.0
        %2946 = vmatprep.subr.mxu0 0.0
        %2947 = vmatpush1.msra.mxu0 0.0
        %2948 = vmatprep.subr.mxu0 0.0
        %2949 = vmatpush1.msra.mxu0 0.0
        %2950 = vmatprep.subr.mxu0 0.0
        %2951 = vmatpush1.msra.mxu0 0.0
        %2952 = vmatprep.subr.mxu0 0.0
        %2953 = vmatpush1.msra.mxu0 0.0
        %2954 = vmatprep.subr.mxu0 0.0
        %2955 = vmatpush1.msra.mxu0 0.0
        %2956 = vmatprep.subr.mxu0 0.0
        %2957 = vmatpush1.msra.mxu0 0.0
        %2958 = vmatprep.subr.mxu0 0.0
        %2959 = vmatpush1.msra.mxu0 0.0
        %2960 = vmatprep.subr.mxu0 0.0
        %2961 = vmatpush1.msra.mxu0 0.0
        %2962 = vmatprep.subr.mxu0 0.0
        %2963 = vmatpush1.msra.mxu0 0.0
        %2964 = vmatprep.subr.mxu0 0.0
        %2965 = vmatpush1.msra.mxu0 0.0
        %2966 = vmatprep.subr.mxu0 0.0
        %2967 = vmatpush1.msra.mxu0 0.0
        %2968 = vmatprep.subr.mxu0 0.0
        %2969 = vmatpush1.msra.mxu0 0.0
        %2970 = vmatprep.subr.mxu0 0.0
        %2971 = vmatpush1.msra.mxu0 0.0
        %2972 = vmatprep.mubr.f32.mxu0 0.0
        %2973 = vmatmul.mubr.f32.gmra.mrb[0].mxu0 %v2906
        %v2974 = vpop.f32.mrb[0].mxu0
        %v2975 = vadd.f32 0.0, %v2974
        %v2976 = vpop.f32.mrb[0].mxu0
        %v2977 = vadd.f32 0.0, %v2976
        %2978 = vdwg.mxu0
        %2979 = vmatprep.subr.mxu0 %v2900
        %2980 = vmatpush1.msra.mxu0 %v2899
        %2981 = vmatprep.subr.mxu0 0.0
        %2982 = vmatpush1.msra.mxu0 0.0
        %2983 = vmatprep.subr.mxu0 0.0
        %2984 = vmatpush1.msra.mxu0 0.0
        %2985 = vmatprep.subr.mxu0 0.0
        %2986 = vmatpush1.msra.mxu0 0.0
        %2987 = vmatprep.subr.mxu0 0.0
        %2988 = vmatpush1.msra.mxu0 0.0
        %2989 = vmatprep.subr.mxu0 0.0
        %2990 = vmatpush1.msra.mxu0 0.0
        %2991 = vmatprep.subr.mxu0 0.0
        %2992 = vmatpush1.msra.mxu0 0.0
        %2993 = vmatprep.subr.mxu0 0.0
        %2994 = vmatpush1.msra.mxu0 0.0
        %2995 = vmatprep.subr.mxu0 0.0
        %2996 = vmatpush1.msra.mxu0 0.0
        %2997 = vmatprep.subr.mxu0 0.0
        %2998 = vmatpush1.msra.mxu0 0.0
        %2999 = vmatprep.subr.mxu0 0.0
        %3000 = vmatpush1.msra.mxu0 0.0
        %3001 = vmatprep.subr.mxu0 0.0
        %3002 = vmatpush1.msra.mxu0 0.0
        %3003 = vmatprep.subr.mxu0 0.0
        %3004 = vmatpush1.msra.mxu0 0.0
        %3005 = vmatprep.subr.mxu0 0.0
        %3006 = vmatpush1.msra.mxu0 0.0
        %3007 = vmatprep.subr.mxu0 0.0
        %3008 = vmatpush1.msra.mxu0 0.0
        %3009 = vmatprep.subr.mxu0 0.0
        %3010 = vmatpush1.msra.mxu0 0.0
        %3011 = vmatprep.subr.mxu0 0.0
        %3012 = vmatpush1.msra.mxu0 0.0
        %3013 = vmatprep.subr.mxu0 0.0
        %3014 = vmatpush1.msra.mxu0 0.0
        %3015 = vmatprep.subr.mxu0 0.0
        %3016 = vmatpush1.msra.mxu0 0.0
        %3017 = vmatprep.subr.mxu0 0.0
        %3018 = vmatpush1.msra.mxu0 0.0
        %3019 = vmatprep.subr.mxu0 0.0
        %3020 = vmatpush1.msra.mxu0 0.0
        %3021 = vmatprep.subr.mxu0 0.0
        %3022 = vmatpush1.msra.mxu0 0.0
        %3023 = vmatprep.subr.mxu0 0.0
        %3024 = vmatpush1.msra.mxu0 0.0
        %3025 = vmatprep.subr.mxu0 0.0
        %3026 = vmatpush1.msra.mxu0 0.0
        %3027 = vmatprep.subr.mxu0 0.0
        %3028 = vmatpush1.msra.mxu0 0.0
        %3029 = vmatprep.subr.mxu0 0.0
        %3030 = vmatpush1.msra.mxu0 0.0
        %3031 = vmatprep.subr.mxu0 0.0
        %3032 = vmatpush1.msra.mxu0 0.0
        %3033 = vmatprep.subr.mxu0 0.0
        %3034 = vmatpush1.msra.mxu0 0.0
        %3035 = vmatprep.subr.mxu0 0.0
        %3036 = vmatpush1.msra.mxu0 0.0
        %3037 = vmatprep.subr.mxu0 0.0
        %3038 = vmatpush1.msra.mxu0 0.0
        %3039 = vmatprep.subr.mxu0 0.0
        %3040 = vmatpush1.msra.mxu0 0.0
        %3041 = vmatprep.subr.mxu0 0.0
        %3042 = vmatpush1.msra.mxu0 0.0
        %3043 = vmatprep.mubr.f32.mxu0 0.0
        %3044 = vmatmul.mubr.f32.gmra.mrb[0].mxu0 %v2906
        %v3045 = vpop.f32.mrb[0].mxu0
        %v3046 = vadd.f32 0.0, %v3045
        %v3047 = vpop.f32.mrb[0].mxu0
        %v3048 = vadd.f32 0.0, %v3047
        %3049 = vdwg.mxu0
        %v3050 = vadd.f32 %v2834, %v2975
        %v3051 = vadd.f32 %v2835, %v2977
        %v3052 = vadd.f32 %v2836, %v3046
        %v3053 = vadd.f32 %v2837, %v3048
        %s3054 = scalar_lea.vmem %s1, 104
        %v3055 = vld [vmem:[%s3054] sm:$0xff]
        %v3057 = vsel %vm373, %v3055, 0
        %3059 = vmatprep.subr.mxu0 %v262
        %3060 = vmatpush1.msra.mxu0 %v261
        %3061 = vmatprep.subr.mxu0 0.0
        %3062 = vmatpush1.msra.mxu0 0.0
        %3063 = vmatprep.subr.mxu0 0.0
        %3064 = vmatpush1.msra.mxu0 0.0
        %3065 = vmatprep.subr.mxu0 0.0
        %3066 = vmatpush1.msra.mxu0 0.0
        %3067 = vmatprep.subr.mxu0 0.0
        %3068 = vmatpush1.msra.mxu0 0.0
        %3069 = vmatprep.subr.mxu0 0.0
        %3070 = vmatpush1.msra.mxu0 0.0
        %3071 = vmatprep.subr.mxu0 0.0
        %3072 = vmatpush1.msra.mxu0 0.0
        %3073 = vmatprep.subr.mxu0 0.0
        %3074 = vmatpush1.msra.mxu0 0.0
        %3075 = vmatprep.subr.mxu0 0.0
        %3076 = vmatpush1.msra.mxu0 0.0
        %3077 = vmatprep.subr.mxu0 0.0
        %3078 = vmatpush1.msra.mxu0 0.0
        %3079 = vmatprep.subr.mxu0 0.0
        %3080 = vmatpush1.msra.mxu0 0.0
        %3081 = vmatprep.subr.mxu0 0.0
        %3082 = vmatpush1.msra.mxu0 0.0
        %3083 = vmatprep.subr.mxu0 0.0
        %3084 = vmatpush1.msra.mxu0 0.0
        %3085 = vmatprep.subr.mxu0 0.0
        %3086 = vmatpush1.msra.mxu0 0.0
        %3087 = vmatprep.subr.mxu0 0.0
        %3088 = vmatpush1.msra.mxu0 0.0
        %3089 = vmatprep.subr.mxu0 0.0
        %3090 = vmatpush1.msra.mxu0 0.0
        %3091 = vmatprep.subr.mxu0 0.0
        %3092 = vmatpush1.msra.mxu0 0.0
        %3093 = vmatprep.subr.mxu0 0.0
        %3094 = vmatpush1.msra.mxu0 0.0
        %3095 = vmatprep.subr.mxu0 0.0
        %3096 = vmatpush1.msra.mxu0 0.0
        %3097 = vmatprep.subr.mxu0 0.0
        %3098 = vmatpush1.msra.mxu0 0.0
        %3099 = vmatprep.subr.mxu0 0.0
        %3100 = vmatpush1.msra.mxu0 0.0
        %3101 = vmatprep.subr.mxu0 0.0
        %3102 = vmatpush1.msra.mxu0 0.0
        %3103 = vmatprep.subr.mxu0 0.0
        %3104 = vmatpush1.msra.mxu0 0.0
        %3105 = vmatprep.subr.mxu0 0.0
        %3106 = vmatpush1.msra.mxu0 0.0
        %3107 = vmatprep.subr.mxu0 0.0
        %3108 = vmatpush1.msra.mxu0 0.0
        %3109 = vmatprep.subr.mxu0 0.0
        %3110 = vmatpush1.msra.mxu0 0.0
        %3111 = vmatprep.subr.mxu0 0.0
        %3112 = vmatpush1.msra.mxu0 0.0
        %3113 = vmatprep.subr.mxu0 0.0
        %3114 = vmatpush1.msra.mxu0 0.0
        %3115 = vmatprep.subr.mxu0 0.0
        %3116 = vmatpush1.msra.mxu0 0.0
        %3117 = vmatprep.subr.mxu0 0.0
        %3118 = vmatpush1.msra.mxu0 0.0
        %3119 = vmatprep.subr.mxu0 0.0
        %3120 = vmatpush1.msra.mxu0 0.0
        %3121 = vmatprep.subr.mxu0 0.0
        %3122 = vmatpush1.msra.mxu0 0.0
        %3123 = vmatprep.mubr.f32.mxu0 0.0
        %3124 = vmatmul.mubr.f32.gmra.mrb[0].mxu0 %v3057
        %v3125 = vpop.f32.mrb[0].mxu0
        %v3126 = vadd.f32 0.0, %v3125
        %v3127 = vpop.f32.mrb[0].mxu0
        %v3128 = vadd.f32 0.0, %v3127
        %3129 = vdwg.mxu0
        %3130 = vmatprep.subr.mxu0 %v264
        %3131 = vmatpush1.msra.mxu0 %v263
        %3132 = vmatprep.subr.mxu0 0.0
        %3133 = vmatpush1.msra.mxu0 0.0
        %3134 = vmatprep.subr.mxu0 0.0
        %3135 = vmatpush1.msra.mxu0 0.0
        %3136 = vmatprep.subr.mxu0 0.0
        %3137 = vmatpush1.msra.mxu0 0.0
        %3138 = vmatprep.subr.mxu0 0.0
        %3139 = vmatpush1.msra.mxu0 0.0
        %3140 = vmatprep.subr.mxu0 0.0
        %3141 = vmatpush1.msra.mxu0 0.0
        %3142 = vmatprep.subr.mxu0 0.0
        %3143 = vmatpush1.msra.mxu0 0.0
        %3144 = vmatprep.subr.mxu0 0.0
        %3145 = vmatpush1.msra.mxu0 0.0
        %3146 = vmatprep.subr.mxu0 0.0
        %3147 = vmatpush1.msra.mxu0 0.0
        %3148 = vmatprep.subr.mxu0 0.0
        %3149 = vmatpush1.msra.mxu0 0.0
        %3150 = vmatprep.subr.mxu0 0.0
        %3151 = vmatpush1.msra.mxu0 0.0
        %3152 = vmatprep.subr.mxu0 0.0
        %3153 = vmatpush1.msra.mxu0 0.0
        %3154 = vmatprep.subr.mxu0 0.0
        %3155 = vmatpush1.msra.mxu0 0.0
        %3156 = vmatprep.subr.mxu0 0.0
        %3157 = vmatpush1.msra.mxu0 0.0
        %3158 = vmatprep.subr.mxu0 0.0
        %3159 = vmatpush1.msra.mxu0 0.0
        %3160 = vmatprep.subr.mxu0 0.0
        %3161 = vmatpush1.msra.mxu0 0.0
        %3162 = vmatprep.subr.mxu0 0.0
        %3163 = vmatpush1.msra.mxu0 0.0
        %3164 = vmatprep.subr.mxu0 0.0
        %3165 = vmatpush1.msra.mxu0 0.0
        %3166 = vmatprep.subr.mxu0 0.0
        %3167 = vmatpush1.msra.mxu0 0.0
        %3168 = vmatprep.subr.mxu0 0.0
        %3169 = vmatpush1.msra.mxu0 0.0
        %3170 = vmatprep.subr.mxu0 0.0
        %3171 = vmatpush1.msra.mxu0 0.0
        %3172 = vmatprep.subr.mxu0 0.0
        %3173 = vmatpush1.msra.mxu0 0.0
        %3174 = vmatprep.subr.mxu0 0.0
        %3175 = vmatpush1.msra.mxu0 0.0
        %3176 = vmatprep.subr.mxu0 0.0
        %3177 = vmatpush1.msra.mxu0 0.0
        %3178 = vmatprep.subr.mxu0 0.0
        %3179 = vmatpush1.msra.mxu0 0.0
        %3180 = vmatprep.subr.mxu0 0.0
        %3181 = vmatpush1.msra.mxu0 0.0
        %3182 = vmatprep.subr.mxu0 0.0
        %3183 = vmatpush1.msra.mxu0 0.0
        %3184 = vmatprep.subr.mxu0 0.0
        %3185 = vmatpush1.msra.mxu0 0.0
        %3186 = vmatprep.subr.mxu0 0.0
        %3187 = vmatpush1.msra.mxu0 0.0
        %3188 = vmatprep.subr.mxu0 0.0
        %3189 = vmatpush1.msra.mxu0 0.0
        %3190 = vmatprep.subr.mxu0 0.0
        %3191 = vmatpush1.msra.mxu0 0.0
        %3192 = vmatprep.subr.mxu0 0.0
        %3193 = vmatpush1.msra.mxu0 0.0
        %3194 = vmatprep.mubr.f32.mxu0 0.0
        %3195 = vmatmul.mubr.f32.gmra.mrb[0].mxu0 %v3057
        %v3196 = vpop.f32.mrb[0].mxu0
        %v3197 = vadd.f32 0.0, %v3196
        %v3198 = vpop.f32.mrb[0].mxu0
        %v3199 = vadd.f32 0.0, %v3198
        %3200 = vdwg.mxu0
        %v3201 = vadd.f32 %v3050, %v3126
        %v3202 = vadd.f32 %v3051, %v3128
        %v3203 = vadd.f32 %v3052, %v3197
        %v3204 = vadd.f32 %v3053, %v3199
        %v3205 = vld [vmem:[#allocation2 + $0x8] sm:$0xff]
        %v3206 = vld [vmem:[#allocation2 + $0x10] sm:$0xff]
        %v3207 = vld [vmem:[#allocation2 + $0x18] sm:$0xff]
        %v3208 = vld [vmem:[#allocation2 + $0x20] sm:$0xff]
        %v3209 = vld [vmem:[#allocation2 + $0x28] sm:$0xff]
        %s3210 = scalar_lea.vmem %s2, 38
        %v3211 = vld [vmem:[%s3210] ss:$8 sm:$0xf]
        %v3213 = vlaneseq
        %v3214 = vshrl.u32 %v3213, 7
        %v3215 = vsub.s32 0, %v3214
        %v3216 = vrot.slane %v3211, %v3215
        %v3217 = vlaneseq
        %v3218 = vshrl.u32 %v3217, 7
        %v3219 = vsub.s32 1, %v3218
        %v3220 = vrot.slane %v3211, %v3219
        %v3221 = vlaneseq
        %v3222 = vshrl.u32 %v3221, 7
        %v3223 = vsub.s32 2, %v3222
        %v3224 = vrot.slane %v3211, %v3223
        %v3225 = vlaneseq
        %v3226 = vshrl.u32 %v3225, 7
        %v3227 = vsub.s32 3, %v3226
        %v3228 = vrot.slane %v3211, %v3227
        %3229 = vrot.lane.b32.xlu0 %v3216, 1
        %v3230 = vpop.permute.xlu0 %3229
        %3231 = vrot.lane.b32.xlu0 %v3220, 1
        %v3232 = vpop.permute.xlu0 %3231
        %3233 = vrot.lane.b32.xlu0 %v3224, 1
        %v3234 = vpop.permute.xlu0 %3233
        %3235 = vrot.lane.b32.xlu0 %v3228, 1
        %v3236 = vpop.permute.xlu0 %3235
        %v3237 = vsel %vm2896, %v3230, %v3232
        %v3238 = vsel %vm2896, %v3232, %v3234
        %v3239 = vsel %vm2896, %v3234, %v3236
        %v3245 = vmul.f32 %v3205, %v3230
        %v3246 = vmul.f32 %v3206, %v3237
        %v3247 = vmul.f32 %v3207, %v3238
        %v3248 = vmul.f32 %v3208, %v3239
        %v3249 = vmul.f32 %v3209, %v3236
        %s3250 = scalar_lea.vmem %s1, 112
        %v3251 = vld [vmem:[%s3250] sm:$0xff]
        %3257 = vrot.lane.b32.xlu0 %v3245, 127
        %v3258 = vpop.permute.xlu0 %3257
        %3259 = vrot.lane.b32.xlu0 %v3246, 127
        %v3260 = vpop.permute.xlu0 %3259
        %3261 = vrot.lane.b32.xlu0 %v3247, 127
        %v3262 = vpop.permute.xlu0 %3261
        %3263 = vrot.lane.b32.xlu0 %v3248, 127
        %v3264 = vpop.permute.xlu0 %3263
        %3265 = vrot.lane.b32.xlu0 %v3249, 127
        %v3266 = vpop.permute.xlu0 %3265
        %v3267 = vsel %vm2865, %v3258, %v3260
        %v3268 = vsel %vm2865, %v3260, %v3262
        %v3269 = vsel %vm2865, %v3262, %v3264
        %v3270 = vsel %vm2865, %v3264, %v3266
        %v3276 = vsel %vm373, %v3251, 0
        %3278 = vmatprep.subr.mxu0 %v3268
        %3279 = vmatpush1.msra.mxu0 %v3267
        %3280 = vmatprep.subr.mxu0 0.0
        %3281 = vmatpush1.msra.mxu0 0.0
        %3282 = vmatprep.subr.mxu0 0.0
        %3283 = vmatpush1.msra.mxu0 0.0
        %3284 = vmatprep.subr.mxu0 0.0
        %3285 = vmatpush1.msra.mxu0 0.0
        %3286 = vmatprep.subr.mxu0 0.0
        %3287 = vmatpush1.msra.mxu0 0.0
        %3288 = vmatprep.subr.mxu0 0.0
        %3289 = vmatpush1.msra.mxu0 0.0
        %3290 = vmatprep.subr.mxu0 0.0
        %3291 = vmatpush1.msra.mxu0 0.0
        %3292 = vmatprep.subr.mxu0 0.0
        %3293 = vmatpush1.msra.mxu0 0.0
        %3294 = vmatprep.subr.mxu0 0.0
        %3295 = vmatpush1.msra.mxu0 0.0
        %3296 = vmatprep.subr.mxu0 0.0
        %3297 = vmatpush1.msra.mxu0 0.0
        %3298 = vmatprep.subr.mxu0 0.0
        %3299 = vmatpush1.msra.mxu0 0.0
        %3300 = vmatprep.subr.mxu0 0.0
        %3301 = vmatpush1.msra.mxu0 0.0
        %3302 = vmatprep.subr.mxu0 0.0
        %3303 = vmatpush1.msra.mxu0 0.0
        %3304 = vmatprep.subr.mxu0 0.0
        %3305 = vmatpush1.msra.mxu0 0.0
        %3306 = vmatprep.subr.mxu0 0.0
        %3307 = vmatpush1.msra.mxu0 0.0
        %3308 = vmatprep.subr.mxu0 0.0
        %3309 = vmatpush1.msra.mxu0 0.0
        %3310 = vmatprep.subr.mxu0 0.0
        %3311 = vmatpush1.msra.mxu0 0.0
        %3312 = vmatprep.subr.mxu0 0.0
        %3313 = vmatpush1.msra.mxu0 0.0
        %3314 = vmatprep.subr.mxu0 0.0
        %3315 = vmatpush1.msra.mxu0 0.0
        %3316 = vmatprep.subr.mxu0 0.0
        %3317 = vmatpush1.msra.mxu0 0.0
        %3318 = vmatprep.subr.mxu0 0.0
        %3319 = vmatpush1.msra.mxu0 0.0
        %3320 = vmatprep.subr.mxu0 0.0
        %3321 = vmatpush1.msra.mxu0 0.0
        %3322 = vmatprep.subr.mxu0 0.0
        %3323 = vmatpush1.msra.mxu0 0.0
        %3324 = vmatprep.subr.mxu0 0.0
        %3325 = vmatpush1.msra.mxu0 0.0
        %3326 = vmatprep.subr.mxu0 0.0
        %3327 = vmatpush1.msra.mxu0 0.0
        %3328 = vmatprep.subr.mxu0 0.0
        %3329 = vmatpush1.msra.mxu0 0.0
        %3330 = vmatprep.subr.mxu0 0.0
        %3331 = vmatpush1.msra.mxu0 0.0
        %3332 = vmatprep.subr.mxu0 0.0
        %3333 = vmatpush1.msra.mxu0 0.0
        %3334 = vmatprep.subr.mxu0 0.0
        %3335 = vmatpush1.msra.mxu0 0.0
        %3336 = vmatprep.subr.mxu0 0.0
        %3337 = vmatpush1.msra.mxu0 0.0
        %3338 = vmatprep.subr.mxu0 0.0
        %3339 = vmatpush1.msra.mxu0 0.0
        %3340 = vmatprep.subr.mxu0 0.0
        %3341 = vmatpush1.msra.mxu0 0.0
        %3342 = vmatprep.mubr.f32.mxu0 0.0
        %3343 = vmatmul.mubr.f32.gmra.mrb[0].mxu0 %v3276
        %v3344 = vpop.f32.mrb[0].mxu0
        %v3345 = vadd.f32 0.0, %v3344
        %v3346 = vpop.f32.mrb[0].mxu0
        %v3347 = vadd.f32 0.0, %v3346
        %3348 = vdwg.mxu0
        %3349 = vmatprep.subr.mxu0 %v3270
        %3350 = vmatpush1.msra.mxu0 %v3269
        %3351 = vmatprep.subr.mxu0 0.0
        %3352 = vmatpush1.msra.mxu0 0.0
        %3353 = vmatprep.subr.mxu0 0.0
        %3354 = vmatpush1.msra.mxu0 0.0
        %3355 = vmatprep.subr.mxu0 0.0
        %3356 = vmatpush1.msra.mxu0 0.0
        %3357 = vmatprep.subr.mxu0 0.0
        %3358 = vmatpush1.msra.mxu0 0.0
        %3359 = vmatprep.subr.mxu0 0.0
        %3360 = vmatpush1.msra.mxu0 0.0
        %3361 = vmatprep.subr.mxu0 0.0
        %3362 = vmatpush1.msra.mxu0 0.0
        %3363 = vmatprep.subr.mxu0 0.0
        %3364 = vmatpush1.msra.mxu0 0.0
        %3365 = vmatprep.subr.mxu0 0.0
        %3366 = vmatpush1.msra.mxu0 0.0
        %3367 = vmatprep.subr.mxu0 0.0
        %3368 = vmatpush1.msra.mxu0 0.0
        %3369 = vmatprep.subr.mxu0 0.0
        %3370 = vmatpush1.msra.mxu0 0.0
        %3371 = vmatprep.subr.mxu0 0.0
        %3372 = vmatpush1.msra.mxu0 0.0
        %3373 = vmatprep.subr.mxu0 0.0
        %3374 = vmatpush1.msra.mxu0 0.0
        %3375 = vmatprep.subr.mxu0 0.0
        %3376 = vmatpush1.msra.mxu0 0.0
        %3377 = vmatprep.subr.mxu0 0.0
        %3378 = vmatpush1.msra.mxu0 0.0
        %3379 = vmatprep.subr.mxu0 0.0
        %3380 = vmatpush1.msra.mxu0 0.0
        %3381 = vmatprep.subr.mxu0 0.0
        %3382 = vmatpush1.msra.mxu0 0.0
        %3383 = vmatprep.subr.mxu0 0.0
        %3384 = vmatpush1.msra.mxu0 0.0
        %3385 = vmatprep.subr.mxu0 0.0
        %3386 = vmatpush1.msra.mxu0 0.0
        %3387 = vmatprep.subr.mxu0 0.0
        %3388 = vmatpush1.msra.mxu0 0.0
        %3389 = vmatprep.subr.mxu0 0.0
        %3390 = vmatpush1.msra.mxu0 0.0
        %3391 = vmatprep.subr.mxu0 0.0
        %3392 = vmatpush1.msra.mxu0 0.0
        %3393 = vmatprep.subr.mxu0 0.0
        %3394 = vmatpush1.msra.mxu0 0.0
        %3395 = vmatprep.subr.mxu0 0.0
        %3396 = vmatpush1.msra.mxu0 0.0
        %3397 = vmatprep.subr.mxu0 0.0
        %3398 = vmatpush1.msra.mxu0 0.0
        %3399 = vmatprep.subr.mxu0 0.0
        %3400 = vmatpush1.msra.mxu0 0.0
        %3401 = vmatprep.subr.mxu0 0.0
        %3402 = vmatpush1.msra.mxu0 0.0
        %3403 = vmatprep.subr.mxu0 0.0
        %3404 = vmatpush1.msra.mxu0 0.0
        %3405 = vmatprep.subr.mxu0 0.0
        %3406 = vmatpush1.msra.mxu0 0.0
        %3407 = vmatprep.subr.mxu0 0.0
        %3408 = vmatpush1.msra.mxu0 0.0
        %3409 = vmatprep.subr.mxu0 0.0
        %3410 = vmatpush1.msra.mxu0 0.0
        %3411 = vmatprep.subr.mxu0 0.0
        %3412 = vmatpush1.msra.mxu0 0.0
        %3413 = vmatprep.mubr.f32.mxu0 0.0
        %3414 = vmatmul.mubr.f32.gmra.mrb[0].mxu0 %v3276
        %v3415 = vpop.f32.mrb[0].mxu0
        %v3416 = vadd.f32 0.0, %v3415
        %v3417 = vpop.f32.mrb[0].mxu0
        %v3418 = vadd.f32 0.0, %v3417
        %3419 = vdwg.mxu0
        %v3420 = vadd.f32 %v3201, %v3345
        %v3421 = vadd.f32 %v3202, %v3347
        %v3422 = vadd.f32 %v3203, %v3416
        %v3423 = vadd.f32 %v3204, %v3418
        %s3424 = scalar_lea.vmem %s2, 39
        %v3425 = vld [vmem:[%s3424] ss:$8 sm:$0xf]
        %v3427 = vlaneseq
        %v3428 = vshrl.u32 %v3427, 7
        %v3429 = vsub.s32 0, %v3428
        %v3430 = vrot.slane %v3425, %v3429
        %v3431 = vlaneseq
        %v3432 = vshrl.u32 %v3431, 7
        %v3433 = vsub.s32 1, %v3432
        %v3434 = vrot.slane %v3425, %v3433
        %v3435 = vlaneseq
        %v3436 = vshrl.u32 %v3435, 7
        %v3437 = vsub.s32 2, %v3436
        %v3438 = vrot.slane %v3425, %v3437
        %v3439 = vlaneseq
        %v3440 = vshrl.u32 %v3439, 7
        %v3441 = vsub.s32 3, %v3440
        %v3442 = vrot.slane %v3425, %v3441
        %3443 = vrot.lane.b32.xlu0 %v3430, 7
        %v3444 = vpop.permute.xlu0 %3443
        %3445 = vrot.lane.b32.xlu0 %v3434, 7
        %v3446 = vpop.permute.xlu0 %3445
        %3447 = vrot.lane.b32.xlu0 %v3438, 7
        %v3448 = vpop.permute.xlu0 %3447
        %3449 = vrot.lane.b32.xlu0 %v3442, 7
        %v3450 = vpop.permute.xlu0 %3449
        %v3451 = vsel %vm2680, %v3444, %v3446
        %v3452 = vsel %vm2680, %v3446, %v3448
        %v3453 = vsel %vm2680, %v3448, %v3450
        %v3459 = vmul.f32 %v3205, %v3444
        %v3460 = vmul.f32 %v3206, %v3451
        %v3461 = vmul.f32 %v3207, %v3452
        %v3462 = vmul.f32 %v3208, %v3453
        %v3463 = vmul.f32 %v3209, %v3450
        %s3464 = scalar_lea.vmem %s1, 120
        %v3465 = vld [vmem:[%s3464] sm:$0xff]
        %3471 = vrot.lane.b32.xlu0 %v3459, 121
        %v3472 = vpop.permute.xlu0 %3471
        %3473 = vrot.lane.b32.xlu0 %v3460, 121
        %v3474 = vpop.permute.xlu0 %3473
        %3475 = vrot.lane.b32.xlu0 %v3461, 121
        %v3476 = vpop.permute.xlu0 %3475
        %3477 = vrot.lane.b32.xlu0 %v3462, 121
        %v3478 = vpop.permute.xlu0 %3477
        %3479 = vrot.lane.b32.xlu0 %v3463, 121
        %v3480 = vpop.permute.xlu0 %3479
        %v3481 = vsel %vm2649, %v3472, %v3474
        %v3482 = vsel %vm2649, %v3474, %v3476
        %v3483 = vsel %vm2649, %v3476, %v3478
        %v3484 = vsel %vm2649, %v3478, %v3480
        %v3490 = vsel %vm373, %v3465, 0
        %3492 = vmatprep.subr.mxu0 %v3482
        %3493 = vmatpush1.msra.mxu0 %v3481
        %3494 = vmatprep.subr.mxu0 0.0
        %3495 = vmatpush1.msra.mxu0 0.0
        %3496 = vmatprep.subr.mxu0 0.0
        %3497 = vmatpush1.msra.mxu0 0.0
        %3498 = vmatprep.subr.mxu0 0.0
        %3499 = vmatpush1.msra.mxu0 0.0
        %3500 = vmatprep.subr.mxu0 0.0
        %3501 = vmatpush1.msra.mxu0 0.0
        %3502 = vmatprep.subr.mxu0 0.0
        %3503 = vmatpush1.msra.mxu0 0.0
        %3504 = vmatprep.subr.mxu0 0.0
        %3505 = vmatpush1.msra.mxu0 0.0
        %3506 = vmatprep.subr.mxu0 0.0
        %3507 = vmatpush1.msra.mxu0 0.0
        %3508 = vmatprep.subr.mxu0 0.0
        %3509 = vmatpush1.msra.mxu0 0.0
        %3510 = vmatprep.subr.mxu0 0.0
        %3511 = vmatpush1.msra.mxu0 0.0
        %3512 = vmatprep.subr.mxu0 0.0
        %3513 = vmatpush1.msra.mxu0 0.0
        %3514 = vmatprep.subr.mxu0 0.0
        %3515 = vmatpush1.msra.mxu0 0.0
        %3516 = vmatprep.subr.mxu0 0.0
        %3517 = vmatpush1.msra.mxu0 0.0
        %3518 = vmatprep.subr.mxu0 0.0
        %3519 = vmatpush1.msra.mxu0 0.0
        %3520 = vmatprep.subr.mxu0 0.0
        %3521 = vmatpush1.msra.mxu0 0.0
        %3522 = vmatprep.subr.mxu0 0.0
        %3523 = vmatpush1.msra.mxu0 0.0
        %3524 = vmatprep.subr.mxu0 0.0
        %3525 = vmatpush1.msra.mxu0 0.0
        %3526 = vmatprep.subr.mxu0 0.0
        %3527 = vmatpush1.msra.mxu0 0.0
        %3528 = vmatprep.subr.mxu0 0.0
        %3529 = vmatpush1.msra.mxu0 0.0
        %3530 = vmatprep.subr.mxu0 0.0
        %3531 = vmatpush1.msra.mxu0 0.0
        %3532 = vmatprep.subr.mxu0 0.0
        %3533 = vmatpush1.msra.mxu0 0.0
        %3534 = vmatprep.subr.mxu0 0.0
        %3535 = vmatpush1.msra.mxu0 0.0
        %3536 = vmatprep.subr.mxu0 0.0
        %3537 = vmatpush1.msra.mxu0 0.0
        %3538 = vmatprep.subr.mxu0 0.0
        %3539 = vmatpush1.msra.mxu0 0.0
        %3540 = vmatprep.subr.mxu0 0.0
        %3541 = vmatpush1.msra.mxu0 0.0
        %3542 = vmatprep.subr.mxu0 0.0
        %3543 = vmatpush1.msra.mxu0 0.0
        %3544 = vmatprep.subr.mxu0 0.0
        %3545 = vmatpush1.msra.mxu0 0.0
        %3546 = vmatprep.subr.mxu0 0.0
        %3547 = vmatpush1.msra.mxu0 0.0
        %3548 = vmatprep.subr.mxu0 0.0
        %3549 = vmatpush1.msra.mxu0 0.0
        %3550 = vmatprep.subr.mxu0 0.0
        %3551 = vmatpush1.msra.mxu0 0.0
        %3552 = vmatprep.subr.mxu0 0.0
        %3553 = vmatpush1.msra.mxu0 0.0
        %3554 = vmatprep.subr.mxu0 0.0
        %3555 = vmatpush1.msra.mxu0 0.0
        %3556 = vmatprep.mubr.f32.mxu0 0.0
        %3557 = vmatmul.mubr.f32.gmra.mrb[0].mxu0 %v3490
        %v3558 = vpop.f32.mrb[0].mxu0
        %v3559 = vadd.f32 0.0, %v3558
        %v3560 = vpop.f32.mrb[0].mxu0
        %v3561 = vadd.f32 0.0, %v3560
        %3562 = vdwg.mxu0
        %3563 = vmatprep.subr.mxu0 %v3484
        %3564 = vmatpush1.msra.mxu0 %v3483
        %3565 = vmatprep.subr.mxu0 0.0
        %3566 = vmatpush1.msra.mxu0 0.0
        %3567 = vmatprep.subr.mxu0 0.0
        %3568 = vmatpush1.msra.mxu0 0.0
        %3569 = vmatprep.subr.mxu0 0.0
        %3570 = vmatpush1.msra.mxu0 0.0
        %3571 = vmatprep.subr.mxu0 0.0
        %3572 = vmatpush1.msra.mxu0 0.0
        %3573 = vmatprep.subr.mxu0 0.0
        %3574 = vmatpush1.msra.mxu0 0.0
        %3575 = vmatprep.subr.mxu0 0.0
        %3576 = vmatpush1.msra.mxu0 0.0
        %3577 = vmatprep.subr.mxu0 0.0
        %3578 = vmatpush1.msra.mxu0 0.0
        %3579 = vmatprep.subr.mxu0 0.0
        %3580 = vmatpush1.msra.mxu0 0.0
        %3581 = vmatprep.subr.mxu0 0.0
        %3582 = vmatpush1.msra.mxu0 0.0
        %3583 = vmatprep.subr.mxu0 0.0
        %3584 = vmatpush1.msra.mxu0 0.0
        %3585 = vmatprep.subr.mxu0 0.0
        %3586 = vmatpush1.msra.mxu0 0.0
        %3587 = vmatprep.subr.mxu0 0.0
        %3588 = vmatpush1.msra.mxu0 0.0
        %3589 = vmatprep.subr.mxu0 0.0
        %3590 = vmatpush1.msra.mxu0 0.0
        %3591 = vmatprep.subr.mxu0 0.0
        %3592 = vmatpush1.msra.mxu0 0.0
        %3593 = vmatprep.subr.mxu0 0.0
        %3594 = vmatpush1.msra.mxu0 0.0
        %3595 = vmatprep.subr.mxu0 0.0
        %3596 = vmatpush1.msra.mxu0 0.0
        %3597 = vmatprep.subr.mxu0 0.0
        %3598 = vmatpush1.msra.mxu0 0.0
        %3599 = vmatprep.subr.mxu0 0.0
        %3600 = vmatpush1.msra.mxu0 0.0
        %3601 = vmatprep.subr.mxu0 0.0
        %3602 = vmatpush1.msra.mxu0 0.0
        %3603 = vmatprep.subr.mxu0 0.0
        %3604 = vmatpush1.msra.mxu0 0.0
        %3605 = vmatprep.subr.mxu0 0.0
        %3606 = vmatpush1.msra.mxu0 0.0
        %3607 = vmatprep.subr.mxu0 0.0
        %3608 = vmatpush1.msra.mxu0 0.0
        %3609 = vmatprep.subr.mxu0 0.0
        %3610 = vmatpush1.msra.mxu0 0.0
        %3611 = vmatprep.subr.mxu0 0.0
        %3612 = vmatpush1.msra.mxu0 0.0
        %3613 = vmatprep.subr.mxu0 0.0
        %3614 = vmatpush1.msra.mxu0 0.0
        %3615 = vmatprep.subr.mxu0 0.0
        %3616 = vmatpush1.msra.mxu0 0.0
        %3617 = vmatprep.subr.mxu0 0.0
        %3618 = vmatpush1.msra.mxu0 0.0
        %3619 = vmatprep.subr.mxu0 0.0
        %3620 = vmatpush1.msra.mxu0 0.0
        %3621 = vmatprep.subr.mxu0 0.0
        %3622 = vmatpush1.msra.mxu0 0.0
        %3623 = vmatprep.subr.mxu0 0.0
        %3624 = vmatpush1.msra.mxu0 0.0
        %3625 = vmatprep.subr.mxu0 0.0
        %3626 = vmatpush1.msra.mxu0 0.0
        %3627 = vmatprep.mubr.f32.mxu0 0.0
        %3628 = vmatmul.mubr.f32.gmra.mrb[0].mxu0 %v3490
        %v3629 = vpop.f32.mrb[0].mxu0
        %v3630 = vadd.f32 0.0, %v3629
        %v3631 = vpop.f32.mrb[0].mxu0
        %v3632 = vadd.f32 0.0, %v3631
        %3633 = vdwg.mxu0
        %v3634 = vadd.f32 %v3420, %v3559
        %v3635 = vadd.f32 %v3421, %v3561
        %v3636 = vadd.f32 %v3422, %v3630
        %v3637 = vadd.f32 %v3423, %v3632
        %s3638 = scalar_lea.vmem %s2, 64
        %v3639 = vld [vmem:[%s3638] ss:$8 sm:$0xf]
        %v3641 = vlaneseq
        %v3642 = vshrl.u32 %v3641, 7
        %v3643 = vsub.s32 0, %v3642
        %v3644 = vrot.slane %v3639, %v3643
        %v3645 = vlaneseq
        %v3646 = vshrl.u32 %v3645, 7
        %v3647 = vsub.s32 1, %v3646
        %v3648 = vrot.slane %v3639, %v3647
        %v3649 = vlaneseq
        %v3650 = vshrl.u32 %v3649, 7
        %v3651 = vsub.s32 2, %v3650
        %v3652 = vrot.slane %v3639, %v3651
        %v3653 = vlaneseq
        %v3654 = vshrl.u32 %v3653, 7
        %v3655 = vsub.s32 3, %v3654
        %v3656 = vrot.slane %v3639, %v3655
        %3657 = vrot.lane.b32.xlu0 %v3644, 8
        %v3658 = vpop.permute.xlu0 %3657
        %3659 = vrot.lane.b32.xlu0 %v3648, 8
        %v3660 = vpop.permute.xlu0 %3659
        %3661 = vrot.lane.b32.xlu0 %v3652, 8
        %v3662 = vpop.permute.xlu0 %3661
        %3663 = vrot.lane.b32.xlu0 %v3656, 8
        %v3664 = vpop.permute.xlu0 %3663
        %v3665 = vsel %vm373, %v3658, %v3660
        %v3666 = vsel %vm373, %v3660, %v3662
        %v3667 = vsel %vm373, %v3662, %v3664
        %v3673 = vmul.f32 %v3205, %v3658
        %v3674 = vmul.f32 %v3206, %v3665
        %v3675 = vmul.f32 %v3207, %v3666
        %v3676 = vmul.f32 %v3208, %v3667
        %v3677 = vmul.f32 %v3209, %v3664
        %s3678 = scalar_lea.vmem %s1, 128
        %v3679 = vld [vmem:[%s3678] sm:$0xff]
        %3685 = vrot.lane.b32.xlu0 %v3673, 120
        %v3686 = vpop.permute.xlu0 %3685
        %3687 = vrot.lane.b32.xlu0 %v3674, 120
        %v3688 = vpop.permute.xlu0 %3687
        %3689 = vrot.lane.b32.xlu0 %v3675, 120
        %v3690 = vpop.permute.xlu0 %3689
        %3691 = vrot.lane.b32.xlu0 %v3676, 120
        %v3692 = vpop.permute.xlu0 %3691
        %3693 = vrot.lane.b32.xlu0 %v3677, 120
        %v3694 = vpop.permute.xlu0 %3693
        %v3695 = vsel %vm2434, %v3686, %v3688
        %v3696 = vsel %vm2434, %v3688, %v3690
        %v3697 = vsel %vm2434, %v3690, %v3692
        %v3698 = vsel %vm2434, %v3692, %v3694
        %v3704 = vsel %vm373, %v3679, 0
        %3706 = vmatprep.subr.mxu0 %v3696
        %3707 = vmatpush1.msra.mxu0 %v3695
        %3708 = vmatprep.subr.mxu0 0.0
        %3709 = vmatpush1.msra.mxu0 0.0
        %3710 = vmatprep.subr.mxu0 0.0
        %3711 = vmatpush1.msra.mxu0 0.0
        %3712 = vmatprep.subr.mxu0 0.0
        %3713 = vmatpush1.msra.mxu0 0.0
        %3714 = vmatprep.subr.mxu0 0.0
        %3715 = vmatpush1.msra.mxu0 0.0
        %3716 = vmatprep.subr.mxu0 0.0
        %3717 = vmatpush1.msra.mxu0 0.0
        %3718 = vmatprep.subr.mxu0 0.0
        %3719 = vmatpush1.msra.mxu0 0.0
        %3720 = vmatprep.subr.mxu0 0.0
        %3721 = vmatpush1.msra.mxu0 0.0
        %3722 = vmatprep.subr.mxu0 0.0
        %3723 = vmatpush1.msra.mxu0 0.0
        %3724 = vmatprep.subr.mxu0 0.0
        %3725 = vmatpush1.msra.mxu0 0.0
        %3726 = vmatprep.subr.mxu0 0.0
        %3727 = vmatpush1.msra.mxu0 0.0
        %3728 = vmatprep.subr.mxu0 0.0
        %3729 = vmatpush1.msra.mxu0 0.0
        %3730 = vmatprep.subr.mxu0 0.0
        %3731 = vmatpush1.msra.mxu0 0.0
        %3732 = vmatprep.subr.mxu0 0.0
        %3733 = vmatpush1.msra.mxu0 0.0
        %3734 = vmatprep.subr.mxu0 0.0
        %3735 = vmatpush1.msra.mxu0 0.0
        %3736 = vmatprep.subr.mxu0 0.0
        %3737 = vmatpush1.msra.mxu0 0.0
        %3738 = vmatprep.subr.mxu0 0.0
        %3739 = vmatpush1.msra.mxu0 0.0
        %3740 = vmatprep.subr.mxu0 0.0
        %3741 = vmatpush1.msra.mxu0 0.0
        %3742 = vmatprep.subr.mxu0 0.0
        %3743 = vmatpush1.msra.mxu0 0.0
        %3744 = vmatprep.subr.mxu0 0.0
        %3745 = vmatpush1.msra.mxu0 0.0
        %3746 = vmatprep.subr.mxu0 0.0
        %3747 = vmatpush1.msra.mxu0 0.0
        %3748 = vmatprep.subr.mxu0 0.0
        %3749 = vmatpush1.msra.mxu0 0.0
        %3750 = vmatprep.subr.mxu0 0.0
        %3751 = vmatpush1.msra.mxu0 0.0
        %3752 = vmatprep.subr.mxu0 0.0
        %3753 = vmatpush1.msra.mxu0 0.0
        %3754 = vmatprep.subr.mxu0 0.0
        %3755 = vmatpush1.msra.mxu0 0.0
        %3756 = vmatprep.subr.mxu0 0.0
        %3757 = vmatpush1.msra.mxu0 0.0
        %3758 = vmatprep.subr.mxu0 0.0
        %3759 = vmatpush1.msra.mxu0 0.0
        %3760 = vmatprep.subr.mxu0 0.0
        %3761 = vmatpush1.msra.mxu0 0.0
        %3762 = vmatprep.subr.mxu0 0.0
        %3763 = vmatpush1.msra.mxu0 0.0
        %3764 = vmatprep.subr.mxu0 0.0
        %3765 = vmatpush1.msra.mxu0 0.0
        %3766 = vmatprep.subr.mxu0 0.0
        %3767 = vmatpush1.msra.mxu0 0.0
        %3768 = vmatprep.subr.mxu0 0.0
        %3769 = vmatpush1.msra.mxu0 0.0
        %3770 = vmatprep.mubr.f32.mxu0 0.0
        %3771 = vmatmul.mubr.f32.gmra.mrb[0].mxu0 %v3704
        %v3772 = vpop.f32.mrb[0].mxu0
        %v3773 = vadd.f32 0.0, %v3772
        %v3774 = vpop.f32.mrb[0].mxu0
        %v3775 = vadd.f32 0.0, %v3774
        %3776 = vdwg.mxu0
        %3777 = vmatprep.subr.mxu0 %v3698
        %3778 = vmatpush1.msra.mxu0 %v3697
        %3779 = vmatprep.subr.mxu0 0.0
        %3780 = vmatpush1.msra.mxu0 0.0
        %3781 = vmatprep.subr.mxu0 0.0
        %3782 = vmatpush1.msra.mxu0 0.0
        %3783 = vmatprep.subr.mxu0 0.0
        %3784 = vmatpush1.msra.mxu0 0.0
        %3785 = vmatprep.subr.mxu0 0.0
        %3786 = vmatpush1.msra.mxu0 0.0
        %3787 = vmatprep.subr.mxu0 0.0
        %3788 = vmatpush1.msra.mxu0 0.0
        %3789 = vmatprep.subr.mxu0 0.0
        %3790 = vmatpush1.msra.mxu0 0.0
        %3791 = vmatprep.subr.mxu0 0.0
        %3792 = vmatpush1.msra.mxu0 0.0
        %3793 = vmatprep.subr.mxu0 0.0
        %3794 = vmatpush1.msra.mxu0 0.0
        %3795 = vmatprep.subr.mxu0 0.0
        %3796 = vmatpush1.msra.mxu0 0.0
        %3797 = vmatprep.subr.mxu0 0.0
        %3798 = vmatpush1.msra.mxu0 0.0
        %3799 = vmatprep.subr.mxu0 0.0
        %3800 = vmatpush1.msra.mxu0 0.0
        %3801 = vmatprep.subr.mxu0 0.0
        %3802 = vmatpush1.msra.mxu0 0.0
        %3803 = vmatprep.subr.mxu0 0.0
        %3804 = vmatpush1.msra.mxu0 0.0
        %3805 = vmatprep.subr.mxu0 0.0
        %3806 = vmatpush1.msra.mxu0 0.0
        %3807 = vmatprep.subr.mxu0 0.0
        %3808 = vmatpush1.msra.mxu0 0.0
        %3809 = vmatprep.subr.mxu0 0.0
        %3810 = vmatpush1.msra.mxu0 0.0
        %3811 = vmatprep.subr.mxu0 0.0
        %3812 = vmatpush1.msra.mxu0 0.0
        %3813 = vmatprep.subr.mxu0 0.0
        %3814 = vmatpush1.msra.mxu0 0.0
        %3815 = vmatprep.subr.mxu0 0.0
        %3816 = vmatpush1.msra.mxu0 0.0
        %3817 = vmatprep.subr.mxu0 0.0
        %3818 = vmatpush1.msra.mxu0 0.0
        %3819 = vmatprep.subr.mxu0 0.0
        %3820 = vmatpush1.msra.mxu0 0.0
        %3821 = vmatprep.subr.mxu0 0.0
        %3822 = vmatpush1.msra.mxu0 0.0
        %3823 = vmatprep.subr.mxu0 0.0
        %3824 = vmatpush1.msra.mxu0 0.0
        %3825 = vmatprep.subr.mxu0 0.0
        %3826 = vmatpush1.msra.mxu0 0.0
        %3827 = vmatprep.subr.mxu0 0.0
        %3828 = vmatpush1.msra.mxu0 0.0
        %3829 = vmatprep.subr.mxu0 0.0
        %3830 = vmatpush1.msra.mxu0 0.0
        %3831 = vmatprep.subr.mxu0 0.0
        %3832 = vmatpush1.msra.mxu0 0.0
        %3833 = vmatprep.subr.mxu0 0.0
        %3834 = vmatpush1.msra.mxu0 0.0
        %3835 = vmatprep.subr.mxu0 0.0
        %3836 = vmatpush1.msra.mxu0 0.0
        %3837 = vmatprep.subr.mxu0 0.0
        %3838 = vmatpush1.msra.mxu0 0.0
        %3839 = vmatprep.subr.mxu0 0.0
        %3840 = vmatpush1.msra.mxu0 0.0
        %3841 = vmatprep.mubr.f32.mxu0 0.0
        %3842 = vmatmul.mubr.f32.gmra.mrb[0].mxu0 %v3704
        %v3843 = vpop.f32.mrb[0].mxu0
        %v3844 = vadd.f32 0.0, %v3843
        %v3845 = vpop.f32.mrb[0].mxu0
        %v3846 = vadd.f32 0.0, %v3845
        %3847 = vdwg.mxu0
        %v3848 = vadd.f32 %v3634, %v3773
        %v3849 = vadd.f32 %v3635, %v3775
        %v3850 = vadd.f32 %v3636, %v3844
        %v3851 = vadd.f32 %v3637, %v3846
        %s3852 = scalar_lea.vmem %s2, 65
        %v3853 = vld [vmem:[%s3852] ss:$8 sm:$0xf]
        %v3855 = vlaneseq
        %v3856 = vshrl.u32 %v3855, 7
        %v3857 = vsub.s32 0, %v3856
        %v3858 = vrot.slane %v3853, %v3857
        %v3859 = vlaneseq
        %v3860 = vshrl.u32 %v3859, 7
        %v3861 = vsub.s32 1, %v3860
        %v3862 = vrot.slane %v3853, %v3861
        %v3863 = vlaneseq
        %v3864 = vshrl.u32 %v3863, 7
        %v3865 = vsub.s32 2, %v3864
        %v3866 = vrot.slane %v3853, %v3865
        %v3867 = vlaneseq
        %v3868 = vshrl.u32 %v3867, 7
        %v3869 = vsub.s32 3, %v3868
        %v3870 = vrot.slane %v3853, %v3869
        %3871 = vrot.lane.b32.xlu0 %v3858, 9
        %v3872 = vpop.permute.xlu0 %3871
        %3873 = vrot.lane.b32.xlu0 %v3862, 9
        %v3874 = vpop.permute.xlu0 %3873
        %3875 = vrot.lane.b32.xlu0 %v3866, 9
        %v3876 = vpop.permute.xlu0 %3875
        %3877 = vrot.lane.b32.xlu0 %v3870, 9
        %v3878 = vpop.permute.xlu0 %3877
        %v3879 = vsel %vm2249, %v3872, %v3874
        %v3880 = vsel %vm2249, %v3874, %v3876
        %v3881 = vsel %vm2249, %v3876, %v3878
        %v3887 = vmul.f32 %v3205, %v3872
        %v3888 = vmul.f32 %v3206, %v3879
        %v3889 = vmul.f32 %v3207, %v3880
        %v3890 = vmul.f32 %v3208, %v3881
        %v3891 = vmul.f32 %v3209, %v3878
        %s3892 = scalar_lea.vmem %s1, 136
        %v3893 = vld [vmem:[%s3892] sm:$0xff]
        %3899 = vrot.lane.b32.xlu0 %v3887, 119
        %v3900 = vpop.permute.xlu0 %3899
        %3901 = vrot.lane.b32.xlu0 %v3888, 119
        %v3902 = vpop.permute.xlu0 %3901
        %3903 = vrot.lane.b32.xlu0 %v3889, 119
        %v3904 = vpop.permute.xlu0 %3903
        %3905 = vrot.lane.b32.xlu0 %v3890, 119
        %v3906 = vpop.permute.xlu0 %3905
        %3907 = vrot.lane.b32.xlu0 %v3891, 119
        %v3908 = vpop.permute.xlu0 %3907
        %v3909 = vsel %vm2218, %v3900, %v3902
        %v3910 = vsel %vm2218, %v3902, %v3904
        %v3911 = vsel %vm2218, %v3904, %v3906
        %v3912 = vsel %vm2218, %v3906, %v3908
        %v3918 = vsel %vm373, %v3893, 0
        %3920 = vmatprep.subr.mxu0 %v3910
        %3921 = vmatpush1.msra.mxu0 %v3909
        %3922 = vmatprep.subr.mxu0 0.0
        %3923 = vmatpush1.msra.mxu0 0.0
        %3924 = vmatprep.subr.mxu0 0.0
        %3925 = vmatpush1.msra.mxu0 0.0
        %3926 = vmatprep.subr.mxu0 0.0
        %3927 = vmatpush1.msra.mxu0 0.0
        %3928 = vmatprep.subr.mxu0 0.0
        %3929 = vmatpush1.msra.mxu0 0.0
        %3930 = vmatprep.subr.mxu0 0.0
        %3931 = vmatpush1.msra.mxu0 0.0
        %3932 = vmatprep.subr.mxu0 0.0
        %3933 = vmatpush1.msra.mxu0 0.0
        %3934 = vmatprep.subr.mxu0 0.0
        %3935 = vmatpush1.msra.mxu0 0.0
        %3936 = vmatprep.subr.mxu0 0.0
        %3937 = vmatpush1.msra.mxu0 0.0
        %3938 = vmatprep.subr.mxu0 0.0
        %3939 = vmatpush1.msra.mxu0 0.0
        %3940 = vmatprep.subr.mxu0 0.0
        %3941 = vmatpush1.msra.mxu0 0.0
        %3942 = vmatprep.subr.mxu0 0.0
        %3943 = vmatpush1.msra.mxu0 0.0
        %3944 = vmatprep.subr.mxu0 0.0
        %3945 = vmatpush1.msra.mxu0 0.0
        %3946 = vmatprep.subr.mxu0 0.0
        %3947 = vmatpush1.msra.mxu0 0.0
        %3948 = vmatprep.subr.mxu0 0.0
        %3949 = vmatpush1.msra.mxu0 0.0
        %3950 = vmatprep.subr.mxu0 0.0
        %3951 = vmatpush1.msra.mxu0 0.0
        %3952 = vmatprep.subr.mxu0 0.0
        %3953 = vmatpush1.msra.mxu0 0.0
        %3954 = vmatprep.subr.mxu0 0.0
        %3955 = vmatpush1.msra.mxu0 0.0
        %3956 = vmatprep.subr.mxu0 0.0
        %3957 = vmatpush1.msra.mxu0 0.0
        %3958 = vmatprep.subr.mxu0 0.0
        %3959 = vmatpush1.msra.mxu0 0.0
        %3960 = vmatprep.subr.mxu0 0.0
        %3961 = vmatpush1.msra.mxu0 0.0
        %3962 = vmatprep.subr.mxu0 0.0
        %3963 = vmatpush1.msra.mxu0 0.0
        %3964 = vmatprep.subr.mxu0 0.0
        %3965 = vmatpush1.msra.mxu0 0.0
        %3966 = vmatprep.subr.mxu0 0.0
        %3967 = vmatpush1.msra.mxu0 0.0
        %3968 = vmatprep.subr.mxu0 0.0
        %3969 = vmatpush1.msra.mxu0 0.0
        %3970 = vmatprep.subr.mxu0 0.0
        %3971 = vmatpush1.msra.mxu0 0.0
        %3972 = vmatprep.subr.mxu0 0.0
        %3973 = vmatpush1.msra.mxu0 0.0
        %3974 = vmatprep.subr.mxu0 0.0
        %3975 = vmatpush1.msra.mxu0 0.0
        %3976 = vmatprep.subr.mxu0 0.0
        %3977 = vmatpush1.msra.mxu0 0.0
        %3978 = vmatprep.subr.mxu0 0.0
        %3979 = vmatpush1.msra.mxu0 0.0
        %3980 = vmatprep.subr.mxu0 0.0
        %3981 = vmatpush1.msra.mxu0 0.0
        %3982 = vmatprep.subr.mxu0 0.0
        %3983 = vmatpush1.msra.mxu0 0.0
        %3984 = vmatprep.mubr.f32.mxu0 0.0
        %3985 = vmatmul.mubr.f32.gmra.mrb[0].mxu0 %v3918
        %v3986 = vpop.f32.mrb[0].mxu0
        %v3987 = vadd.f32 0.0, %v3986
        %v3988 = vpop.f32.mrb[0].mxu0
        %v3989 = vadd.f32 0.0, %v3988
        %3990 = vdwg.mxu0
        %3991 = vmatprep.subr.mxu0 %v3912
        %3992 = vmatpush1.msra.mxu0 %v3911
        %3993 = vmatprep.subr.mxu0 0.0
        %3994 = vmatpush1.msra.mxu0 0.0
        %3995 = vmatprep.subr.mxu0 0.0
        %3996 = vmatpush1.msra.mxu0 0.0
        %3997 = vmatprep.subr.mxu0 0.0
        %3998 = vmatpush1.msra.mxu0 0.0
        %3999 = vmatprep.subr.mxu0 0.0
        %4000 = vmatpush1.msra.mxu0 0.0
        %4001 = vmatprep.subr.mxu0 0.0
        %4002 = vmatpush1.msra.mxu0 0.0
        %4003 = vmatprep.subr.mxu0 0.0
        %4004 = vmatpush1.msra.mxu0 0.0
        %4005 = vmatprep.subr.mxu0 0.0
        %4006 = vmatpush1.msra.mxu0 0.0
        %4007 = vmatprep.subr.mxu0 0.0
        %4008 = vmatpush1.msra.mxu0 0.0
        %4009 = vmatprep.subr.mxu0 0.0
        %4010 = vmatpush1.msra.mxu0 0.0
        %4011 = vmatprep.subr.mxu0 0.0
        %4012 = vmatpush1.msra.mxu0 0.0
        %4013 = vmatprep.subr.mxu0 0.0
        %4014 = vmatpush1.msra.mxu0 0.0
        %4015 = vmatprep.subr.mxu0 0.0
        %4016 = vmatpush1.msra.mxu0 0.0
        %4017 = vmatprep.subr.mxu0 0.0
        %4018 = vmatpush1.msra.mxu0 0.0
        %4019 = vmatprep.subr.mxu0 0.0
        %4020 = vmatpush1.msra.mxu0 0.0
        %4021 = vmatprep.subr.mxu0 0.0
        %4022 = vmatpush1.msra.mxu0 0.0
        %4023 = vmatprep.subr.mxu0 0.0
        %4024 = vmatpush1.msra.mxu0 0.0
        %4025 = vmatprep.subr.mxu0 0.0
        %4026 = vmatpush1.msra.mxu0 0.0
        %4027 = vmatprep.subr.mxu0 0.0
        %4028 = vmatpush1.msra.mxu0 0.0
        %4029 = vmatprep.subr.mxu0 0.0
        %4030 = vmatpush1.msra.mxu0 0.0
        %4031 = vmatprep.subr.mxu0 0.0
        %4032 = vmatpush1.msra.mxu0 0.0
        %4033 = vmatprep.subr.mxu0 0.0
        %4034 = vmatpush1.msra.mxu0 0.0
        %4035 = vmatprep.subr.mxu0 0.0
        %4036 = vmatpush1.msra.mxu0 0.0
        %4037 = vmatprep.subr.mxu0 0.0
        %4038 = vmatpush1.msra.mxu0 0.0
        %4039 = vmatprep.subr.mxu0 0.0
        %4040 = vmatpush1.msra.mxu0 0.0
        %4041 = vmatprep.subr.mxu0 0.0
        %4042 = vmatpush1.msra.mxu0 0.0
        %4043 = vmatprep.subr.mxu0 0.0
        %4044 = vmatpush1.msra.mxu0 0.0
        %4045 = vmatprep.subr.mxu0 0.0
        %4046 = vmatpush1.msra.mxu0 0.0
        %4047 = vmatprep.subr.mxu0 0.0
        %4048 = vmatpush1.msra.mxu0 0.0
        %4049 = vmatprep.subr.mxu0 0.0
        %4050 = vmatpush1.msra.mxu0 0.0
        %4051 = vmatprep.subr.mxu0 0.0
        %4052 = vmatpush1.msra.mxu0 0.0
        %4053 = vmatprep.subr.mxu0 0.0
        %4054 = vmatpush1.msra.mxu0 0.0
        %4055 = vmatprep.mubr.f32.mxu0 0.0
        %4056 = vmatmul.mubr.f32.gmra.mrb[0].mxu0 %v3918
        %v4057 = vpop.f32.mrb[0].mxu0
        %v4058 = vadd.f32 0.0, %v4057
        %v4059 = vpop.f32.mrb[0].mxu0
        %v4060 = vadd.f32 0.0, %v4059
        %4061 = vdwg.mxu0
        %v4062 = vadd.f32 %v3848, %v3987
        %v4063 = vadd.f32 %v3849, %v3989
        %v4064 = vadd.f32 %v3850, %v4058
        %v4065 = vadd.f32 %v3851, %v4060
        %s4066 = scalar_lea.vmem %s2, 66
        %v4067 = vld [vmem:[%s4066] ss:$8 sm:$0xf]
        %v4069 = vlaneseq
        %v4070 = vshrl.u32 %v4069, 7
        %v4071 = vsub.s32 0, %v4070
        %v4072 = vrot.slane %v4067, %v4071
        %v4073 = vlaneseq
        %v4074 = vshrl.u32 %v4073, 7
        %v4075 = vsub.s32 1, %v4074
        %v4076 = vrot.slane %v4067, %v4075
        %v4077 = vlaneseq
        %v4078 = vshrl.u32 %v4077, 7
        %v4079 = vsub.s32 2, %v4078
        %v4080 = vrot.slane %v4067, %v4079
        %v4081 = vlaneseq
        %v4082 = vshrl.u32 %v4081, 7
        %v4083 = vsub.s32 3, %v4082
        %v4084 = vrot.slane %v4067, %v4083
        %4085 = vrot.lane.b32.xlu0 %v4072, 55
        %v4086 = vpop.permute.xlu0 %4085
        %4087 = vrot.lane.b32.xlu0 %v4076, 55
        %v4088 = vpop.permute.xlu0 %4087
        %4089 = vrot.lane.b32.xlu0 %v4080, 55
        %v4090 = vpop.permute.xlu0 %4089
        %4091 = vrot.lane.b32.xlu0 %v4084, 55
        %v4092 = vpop.permute.xlu0 %4091
        %v4093 = vsel %vm291, %v4086, %v4088
        %v4094 = vsel %vm291, %v4088, %v4090
        %v4095 = vsel %vm291, %v4090, %v4092
        %v4101 = vmul.f32 %v3205, %v4086
        %v4102 = vmul.f32 %v3206, %v4093
        %v4103 = vmul.f32 %v3207, %v4094
        %v4104 = vmul.f32 %v3208, %v4095
        %v4105 = vmul.f32 %v3209, %v4092
        %s4106 = scalar_lea.vmem %s1, 144
        %v4107 = vld [vmem:[%s4106] sm:$0xff]
        %4113 = vrot.lane.b32.xlu0 %v4101, 73
        %v4114 = vpop.permute.xlu0 %4113
        %4115 = vrot.lane.b32.xlu0 %v4102, 73
        %v4116 = vpop.permute.xlu0 %4115
        %4117 = vrot.lane.b32.xlu0 %v4103, 73
        %v4118 = vpop.permute.xlu0 %4117
        %4119 = vrot.lane.b32.xlu0 %v4104, 73
        %v4120 = vpop.permute.xlu0 %4119
        %4121 = vrot.lane.b32.xlu0 %v4105, 73
        %v4122 = vpop.permute.xlu0 %4121
        %v4123 = vsel %vm534, %v4114, %v4116
        %v4124 = vsel %vm534, %v4116, %v4118
        %v4125 = vsel %vm534, %v4118, %v4120
        %v4126 = vsel %vm534, %v4120, %v4122
        %v4132 = vsel %vm373, %v4107, 0
        %4134 = vmatprep.subr.mxu0 %v4124
        %4135 = vmatpush1.msra.mxu0 %v4123
        %4136 = vmatprep.subr.mxu0 0.0
        %4137 = vmatpush1.msra.mxu0 0.0
        %4138 = vmatprep.subr.mxu0 0.0
        %4139 = vmatpush1.msra.mxu0 0.0
        %4140 = vmatprep.subr.mxu0 0.0
        %4141 = vmatpush1.msra.mxu0 0.0
        %4142 = vmatprep.subr.mxu0 0.0
        %4143 = vmatpush1.msra.mxu0 0.0
        %4144 = vmatprep.subr.mxu0 0.0
        %4145 = vmatpush1.msra.mxu0 0.0
        %4146 = vmatprep.subr.mxu0 0.0
        %4147 = vmatpush1.msra.mxu0 0.0
        %4148 = vmatprep.subr.mxu0 0.0
        %4149 = vmatpush1.msra.mxu0 0.0
        %4150 = vmatprep.subr.mxu0 0.0
        %4151 = vmatpush1.msra.mxu0 0.0
        %4152 = vmatprep.subr.mxu0 0.0
        %4153 = vmatpush1.msra.mxu0 0.0
        %4154 = vmatprep.subr.mxu0 0.0
        %4155 = vmatpush1.msra.mxu0 0.0
        %4156 = vmatprep.subr.mxu0 0.0
        %4157 = vmatpush1.msra.mxu0 0.0
        %4158 = vmatprep.subr.mxu0 0.0
        %4159 = vmatpush1.msra.mxu0 0.0
        %4160 = vmatprep.subr.mxu0 0.0
        %4161 = vmatpush1.msra.mxu0 0.0
        %4162 = vmatprep.subr.mxu0 0.0
        %4163 = vmatpush1.msra.mxu0 0.0
        %4164 = vmatprep.subr.mxu0 0.0
        %4165 = vmatpush1.msra.mxu0 0.0
        %4166 = vmatprep.subr.mxu0 0.0
        %4167 = vmatpush1.msra.mxu0 0.0
        %4168 = vmatprep.subr.mxu0 0.0
        %4169 = vmatpush1.msra.mxu0 0.0
        %4170 = vmatprep.subr.mxu0 0.0
        %4171 = vmatpush1.msra.mxu0 0.0
        %4172 = vmatprep.subr.mxu0 0.0
        %4173 = vmatpush1.msra.mxu0 0.0
        %4174 = vmatprep.subr.mxu0 0.0
        %4175 = vmatpush1.msra.mxu0 0.0
        %4176 = vmatprep.subr.mxu0 0.0
        %4177 = vmatpush1.msra.mxu0 0.0
        %4178 = vmatprep.subr.mxu0 0.0
        %4179 = vmatpush1.msra.mxu0 0.0
        %4180 = vmatprep.subr.mxu0 0.0
        %4181 = vmatpush1.msra.mxu0 0.0
        %4182 = vmatprep.subr.mxu0 0.0
        %4183 = vmatpush1.msra.mxu0 0.0
        %4184 = vmatprep.subr.mxu0 0.0
        %4185 = vmatpush1.msra.mxu0 0.0
        %4186 = vmatprep.subr.mxu0 0.0
        %4187 = vmatpush1.msra.mxu0 0.0
        %4188 = vmatprep.subr.mxu0 0.0
        %4189 = vmatpush1.msra.mxu0 0.0
        %4190 = vmatprep.subr.mxu0 0.0
        %4191 = vmatpush1.msra.mxu0 0.0
        %4192 = vmatprep.subr.mxu0 0.0
        %4193 = vmatpush1.msra.mxu0 0.0
        %4194 = vmatprep.subr.mxu0 0.0
        %4195 = vmatpush1.msra.mxu0 0.0
        %4196 = vmatprep.subr.mxu0 0.0
        %4197 = vmatpush1.msra.mxu0 0.0
        %4198 = vmatprep.mubr.f32.mxu0 0.0
        %4199 = vmatmul.mubr.f32.gmra.mrb[0].mxu0 %v4132
        %v4200 = vpop.f32.mrb[0].mxu0
        %v4201 = vadd.f32 0.0, %v4200
        %v4202 = vpop.f32.mrb[0].mxu0
        %v4203 = vadd.f32 0.0, %v4202
        %4204 = vdwg.mxu0
        %4205 = vmatprep.subr.mxu0 %v4126
        %4206 = vmatpush1.msra.mxu0 %v4125
        %4207 = vmatprep.subr.mxu0 0.0
        %4208 = vmatpush1.msra.mxu0 0.0
        %4209 = vmatprep.subr.mxu0 0.0
        %4210 = vmatpush1.msra.mxu0 0.0
        %4211 = vmatprep.subr.mxu0 0.0
        %4212 = vmatpush1.msra.mxu0 0.0
        %4213 = vmatprep.subr.mxu0 0.0
        %4214 = vmatpush1.msra.mxu0 0.0
        %4215 = vmatprep.subr.mxu0 0.0
        %4216 = vmatpush1.msra.mxu0 0.0
        %4217 = vmatprep.subr.mxu0 0.0
        %4218 = vmatpush1.msra.mxu0 0.0
        %4219 = vmatprep.subr.mxu0 0.0
        %4220 = vmatpush1.msra.mxu0 0.0
        %4221 = vmatprep.subr.mxu0 0.0
        %4222 = vmatpush1.msra.mxu0 0.0
        %4223 = vmatprep.subr.mxu0 0.0
        %4224 = vmatpush1.msra.mxu0 0.0
        %4225 = vmatprep.subr.mxu0 0.0
        %4226 = vmatpush1.msra.mxu0 0.0
        %4227 = vmatprep.subr.mxu0 0.0
        %4228 = vmatpush1.msra.mxu0 0.0
        %4229 = vmatprep.subr.mxu0 0.0
        %4230 = vmatpush1.msra.mxu0 0.0
        %4231 = vmatprep.subr.mxu0 0.0
        %4232 = vmatpush1.msra.mxu0 0.0
        %4233 = vmatprep.subr.mxu0 0.0
        %4234 = vmatpush1.msra.mxu0 0.0
        %4235 = vmatprep.subr.mxu0 0.0
        %4236 = vmatpush1.msra.mxu0 0.0
        %4237 = vmatprep.subr.mxu0 0.0
        %4238 = vmatpush1.msra.mxu0 0.0
        %4239 = vmatprep.subr.mxu0 0.0
        %4240 = vmatpush1.msra.mxu0 0.0
        %4241 = vmatprep.subr.mxu0 0.0
        %4242 = vmatpush1.msra.mxu0 0.0
        %4243 = vmatprep.subr.mxu0 0.0
        %4244 = vmatpush1.msra.mxu0 0.0
        %4245 = vmatprep.subr.mxu0 0.0
        %4246 = vmatpush1.msra.mxu0 0.0
        %4247 = vmatprep.subr.mxu0 0.0
        %4248 = vmatpush1.msra.mxu0 0.0
        %4249 = vmatprep.subr.mxu0 0.0
        %4250 = vmatpush1.msra.mxu0 0.0
        %4251 = vmatprep.subr.mxu0 0.0
        %4252 = vmatpush1.msra.mxu0 0.0
        %4253 = vmatprep.subr.mxu0 0.0
        %4254 = vmatpush1.msra.mxu0 0.0
        %4255 = vmatprep.subr.mxu0 0.0
        %4256 = vmatpush1.msra.mxu0 0.0
        %4257 = vmatprep.subr.mxu0 0.0
        %4258 = vmatpush1.msra.mxu0 0.0
        %4259 = vmatprep.subr.mxu0 0.0
        %4260 = vmatpush1.msra.mxu0 0.0
        %4261 = vmatprep.subr.mxu0 0.0
        %4262 = vmatpush1.msra.mxu0 0.0
        %4263 = vmatprep.subr.mxu0 0.0
        %4264 = vmatpush1.msra.mxu0 0.0
        %4265 = vmatprep.subr.mxu0 0.0
        %4266 = vmatpush1.msra.mxu0 0.0
        %4267 = vmatprep.subr.mxu0 0.0
        %4268 = vmatpush1.msra.mxu0 0.0
        %4269 = vmatprep.mubr.f32.mxu0 0.0
        %4270 = vmatmul.mubr.f32.gmra.mrb[0].mxu0 %v4132
        %v4271 = vpop.f32.mrb[0].mxu0
        %v4272 = vadd.f32 0.0, %v4271
        %v4273 = vpop.f32.mrb[0].mxu0
        %v4274 = vadd.f32 0.0, %v4273
        %4275 = vdwg.mxu0
        %v4276 = vadd.f32 %v4062, %v4201
        %v4277 = vadd.f32 %v4063, %v4203
        %v4278 = vadd.f32 %v4064, %v4272
        %v4279 = vadd.f32 %v4065, %v4274
        %s4280 = scalar_lea.vmem %s2, 67
        %v4281 = vld [vmem:[%s4280] ss:$8 sm:$0xf]
        %v4283 = vlaneseq
        %v4284 = vshrl.u32 %v4283, 7
        %v4285 = vsub.s32 0, %v4284
        %v4286 = vrot.slane %v4281, %v4285
        %v4287 = vlaneseq
        %v4288 = vshrl.u32 %v4287, 7
        %v4289 = vsub.s32 1, %v4288
        %v4290 = vrot.slane %v4281, %v4289
        %v4291 = vlaneseq
        %v4292 = vshrl.u32 %v4291, 7
        %v4293 = vsub.s32 2, %v4292
        %v4294 = vrot.slane %v4281, %v4293
        %v4295 = vlaneseq
        %v4296 = vshrl.u32 %v4295, 7
        %v4297 = vsub.s32 3, %v4296
        %v4298 = vrot.slane %v4281, %v4297
        %4299 = vrot.lane.b32.xlu0 %v4286, 56
        %v4300 = vpop.permute.xlu0 %4299
        %4301 = vrot.lane.b32.xlu0 %v4290, 56
        %v4302 = vpop.permute.xlu0 %4301
        %4303 = vrot.lane.b32.xlu0 %v4294, 56
        %v4304 = vpop.permute.xlu0 %4303
        %4305 = vrot.lane.b32.xlu0 %v4298, 56
        %v4306 = vpop.permute.xlu0 %4305
        %v4307 = vsel %vm333, %v4300, %v4302
        %v4308 = vsel %vm333, %v4302, %v4304
        %v4309 = vsel %vm333, %v4304, %v4306
        %v4315 = vmul.f32 %v3205, %v4300
        %v4316 = vmul.f32 %v3206, %v4307
        %v4317 = vmul.f32 %v3207, %v4308
        %v4318 = vmul.f32 %v3208, %v4309
        %v4319 = vmul.f32 %v3209, %v4306
        %s4320 = scalar_lea.vmem %s1, 152
        %v4321 = vld [vmem:[%s4320] sm:$0xff]
        %4327 = vrot.lane.b32.xlu0 %v4315, 72
        %v4328 = vpop.permute.xlu0 %4327
        %4329 = vrot.lane.b32.xlu0 %v4316, 72
        %v4330 = vpop.permute.xlu0 %4329
        %4331 = vrot.lane.b32.xlu0 %v4317, 72
        %v4332 = vpop.permute.xlu0 %4331
        %4333 = vrot.lane.b32.xlu0 %v4318, 72
        %v4334 = vpop.permute.xlu0 %4333
        %4335 = vrot.lane.b32.xlu0 %v4319, 72
        %v4336 = vpop.permute.xlu0 %4335
        %v4337 = vsel %vm364, %v4328, %v4330
        %v4338 = vsel %vm364, %v4330, %v4332
        %v4339 = vsel %vm364, %v4332, %v4334
        %v4340 = vsel %vm364, %v4334, %v4336
        %v4346 = vsel %vm373, %v4321, 0
        %4348 = vmatprep.subr.mxu0 %v4338
        %4349 = vmatpush1.msra.mxu0 %v4337
        %4350 = vmatprep.subr.mxu0 0.0
        %4351 = vmatpush1.msra.mxu0 0.0
        %4352 = vmatprep.subr.mxu0 0.0
        %4353 = vmatpush1.msra.mxu0 0.0
        %4354 = vmatprep.subr.mxu0 0.0
        %4355 = vmatpush1.msra.mxu0 0.0
        %4356 = vmatprep.subr.mxu0 0.0
        %4357 = vmatpush1.msra.mxu0 0.0
        %4358 = vmatprep.subr.mxu0 0.0
        %4359 = vmatpush1.msra.mxu0 0.0
        %4360 = vmatprep.subr.mxu0 0.0
        %4361 = vmatpush1.msra.mxu0 0.0
        %4362 = vmatprep.subr.mxu0 0.0
        %4363 = vmatpush1.msra.mxu0 0.0
        %4364 = vmatprep.subr.mxu0 0.0
        %4365 = vmatpush1.msra.mxu0 0.0
        %4366 = vmatprep.subr.mxu0 0.0
        %4367 = vmatpush1.msra.mxu0 0.0
        %4368 = vmatprep.subr.mxu0 0.0
        %4369 = vmatpush1.msra.mxu0 0.0
        %4370 = vmatprep.subr.mxu0 0.0
        %4371 = vmatpush1.msra.mxu0 0.0
        %4372 = vmatprep.subr.mxu0 0.0
        %4373 = vmatpush1.msra.mxu0 0.0
        %4374 = vmatprep.subr.mxu0 0.0
        %4375 = vmatpush1.msra.mxu0 0.0
        %4376 = vmatprep.subr.mxu0 0.0
        %4377 = vmatpush1.msra.mxu0 0.0
        %4378 = vmatprep.subr.mxu0 0.0
        %4379 = vmatpush1.msra.mxu0 0.0
        %4380 = vmatprep.subr.mxu0 0.0
        %4381 = vmatpush1.msra.mxu0 0.0
        %4382 = vmatprep.subr.mxu0 0.0
        %4383 = vmatpush1.msra.mxu0 0.0
        %4384 = vmatprep.subr.mxu0 0.0
        %4385 = vmatpush1.msra.mxu0 0.0
        %4386 = vmatprep.subr.mxu0 0.0
        %4387 = vmatpush1.msra.mxu0 0.0
        %4388 = vmatprep.subr.mxu0 0.0
        %4389 = vmatpush1.msra.mxu0 0.0
        %4390 = vmatprep.subr.mxu0 0.0
        %4391 = vmatpush1.msra.mxu0 0.0
        %4392 = vmatprep.subr.mxu0 0.0
        %4393 = vmatpush1.msra.mxu0 0.0
        %4394 = vmatprep.subr.mxu0 0.0
        %4395 = vmatpush1.msra.mxu0 0.0
        %4396 = vmatprep.subr.mxu0 0.0
        %4397 = vmatpush1.msra.mxu0 0.0
        %4398 = vmatprep.subr.mxu0 0.0
        %4399 = vmatpush1.msra.mxu0 0.0
        %4400 = vmatprep.subr.mxu0 0.0
        %4401 = vmatpush1.msra.mxu0 0.0
        %4402 = vmatprep.subr.mxu0 0.0
        %4403 = vmatpush1.msra.mxu0 0.0
        %4404 = vmatprep.subr.mxu0 0.0
        %4405 = vmatpush1.msra.mxu0 0.0
        %4406 = vmatprep.subr.mxu0 0.0
        %4407 = vmatpush1.msra.mxu0 0.0
        %4408 = vmatprep.subr.mxu0 0.0
        %4409 = vmatpush1.msra.mxu0 0.0
        %4410 = vmatprep.subr.mxu0 0.0
        %4411 = vmatpush1.msra.mxu0 0.0
        %4412 = vmatprep.mubr.f32.mxu0 0.0
        %4413 = vmatmul.mubr.f32.gmra.mrb[0].mxu0 %v4346
        %v4414 = vpop.f32.mrb[0].mxu0
        %v4415 = vadd.f32 0.0, %v4414
        %v4416 = vpop.f32.mrb[0].mxu0
        %v4417 = vadd.f32 0.0, %v4416
        %4418 = vdwg.mxu0
        %4419 = vmatprep.subr.mxu0 %v4340
        %4420 = vmatpush1.msra.mxu0 %v4339
        %4421 = vmatprep.subr.mxu0 0.0
        %4422 = vmatpush1.msra.mxu0 0.0
        %4423 = vmatprep.subr.mxu0 0.0
        %4424 = vmatpush1.msra.mxu0 0.0
        %4425 = vmatprep.subr.mxu0 0.0
        %4426 = vmatpush1.msra.mxu0 0.0
        %4427 = vmatprep.subr.mxu0 0.0
        %4428 = vmatpush1.msra.mxu0 0.0
        %4429 = vmatprep.subr.mxu0 0.0
        %4430 = vmatpush1.msra.mxu0 0.0
        %4431 = vmatprep.subr.mxu0 0.0
        %4432 = vmatpush1.msra.mxu0 0.0
        %4433 = vmatprep.subr.mxu0 0.0
        %4434 = vmatpush1.msra.mxu0 0.0
        %4435 = vmatprep.subr.mxu0 0.0
        %4436 = vmatpush1.msra.mxu0 0.0
        %4437 = vmatprep.subr.mxu0 0.0
        %4438 = vmatpush1.msra.mxu0 0.0
        %4439 = vmatprep.subr.mxu0 0.0
        %4440 = vmatpush1.msra.mxu0 0.0
        %4441 = vmatprep.subr.mxu0 0.0
        %4442 = vmatpush1.msra.mxu0 0.0
        %4443 = vmatprep.subr.mxu0 0.0
        %4444 = vmatpush1.msra.mxu0 0.0
        %4445 = vmatprep.subr.mxu0 0.0
        %4446 = vmatpush1.msra.mxu0 0.0
        %4447 = vmatprep.subr.mxu0 0.0
        %4448 = vmatpush1.msra.mxu0 0.0
        %4449 = vmatprep.subr.mxu0 0.0
        %4450 = vmatpush1.msra.mxu0 0.0
        %4451 = vmatprep.subr.mxu0 0.0
        %4452 = vmatpush1.msra.mxu0 0.0
        %4453 = vmatprep.subr.mxu0 0.0
        %4454 = vmatpush1.msra.mxu0 0.0
        %4455 = vmatprep.subr.mxu0 0.0
        %4456 = vmatpush1.msra.mxu0 0.0
        %4457 = vmatprep.subr.mxu0 0.0
        %4458 = vmatpush1.msra.mxu0 0.0
        %4459 = vmatprep.subr.mxu0 0.0
        %4460 = vmatpush1.msra.mxu0 0.0
        %4461 = vmatprep.subr.mxu0 0.0
        %4462 = vmatpush1.msra.mxu0 0.0
        %4463 = vmatprep.subr.mxu0 0.0
        %4464 = vmatpush1.msra.mxu0 0.0
        %4465 = vmatprep.subr.mxu0 0.0
        %4466 = vmatpush1.msra.mxu0 0.0
        %4467 = vmatprep.subr.mxu0 0.0
        %4468 = vmatpush1.msra.mxu0 0.0
        %4469 = vmatprep.subr.mxu0 0.0
        %4470 = vmatpush1.msra.mxu0 0.0
        %4471 = vmatprep.subr.mxu0 0.0
        %4472 = vmatpush1.msra.mxu0 0.0
        %4473 = vmatprep.subr.mxu0 0.0
        %4474 = vmatpush1.msra.mxu0 0.0
        %4475 = vmatprep.subr.mxu0 0.0
        %4476 = vmatpush1.msra.mxu0 0.0
        %4477 = vmatprep.subr.mxu0 0.0
        %4478 = vmatpush1.msra.mxu0 0.0
        %4479 = vmatprep.subr.mxu0 0.0
        %4480 = vmatpush1.msra.mxu0 0.0
        %4481 = vmatprep.subr.mxu0 0.0
        %4482 = vmatpush1.msra.mxu0 0.0
        %4483 = vmatprep.mubr.f32.mxu0 0.0
        %4484 = vmatmul.mubr.f32.gmra.mrb[0].mxu0 %v4346
        %v4485 = vpop.f32.mrb[0].mxu0
        %v4486 = vadd.f32 0.0, %v4485
        %v4487 = vpop.f32.mrb[0].mxu0
        %v4488 = vadd.f32 0.0, %v4487
        %4489 = vdwg.mxu0
        %v4490 = vadd.f32 %v4276, %v4415
        %v4491 = vadd.f32 %v4277, %v4417
        %v4492 = vadd.f32 %v4278, %v4486
        %v4493 = vadd.f32 %v4279, %v4488
        %s4494 = scalar_lea.vmem %s2, 68
        %v4495 = vld [vmem:[%s4494] ss:$8 sm:$0xf]
        %v4497 = vlaneseq
        %v4498 = vshrl.u32 %v4497, 7
        %v4499 = vsub.s32 0, %v4498
        %v4500 = vrot.slane %v4495, %v4499
        %v4501 = vlaneseq
        %v4502 = vshrl.u32 %v4501, 7
        %v4503 = vsub.s32 1, %v4502
        %v4504 = vrot.slane %v4495, %v4503
        %v4505 = vlaneseq
        %v4506 = vshrl.u32 %v4505, 7
        %v4507 = vsub.s32 2, %v4506
        %v4508 = vrot.slane %v4495, %v4507
        %v4509 = vlaneseq
        %v4510 = vshrl.u32 %v4509, 7
        %v4511 = vsub.s32 3, %v4510
        %v4512 = vrot.slane %v4495, %v4511
        %4513 = vrot.lane.b32.xlu0 %v4500, 57
        %v4514 = vpop.permute.xlu0 %4513
        %4515 = vrot.lane.b32.xlu0 %v4504, 57
        %v4516 = vpop.permute.xlu0 %4515
        %4517 = vrot.lane.b32.xlu0 %v4508, 57
        %v4518 = vpop.permute.xlu0 %4517
        %4519 = vrot.lane.b32.xlu0 %v4512, 57
        %v4520 = vpop.permute.xlu0 %4519
        %v4521 = vsel %vm715, %v4514, %v4516
        %v4522 = vsel %vm715, %v4516, %v4518
        %v4523 = vsel %vm715, %v4518, %v4520
        %v4529 = vmul.f32 %v3205, %v4514
        %v4530 = vmul.f32 %v3206, %v4521
        %v4531 = vmul.f32 %v3207, %v4522
        %v4532 = vmul.f32 %v3208, %v4523
        %v4533 = vmul.f32 %v3209, %v4520
        %s4534 = scalar_lea.vmem %s1, 160
        %v4535 = vld [vmem:[%s4534] sm:$0xff]
        %4541 = vrot.lane.b32.xlu0 %v4529, 71
        %v4542 = vpop.permute.xlu0 %4541
        %4543 = vrot.lane.b32.xlu0 %v4530, 71
        %v4544 = vpop.permute.xlu0 %4543
        %4545 = vrot.lane.b32.xlu0 %v4531, 71
        %v4546 = vpop.permute.xlu0 %4545
        %4547 = vrot.lane.b32.xlu0 %v4532, 71
        %v4548 = vpop.permute.xlu0 %4547
        %4549 = vrot.lane.b32.xlu0 %v4533, 71
        %v4550 = vpop.permute.xlu0 %4549
        %v4551 = vsel %vm746, %v4542, %v4544
        %v4552 = vsel %vm746, %v4544, %v4546
        %v4553 = vsel %vm746, %v4546, %v4548
        %v4554 = vsel %vm746, %v4548, %v4550
        %v4560 = vsel %vm373, %v4535, 0
        %4562 = vmatprep.subr.mxu0 %v4552
        %4563 = vmatpush1.msra.mxu0 %v4551
        %4564 = vmatprep.subr.mxu0 0.0
        %4565 = vmatpush1.msra.mxu0 0.0
        %4566 = vmatprep.subr.mxu0 0.0
        %4567 = vmatpush1.msra.mxu0 0.0
        %4568 = vmatprep.subr.mxu0 0.0
        %4569 = vmatpush1.msra.mxu0 0.0
        %4570 = vmatprep.subr.mxu0 0.0
        %4571 = vmatpush1.msra.mxu0 0.0
        %4572 = vmatprep.subr.mxu0 0.0
        %4573 = vmatpush1.msra.mxu0 0.0
        %4574 = vmatprep.subr.mxu0 0.0
        %4575 = vmatpush1.msra.mxu0 0.0
        %4576 = vmatprep.subr.mxu0 0.0
        %4577 = vmatpush1.msra.mxu0 0.0
        %4578 = vmatprep.subr.mxu0 0.0
        %4579 = vmatpush1.msra.mxu0 0.0
        %4580 = vmatprep.subr.mxu0 0.0
        %4581 = vmatpush1.msra.mxu0 0.0
        %4582 = vmatprep.subr.mxu0 0.0
        %4583 = vmatpush1.msra.mxu0 0.0
        %4584 = vmatprep.subr.mxu0 0.0
        %4585 = vmatpush1.msra.mxu0 0.0
        %4586 = vmatprep.subr.mxu0 0.0
        %4587 = vmatpush1.msra.mxu0 0.0
        %4588 = vmatprep.subr.mxu0 0.0
        %4589 = vmatpush1.msra.mxu0 0.0
        %4590 = vmatprep.subr.mxu0 0.0
        %4591 = vmatpush1.msra.mxu0 0.0
        %4592 = vmatprep.subr.mxu0 0.0
        %4593 = vmatpush1.msra.mxu0 0.0
        %4594 = vmatprep.subr.mxu0 0.0
        %4595 = vmatpush1.msra.mxu0 0.0
        %4596 = vmatprep.subr.mxu0 0.0
        %4597 = vmatpush1.msra.mxu0 0.0
        %4598 = vmatprep.subr.mxu0 0.0
        %4599 = vmatpush1.msra.mxu0 0.0
        %4600 = vmatprep.subr.mxu0 0.0
        %4601 = vmatpush1.msra.mxu0 0.0
        %4602 = vmatprep.subr.mxu0 0.0
        %4603 = vmatpush1.msra.mxu0 0.0
        %4604 = vmatprep.subr.mxu0 0.0
        %4605 = vmatpush1.msra.mxu0 0.0
        %4606 = vmatprep.subr.mxu0 0.0
        %4607 = vmatpush1.msra.mxu0 0.0
        %4608 = vmatprep.subr.mxu0 0.0
        %4609 = vmatpush1.msra.mxu0 0.0
        %4610 = vmatprep.subr.mxu0 0.0
        %4611 = vmatpush1.msra.mxu0 0.0
        %4612 = vmatprep.subr.mxu0 0.0
        %4613 = vmatpush1.msra.mxu0 0.0
        %4614 = vmatprep.subr.mxu0 0.0
        %4615 = vmatpush1.msra.mxu0 0.0
        %4616 = vmatprep.subr.mxu0 0.0
        %4617 = vmatpush1.msra.mxu0 0.0
        %4618 = vmatprep.subr.mxu0 0.0
        %4619 = vmatpush1.msra.mxu0 0.0
        %4620 = vmatprep.subr.mxu0 0.0
        %4621 = vmatpush1.msra.mxu0 0.0
        %4622 = vmatprep.subr.mxu0 0.0
        %4623 = vmatpush1.msra.mxu0 0.0
        %4624 = vmatprep.subr.mxu0 0.0
        %4625 = vmatpush1.msra.mxu0 0.0
        %4626 = vmatprep.mubr.f32.mxu0 0.0
        %4627 = vmatmul.mubr.f32.gmra.mrb[0].mxu0 %v4560
        %v4628 = vpop.f32.mrb[0].mxu0
        %v4629 = vadd.f32 0.0, %v4628
        %v4630 = vpop.f32.mrb[0].mxu0
        %v4631 = vadd.f32 0.0, %v4630
        %4632 = vdwg.mxu0
        %4633 = vmatprep.subr.mxu0 %v4554
        %4634 = vmatpush1.msra.mxu0 %v4553
        %4635 = vmatprep.subr.mxu0 0.0
        %4636 = vmatpush1.msra.mxu0 0.0
        %4637 = vmatprep.subr.mxu0 0.0
        %4638 = vmatpush1.msra.mxu0 0.0
        %4639 = vmatprep.subr.mxu0 0.0
        %4640 = vmatpush1.msra.mxu0 0.0
        %4641 = vmatprep.subr.mxu0 0.0
        %4642 = vmatpush1.msra.mxu0 0.0
        %4643 = vmatprep.subr.mxu0 0.0
        %4644 = vmatpush1.msra.mxu0 0.0
        %4645 = vmatprep.subr.mxu0 0.0
        %4646 = vmatpush1.msra.mxu0 0.0
        %4647 = vmatprep.subr.mxu0 0.0
        %4648 = vmatpush1.msra.mxu0 0.0
        %4649 = vmatprep.subr.mxu0 0.0
        %4650 = vmatpush1.msra.mxu0 0.0
        %4651 = vmatprep.subr.mxu0 0.0
        %4652 = vmatpush1.msra.mxu0 0.0
        %4653 = vmatprep.subr.mxu0 0.0
        %4654 = vmatpush1.msra.mxu0 0.0
        %4655 = vmatprep.subr.mxu0 0.0
        %4656 = vmatpush1.msra.mxu0 0.0
        %4657 = vmatprep.subr.mxu0 0.0
        %4658 = vmatpush1.msra.mxu0 0.0
        %4659 = vmatprep.subr.mxu0 0.0
        %4660 = vmatpush1.msra.mxu0 0.0
        %4661 = vmatprep.subr.mxu0 0.0
        %4662 = vmatpush1.msra.mxu0 0.0
        %4663 = vmatprep.subr.mxu0 0.0
        %4664 = vmatpush1.msra.mxu0 0.0
        %4665 = vmatprep.subr.mxu0 0.0
        %4666 = vmatpush1.msra.mxu0 0.0
        %4667 = vmatprep.subr.mxu0 0.0
        %4668 = vmatpush1.msra.mxu0 0.0
        %4669 = vmatprep.subr.mxu0 0.0
        %4670 = vmatpush1.msra.mxu0 0.0
        %4671 = vmatprep.subr.mxu0 0.0
        %4672 = vmatpush1.msra.mxu0 0.0
        %4673 = vmatprep.subr.mxu0 0.0
        %4674 = vmatpush1.msra.mxu0 0.0
        %4675 = vmatprep.subr.mxu0 0.0
        %4676 = vmatpush1.msra.mxu0 0.0
        %4677 = vmatprep.subr.mxu0 0.0
        %4678 = vmatpush1.msra.mxu0 0.0
        %4679 = vmatprep.subr.mxu0 0.0
        %4680 = vmatpush1.msra.mxu0 0.0
        %4681 = vmatprep.subr.mxu0 0.0
        %4682 = vmatpush1.msra.mxu0 0.0
        %4683 = vmatprep.subr.mxu0 0.0
        %4684 = vmatpush1.msra.mxu0 0.0
        %4685 = vmatprep.subr.mxu0 0.0
        %4686 = vmatpush1.msra.mxu0 0.0
        %4687 = vmatprep.subr.mxu0 0.0
        %4688 = vmatpush1.msra.mxu0 0.0
        %4689 = vmatprep.subr.mxu0 0.0
        %4690 = vmatpush1.msra.mxu0 0.0
        %4691 = vmatprep.subr.mxu0 0.0
        %4692 = vmatpush1.msra.mxu0 0.0
        %4693 = vmatprep.subr.mxu0 0.0
        %4694 = vmatpush1.msra.mxu0 0.0
        %4695 = vmatprep.subr.mxu0 0.0
        %4696 = vmatpush1.msra.mxu0 0.0
        %4697 = vmatprep.mubr.f32.mxu0 0.0
        %4698 = vmatmul.mubr.f32.gmra.mrb[0].mxu0 %v4560
        %v4699 = vpop.f32.mrb[0].mxu0
        %v4700 = vadd.f32 0.0, %v4699
        %v4701 = vpop.f32.mrb[0].mxu0
        %v4702 = vadd.f32 0.0, %v4701
        %4703 = vdwg.mxu0
        %v4704 = vadd.f32 %v4490, %v4629
        %v4705 = vadd.f32 %v4491, %v4631
        %v4706 = vadd.f32 %v4492, %v4700
        %v4707 = vadd.f32 %v4493, %v4702
        %s4708 = scalar_lea.vmem %s2, 69
        %v4709 = vld [vmem:[%s4708] ss:$8 sm:$0xf]
        %v4711 = vlaneseq
        %v4712 = vshrl.u32 %v4711, 7
        %v4713 = vsub.s32 0, %v4712
        %v4714 = vrot.slane %v4709, %v4713
        %v4715 = vlaneseq
        %v4716 = vshrl.u32 %v4715, 7
        %v4717 = vsub.s32 1, %v4716
        %v4718 = vrot.slane %v4709, %v4717
        %v4719 = vlaneseq
        %v4720 = vshrl.u32 %v4719, 7
        %v4721 = vsub.s32 2, %v4720
        %v4722 = vrot.slane %v4709, %v4721
        %v4723 = vlaneseq
        %v4724 = vshrl.u32 %v4723, 7
        %v4725 = vsub.s32 3, %v4724
        %v4726 = vrot.slane %v4709, %v4725
        %4727 = vrot.lane.b32.xlu0 %v4714, 63
        %v4728 = vpop.permute.xlu0 %4727
        %4729 = vrot.lane.b32.xlu0 %v4718, 63
        %v4730 = vpop.permute.xlu0 %4729
        %4731 = vrot.lane.b32.xlu0 %v4722, 63
        %v4732 = vpop.permute.xlu0 %4731
        %4733 = vrot.lane.b32.xlu0 %v4726, 63
        %v4734 = vpop.permute.xlu0 %4733
        %v4735 = vsel %vm931, %v4728, %v4730
        %v4736 = vsel %vm931, %v4730, %v4732
        %v4737 = vsel %vm931, %v4732, %v4734
        %v4743 = vmul.f32 %v3205, %v4728
        %v4744 = vmul.f32 %v3206, %v4735
        %v4745 = vmul.f32 %v3207, %v4736
        %v4746 = vmul.f32 %v3208, %v4737
        %v4747 = vmul.f32 %v3209, %v4734
        %s4748 = scalar_lea.vmem %s1, 168
        %v4749 = vld [vmem:[%s4748] sm:$0xff]
        %4755 = vrot.lane.b32.xlu0 %v4743, 65
        %v4756 = vpop.permute.xlu0 %4755
        %4757 = vrot.lane.b32.xlu0 %v4744, 65
        %v4758 = vpop.permute.xlu0 %4757
        %4759 = vrot.lane.b32.xlu0 %v4745, 65
        %v4760 = vpop.permute.xlu0 %4759
        %4761 = vrot.lane.b32.xlu0 %v4746, 65
        %v4762 = vpop.permute.xlu0 %4761
        %4763 = vrot.lane.b32.xlu0 %v4747, 65
        %v4764 = vpop.permute.xlu0 %4763
        %v4765 = vsel %vm962, %v4756, %v4758
        %v4766 = vsel %vm962, %v4758, %v4760
        %v4767 = vsel %vm962, %v4760, %v4762
        %v4768 = vsel %vm962, %v4762, %v4764
        %v4774 = vsel %vm373, %v4749, 0
        %4776 = vmatprep.subr.mxu0 %v4766
        %4777 = vmatpush1.msra.mxu0 %v4765
        %4778 = vmatprep.subr.mxu0 0.0
        %4779 = vmatpush1.msra.mxu0 0.0
        %4780 = vmatprep.subr.mxu0 0.0
        %4781 = vmatpush1.msra.mxu0 0.0
        %4782 = vmatprep.subr.mxu0 0.0
        %4783 = vmatpush1.msra.mxu0 0.0
        %4784 = vmatprep.subr.mxu0 0.0
        %4785 = vmatpush1.msra.mxu0 0.0
        %4786 = vmatprep.subr.mxu0 0.0
        %4787 = vmatpush1.msra.mxu0 0.0
        %4788 = vmatprep.subr.mxu0 0.0
        %4789 = vmatpush1.msra.mxu0 0.0
        %4790 = vmatprep.subr.mxu0 0.0
        %4791 = vmatpush1.msra.mxu0 0.0
        %4792 = vmatprep.subr.mxu0 0.0
        %4793 = vmatpush1.msra.mxu0 0.0
        %4794 = vmatprep.subr.mxu0 0.0
        %4795 = vmatpush1.msra.mxu0 0.0
        %4796 = vmatprep.subr.mxu0 0.0
        %4797 = vmatpush1.msra.mxu0 0.0
        %4798 = vmatprep.subr.mxu0 0.0
        %4799 = vmatpush1.msra.mxu0 0.0
        %4800 = vmatprep.subr.mxu0 0.0
        %4801 = vmatpush1.msra.mxu0 0.0
        %4802 = vmatprep.subr.mxu0 0.0
        %4803 = vmatpush1.msra.mxu0 0.0
        %4804 = vmatprep.subr.mxu0 0.0
        %4805 = vmatpush1.msra.mxu0 0.0
        %4806 = vmatprep.subr.mxu0 0.0
        %4807 = vmatpush1.msra.mxu0 0.0
        %4808 = vmatprep.subr.mxu0 0.0
        %4809 = vmatpush1.msra.mxu0 0.0
        %4810 = vmatprep.subr.mxu0 0.0
        %4811 = vmatpush1.msra.mxu0 0.0
        %4812 = vmatprep.subr.mxu0 0.0
        %4813 = vmatpush1.msra.mxu0 0.0
        %4814 = vmatprep.subr.mxu0 0.0
        %4815 = vmatpush1.msra.mxu0 0.0
        %4816 = vmatprep.subr.mxu0 0.0
        %4817 = vmatpush1.msra.mxu0 0.0
        %4818 = vmatprep.subr.mxu0 0.0
        %4819 = vmatpush1.msra.mxu0 0.0
        %4820 = vmatprep.subr.mxu0 0.0
        %4821 = vmatpush1.msra.mxu0 0.0
        %4822 = vmatprep.subr.mxu0 0.0
        %4823 = vmatpush1.msra.mxu0 0.0
        %4824 = vmatprep.subr.mxu0 0.0
        %4825 = vmatpush1.msra.mxu0 0.0
        %4826 = vmatprep.subr.mxu0 0.0
        %4827 = vmatpush1.msra.mxu0 0.0
        %4828 = vmatprep.subr.mxu0 0.0
        %4829 = vmatpush1.msra.mxu0 0.0
        %4830 = vmatprep.subr.mxu0 0.0
        %4831 = vmatpush1.msra.mxu0 0.0
        %4832 = vmatprep.subr.mxu0 0.0
        %4833 = vmatpush1.msra.mxu0 0.0
        %4834 = vmatprep.subr.mxu0 0.0
        %4835 = vmatpush1.msra.mxu0 0.0
        %4836 = vmatprep.subr.mxu0 0.0
        %4837 = vmatpush1.msra.mxu0 0.0
        %4838 = vmatprep.subr.mxu0 0.0
        %4839 = vmatpush1.msra.mxu0 0.0
        %4840 = vmatprep.mubr.f32.mxu0 0.0
        %4841 = vmatmul.mubr.f32.gmra.mrb[0].mxu0 %v4774
        %v4842 = vpop.f32.mrb[0].mxu0
        %v4843 = vadd.f32 0.0, %v4842
        %v4844 = vpop.f32.mrb[0].mxu0
        %v4845 = vadd.f32 0.0, %v4844
        %4846 = vdwg.mxu0
        %4847 = vmatprep.subr.mxu0 %v4768
        %4848 = vmatpush1.msra.mxu0 %v4767
        %4849 = vmatprep.subr.mxu0 0.0
        %4850 = vmatpush1.msra.mxu0 0.0
        %4851 = vmatprep.subr.mxu0 0.0
        %4852 = vmatpush1.msra.mxu0 0.0
        %4853 = vmatprep.subr.mxu0 0.0
        %4854 = vmatpush1.msra.mxu0 0.0
        %4855 = vmatprep.subr.mxu0 0.0
        %4856 = vmatpush1.msra.mxu0 0.0
        %4857 = vmatprep.subr.mxu0 0.0
        %4858 = vmatpush1.msra.mxu0 0.0
        %4859 = vmatprep.subr.mxu0 0.0
        %4860 = vmatpush1.msra.mxu0 0.0
        %4861 = vmatprep.subr.mxu0 0.0
        %4862 = vmatpush1.msra.mxu0 0.0
        %4863 = vmatprep.subr.mxu0 0.0
        %4864 = vmatpush1.msra.mxu0 0.0
        %4865 = vmatprep.subr.mxu0 0.0
        %4866 = vmatpush1.msra.mxu0 0.0
        %4867 = vmatprep.subr.mxu0 0.0
        %4868 = vmatpush1.msra.mxu0 0.0
        %4869 = vmatprep.subr.mxu0 0.0
        %4870 = vmatpush1.msra.mxu0 0.0
        %4871 = vmatprep.subr.mxu0 0.0
        %4872 = vmatpush1.msra.mxu0 0.0
        %4873 = vmatprep.subr.mxu0 0.0
        %4874 = vmatpush1.msra.mxu0 0.0
        %4875 = vmatprep.subr.mxu0 0.0
        %4876 = vmatpush1.msra.mxu0 0.0
        %4877 = vmatprep.subr.mxu0 0.0
        %4878 = vmatpush1.msra.mxu0 0.0
        %4879 = vmatprep.subr.mxu0 0.0
        %4880 = vmatpush1.msra.mxu0 0.0
        %4881 = vmatprep.subr.mxu0 0.0
        %4882 = vmatpush1.msra.mxu0 0.0
        %4883 = vmatprep.subr.mxu0 0.0
        %4884 = vmatpush1.msra.mxu0 0.0
        %4885 = vmatprep.subr.mxu0 0.0
        %4886 = vmatpush1.msra.mxu0 0.0
        %4887 = vmatprep.subr.mxu0 0.0
        %4888 = vmatpush1.msra.mxu0 0.0
        %4889 = vmatprep.subr.mxu0 0.0
        %4890 = vmatpush1.msra.mxu0 0.0
        %4891 = vmatprep.subr.mxu0 0.0
        %4892 = vmatpush1.msra.mxu0 0.0
        %4893 = vmatprep.subr.mxu0 0.0
        %4894 = vmatpush1.msra.mxu0 0.0
        %4895 = vmatprep.subr.mxu0 0.0
        %4896 = vmatpush1.msra.mxu0 0.0
        %4897 = vmatprep.subr.mxu0 0.0
        %4898 = vmatpush1.msra.mxu0 0.0
        %4899 = vmatprep.subr.mxu0 0.0
        %4900 = vmatpush1.msra.mxu0 0.0
        %4901 = vmatprep.subr.mxu0 0.0
        %4902 = vmatpush1.msra.mxu0 0.0
        %4903 = vmatprep.subr.mxu0 0.0
        %4904 = vmatpush1.msra.mxu0 0.0
        %4905 = vmatprep.subr.mxu0 0.0
        %4906 = vmatpush1.msra.mxu0 0.0
        %4907 = vmatprep.subr.mxu0 0.0
        %4908 = vmatpush1.msra.mxu0 0.0
        %4909 = vmatprep.subr.mxu0 0.0
        %4910 = vmatpush1.msra.mxu0 0.0
        %4911 = vmatprep.mubr.f32.mxu0 0.0
        %4912 = vmatmul.mubr.f32.gmra.mrb[0].mxu0 %v4774
        %v4913 = vpop.f32.mrb[0].mxu0
        %v4914 = vadd.f32 0.0, %v4913
        %v4915 = vpop.f32.mrb[0].mxu0
        %v4916 = vadd.f32 0.0, %v4915
        %4917 = vdwg.mxu0
        %v4918 = vadd.f32 %v4704, %v4843
        %v4919 = vadd.f32 %v4705, %v4845
        %v4920 = vadd.f32 %v4706, %v4914
        %v4921 = vadd.f32 %v4707, %v4916
        %s4922 = scalar_lea.vmem %s2, 70
        %v4923 = vld [vmem:[%s4922] ss:$8 sm:$0xf]
        %v4925 = vlaneseq
        %v4926 = vshrl.u32 %v4925, 7
        %v4927 = vsub.s32 0, %v4926
        %v4928 = vrot.slane %v4923, %v4927
        %v4929 = vlaneseq
        %v4930 = vshrl.u32 %v4929, 7
        %v4931 = vsub.s32 1, %v4930
        %v4932 = vrot.slane %v4923, %v4931
        %v4933 = vlaneseq
        %v4934 = vshrl.u32 %v4933, 7
        %v4935 = vsub.s32 2, %v4934
        %v4936 = vrot.slane %v4923, %v4935
        %v4937 = vlaneseq
        %v4938 = vshrl.u32 %v4937, 7
        %v4939 = vsub.s32 3, %v4938
        %v4940 = vrot.slane %v4923, %v4939
        %4941 = vrot.lane.b32.xlu0 %v4928, 64
        %v4942 = vpop.permute.xlu0 %4941
        %4943 = vrot.lane.b32.xlu0 %v4932, 64
        %v4944 = vpop.permute.xlu0 %4943
        %4945 = vrot.lane.b32.xlu0 %v4936, 64
        %v4946 = vpop.permute.xlu0 %4945
        %4947 = vrot.lane.b32.xlu0 %v4940, 64
        %v4948 = vpop.permute.xlu0 %4947
        %v4949 = vsel %vm1147, %v4942, %v4944
        %v4950 = vsel %vm1147, %v4944, %v4946
        %v4951 = vsel %vm1147, %v4946, %v4948
        %v4957 = vmul.f32 %v3205, %v4942
        %v4958 = vmul.f32 %v3206, %v4949
        %v4959 = vmul.f32 %v3207, %v4950
        %v4960 = vmul.f32 %v3208, %v4951
        %v4961 = vmul.f32 %v3209, %v4948
        %s4962 = scalar_lea.vmem %s1, 176
        %v4963 = vld [vmem:[%s4962] sm:$0xff]
        %4969 = vrot.lane.b32.xlu0 %v4957, 64
        %v4970 = vpop.permute.xlu0 %4969
        %4971 = vrot.lane.b32.xlu0 %v4958, 64
        %v4972 = vpop.permute.xlu0 %4971
        %4973 = vrot.lane.b32.xlu0 %v4959, 64
        %v4974 = vpop.permute.xlu0 %4973
        %4975 = vrot.lane.b32.xlu0 %v4960, 64
        %v4976 = vpop.permute.xlu0 %4975
        %4977 = vrot.lane.b32.xlu0 %v4961, 64
        %v4978 = vpop.permute.xlu0 %4977
        %v4979 = vsel %vm1147, %v4970, %v4972
        %v4980 = vsel %vm1147, %v4972, %v4974
        %v4981 = vsel %vm1147, %v4974, %v4976
        %v4982 = vsel %vm1147, %v4976, %v4978
        %v4988 = vsel %vm373, %v4963, 0
        %4990 = vmatprep.subr.mxu0 %v4980
        %4991 = vmatpush1.msra.mxu0 %v4979
        %4992 = vmatprep.subr.mxu0 0.0
        %4993 = vmatpush1.msra.mxu0 0.0
        %4994 = vmatprep.subr.mxu0 0.0
        %4995 = vmatpush1.msra.mxu0 0.0
        %4996 = vmatprep.subr.mxu0 0.0
        %4997 = vmatpush1.msra.mxu0 0.0
        %4998 = vmatprep.subr.mxu0 0.0
        %4999 = vmatpush1.msra.mxu0 0.0
        %5000 = vmatprep.subr.mxu0 0.0
        %5001 = vmatpush1.msra.mxu0 0.0
        %5002 = vmatprep.subr.mxu0 0.0
        %5003 = vmatpush1.msra.mxu0 0.0
        %5004 = vmatprep.subr.mxu0 0.0
        %5005 = vmatpush1.msra.mxu0 0.0
        %5006 = vmatprep.subr.mxu0 0.0
        %5007 = vmatpush1.msra.mxu0 0.0
        %5008 = vmatprep.subr.mxu0 0.0
        %5009 = vmatpush1.msra.mxu0 0.0
        %5010 = vmatprep.subr.mxu0 0.0
        %5011 = vmatpush1.msra.mxu0 0.0
        %5012 = vmatprep.subr.mxu0 0.0
        %5013 = vmatpush1.msra.mxu0 0.0
        %5014 = vmatprep.subr.mxu0 0.0
        %5015 = vmatpush1.msra.mxu0 0.0
        %5016 = vmatprep.subr.mxu0 0.0
        %5017 = vmatpush1.msra.mxu0 0.0
        %5018 = vmatprep.subr.mxu0 0.0
        %5019 = vmatpush1.msra.mxu0 0.0
        %5020 = vmatprep.subr.mxu0 0.0
        %5021 = vmatpush1.msra.mxu0 0.0
        %5022 = vmatprep.subr.mxu0 0.0
        %5023 = vmatpush1.msra.mxu0 0.0
        %5024 = vmatprep.subr.mxu0 0.0
        %5025 = vmatpush1.msra.mxu0 0.0
        %5026 = vmatprep.subr.mxu0 0.0
        %5027 = vmatpush1.msra.mxu0 0.0
        %5028 = vmatprep.subr.mxu0 0.0
        %5029 = vmatpush1.msra.mxu0 0.0
        %5030 = vmatprep.subr.mxu0 0.0
        %5031 = vmatpush1.msra.mxu0 0.0
        %5032 = vmatprep.subr.mxu0 0.0
        %5033 = vmatpush1.msra.mxu0 0.0
        %5034 = vmatprep.subr.mxu0 0.0
        %5035 = vmatpush1.msra.mxu0 0.0
        %5036 = vmatprep.subr.mxu0 0.0
        %5037 = vmatpush1.msra.mxu0 0.0
        %5038 = vmatprep.subr.mxu0 0.0
        %5039 = vmatpush1.msra.mxu0 0.0
        %5040 = vmatprep.subr.mxu0 0.0
        %5041 = vmatpush1.msra.mxu0 0.0
        %5042 = vmatprep.subr.mxu0 0.0
        %5043 = vmatpush1.msra.mxu0 0.0
        %5044 = vmatprep.subr.mxu0 0.0
        %5045 = vmatpush1.msra.mxu0 0.0
        %5046 = vmatprep.subr.mxu0 0.0
        %5047 = vmatpush1.msra.mxu0 0.0
        %5048 = vmatprep.subr.mxu0 0.0
        %5049 = vmatpush1.msra.mxu0 0.0
        %5050 = vmatprep.subr.mxu0 0.0
        %5051 = vmatpush1.msra.mxu0 0.0
        %5052 = vmatprep.subr.mxu0 0.0
        %5053 = vmatpush1.msra.mxu0 0.0
        %5054 = vmatprep.mubr.f32.mxu0 0.0
        %5055 = vmatmul.mubr.f32.gmra.mrb[0].mxu0 %v4988
        %v5056 = vpop.f32.mrb[0].mxu0
        %v5057 = vadd.f32 0.0, %v5056
        %v5058 = vpop.f32.mrb[0].mxu0
        %v5059 = vadd.f32 0.0, %v5058
        %5060 = vdwg.mxu0
        %5061 = vmatprep.subr.mxu0 %v4982
        %5062 = vmatpush1.msra.mxu0 %v4981
        %5063 = vmatprep.subr.mxu0 0.0
        %5064 = vmatpush1.msra.mxu0 0.0
        %5065 = vmatprep.subr.mxu0 0.0
        %5066 = vmatpush1.msra.mxu0 0.0
        %5067 = vmatprep.subr.mxu0 0.0
        %5068 = vmatpush1.msra.mxu0 0.0
        %5069 = vmatprep.subr.mxu0 0.0
        %5070 = vmatpush1.msra.mxu0 0.0
        %5071 = vmatprep.subr.mxu0 0.0
        %5072 = vmatpush1.msra.mxu0 0.0
        %5073 = vmatprep.subr.mxu0 0.0
        %5074 = vmatpush1.msra.mxu0 0.0
        %5075 = vmatprep.subr.mxu0 0.0
        %5076 = vmatpush1.msra.mxu0 0.0
        %5077 = vmatprep.subr.mxu0 0.0
        %5078 = vmatpush1.msra.mxu0 0.0
        %5079 = vmatprep.subr.mxu0 0.0
        %5080 = vmatpush1.msra.mxu0 0.0
        %5081 = vmatprep.subr.mxu0 0.0
        %5082 = vmatpush1.msra.mxu0 0.0
        %5083 = vmatprep.subr.mxu0 0.0
        %5084 = vmatpush1.msra.mxu0 0.0
        %5085 = vmatprep.subr.mxu0 0.0
        %5086 = vmatpush1.msra.mxu0 0.0
        %5087 = vmatprep.subr.mxu0 0.0
        %5088 = vmatpush1.msra.mxu0 0.0
        %5089 = vmatprep.subr.mxu0 0.0
        %5090 = vmatpush1.msra.mxu0 0.0
        %5091 = vmatprep.subr.mxu0 0.0
        %5092 = vmatpush1.msra.mxu0 0.0
        %5093 = vmatprep.subr.mxu0 0.0
        %5094 = vmatpush1.msra.mxu0 0.0
        %5095 = vmatprep.subr.mxu0 0.0
        %5096 = vmatpush1.msra.mxu0 0.0
        %5097 = vmatprep.subr.mxu0 0.0
        %5098 = vmatpush1.msra.mxu0 0.0
        %5099 = vmatprep.subr.mxu0 0.0
        %5100 = vmatpush1.msra.mxu0 0.0
        %5101 = vmatprep.subr.mxu0 0.0
        %5102 = vmatpush1.msra.mxu0 0.0
        %5103 = vmatprep.subr.mxu0 0.0
        %5104 = vmatpush1.msra.mxu0 0.0
        %5105 = vmatprep.subr.mxu0 0.0
        %5106 = vmatpush1.msra.mxu0 0.0
        %5107 = vmatprep.subr.mxu0 0.0
        %5108 = vmatpush1.msra.mxu0 0.0
        %5109 = vmatprep.subr.mxu0 0.0
        %5110 = vmatpush1.msra.mxu0 0.0
        %5111 = vmatprep.subr.mxu0 0.0
        %5112 = vmatpush1.msra.mxu0 0.0
        %5113 = vmatprep.subr.mxu0 0.0
        %5114 = vmatpush1.msra.mxu0 0.0
        %5115 = vmatprep.subr.mxu0 0.0
        %5116 = vmatpush1.msra.mxu0 0.0
        %5117 = vmatprep.subr.mxu0 0.0
        %5118 = vmatpush1.msra.mxu0 0.0
        %5119 = vmatprep.subr.mxu0 0.0
        %5120 = vmatpush1.msra.mxu0 0.0
        %5121 = vmatprep.subr.mxu0 0.0
        %5122 = vmatpush1.msra.mxu0 0.0
        %5123 = vmatprep.subr.mxu0 0.0
        %5124 = vmatpush1.msra.mxu0 0.0
        %5125 = vmatprep.mubr.f32.mxu0 0.0
        %5126 = vmatmul.mubr.f32.gmra.mrb[0].mxu0 %v4988
        %v5127 = vpop.f32.mrb[0].mxu0
        %v5128 = vadd.f32 0.0, %v5127
        %v5129 = vpop.f32.mrb[0].mxu0
        %v5130 = vadd.f32 0.0, %v5129
        %5131 = vdwg.mxu0
        %v5132 = vadd.f32 %v4918, %v5057
        %v5133 = vadd.f32 %v4919, %v5059
        %v5134 = vadd.f32 %v4920, %v5128
        %v5135 = vadd.f32 %v4921, %v5130
        %s5136 = scalar_lea.vmem %s2, 71
        %v5137 = vld [vmem:[%s5136] ss:$8 sm:$0xf]
        %v5139 = vlaneseq
        %v5140 = vshrl.u32 %v5139, 7
        %v5141 = vsub.s32 0, %v5140
        %v5142 = vrot.slane %v5137, %v5141
        %v5143 = vlaneseq
        %v5144 = vshrl.u32 %v5143, 7
        %v5145 = vsub.s32 1, %v5144
        %v5146 = vrot.slane %v5137, %v5145
        %v5147 = vlaneseq
        %v5148 = vshrl.u32 %v5147, 7
        %v5149 = vsub.s32 2, %v5148
        %v5150 = vrot.slane %v5137, %v5149
        %v5151 = vlaneseq
        %v5152 = vshrl.u32 %v5151, 7
        %v5153 = vsub.s32 3, %v5152
        %v5154 = vrot.slane %v5137, %v5153
        %5155 = vrot.lane.b32.xlu0 %v5142, 65
        %v5156 = vpop.permute.xlu0 %5155
        %5157 = vrot.lane.b32.xlu0 %v5146, 65
        %v5158 = vpop.permute.xlu0 %5157
        %5159 = vrot.lane.b32.xlu0 %v5150, 65
        %v5160 = vpop.permute.xlu0 %5159
        %5161 = vrot.lane.b32.xlu0 %v5154, 65
        %v5162 = vpop.permute.xlu0 %5161
        %v5163 = vsel %vm962, %v5156, %v5158
        %v5164 = vsel %vm962, %v5158, %v5160
        %v5165 = vsel %vm962, %v5160, %v5162
        %v5171 = vmul.f32 %v3205, %v5156
        %v5172 = vmul.f32 %v3206, %v5163
        %v5173 = vmul.f32 %v3207, %v5164
        %v5174 = vmul.f32 %v3208, %v5165
        %v5175 = vmul.f32 %v3209, %v5162
        %s5176 = scalar_lea.vmem %s1, 184
        %v5177 = vld [vmem:[%s5176] sm:$0xff]
        %5183 = vrot.lane.b32.xlu0 %v5171, 63
        %v5184 = vpop.permute.xlu0 %5183
        %5185 = vrot.lane.b32.xlu0 %v5172, 63
        %v5186 = vpop.permute.xlu0 %5185
        %5187 = vrot.lane.b32.xlu0 %v5173, 63
        %v5188 = vpop.permute.xlu0 %5187
        %5189 = vrot.lane.b32.xlu0 %v5174, 63
        %v5190 = vpop.permute.xlu0 %5189
        %5191 = vrot.lane.b32.xlu0 %v5175, 63
        %v5192 = vpop.permute.xlu0 %5191
        %v5193 = vsel %vm931, %v5184, %v5186
        %v5194 = vsel %vm931, %v5186, %v5188
        %v5195 = vsel %vm931, %v5188, %v5190
        %v5196 = vsel %vm931, %v5190, %v5192
        %v5202 = vsel %vm373, %v5177, 0
        %5204 = vmatprep.subr.mxu0 %v5194
        %5205 = vmatpush1.msra.mxu0 %v5193
        %5206 = vmatprep.subr.mxu0 0.0
        %5207 = vmatpush1.msra.mxu0 0.0
        %5208 = vmatprep.subr.mxu0 0.0
        %5209 = vmatpush1.msra.mxu0 0.0
        %5210 = vmatprep.subr.mxu0 0.0
        %5211 = vmatpush1.msra.mxu0 0.0
        %5212 = vmatprep.subr.mxu0 0.0
        %5213 = vmatpush1.msra.mxu0 0.0
        %5214 = vmatprep.subr.mxu0 0.0
        %5215 = vmatpush1.msra.mxu0 0.0
        %5216 = vmatprep.subr.mxu0 0.0
        %5217 = vmatpush1.msra.mxu0 0.0
        %5218 = vmatprep.subr.mxu0 0.0
        %5219 = vmatpush1.msra.mxu0 0.0
        %5220 = vmatprep.subr.mxu0 0.0
        %5221 = vmatpush1.msra.mxu0 0.0
        %5222 = vmatprep.subr.mxu0 0.0
        %5223 = vmatpush1.msra.mxu0 0.0
        %5224 = vmatprep.subr.mxu0 0.0
        %5225 = vmatpush1.msra.mxu0 0.0
        %5226 = vmatprep.subr.mxu0 0.0
        %5227 = vmatpush1.msra.mxu0 0.0
        %5228 = vmatprep.subr.mxu0 0.0
        %5229 = vmatpush1.msra.mxu0 0.0
        %5230 = vmatprep.subr.mxu0 0.0
        %5231 = vmatpush1.msra.mxu0 0.0
        %5232 = vmatprep.subr.mxu0 0.0
        %5233 = vmatpush1.msra.mxu0 0.0
        %5234 = vmatprep.subr.mxu0 0.0
        %5235 = vmatpush1.msra.mxu0 0.0
        %5236 = vmatprep.subr.mxu0 0.0
        %5237 = vmatpush1.msra.mxu0 0.0
        %5238 = vmatprep.subr.mxu0 0.0
        %5239 = vmatpush1.msra.mxu0 0.0
        %5240 = vmatprep.subr.mxu0 0.0
        %5241 = vmatpush1.msra.mxu0 0.0
        %5242 = vmatprep.subr.mxu0 0.0
        %5243 = vmatpush1.msra.mxu0 0.0
        %5244 = vmatprep.subr.mxu0 0.0
        %5245 = vmatpush1.msra.mxu0 0.0
        %5246 = vmatprep.subr.mxu0 0.0
        %5247 = vmatpush1.msra.mxu0 0.0
        %5248 = vmatprep.subr.mxu0 0.0
        %5249 = vmatpush1.msra.mxu0 0.0
        %5250 = vmatprep.subr.mxu0 0.0
        %5251 = vmatpush1.msra.mxu0 0.0
        %5252 = vmatprep.subr.mxu0 0.0
        %5253 = vmatpush1.msra.mxu0 0.0
        %5254 = vmatprep.subr.mxu0 0.0
        %5255 = vmatpush1.msra.mxu0 0.0
        %5256 = vmatprep.subr.mxu0 0.0
        %5257 = vmatpush1.msra.mxu0 0.0
        %5258 = vmatprep.subr.mxu0 0.0
        %5259 = vmatpush1.msra.mxu0 0.0
        %5260 = vmatprep.subr.mxu0 0.0
        %5261 = vmatpush1.msra.mxu0 0.0
        %5262 = vmatprep.subr.mxu0 0.0
        %5263 = vmatpush1.msra.mxu0 0.0
        %5264 = vmatprep.subr.mxu0 0.0
        %5265 = vmatpush1.msra.mxu0 0.0
        %5266 = vmatprep.subr.mxu0 0.0
        %5267 = vmatpush1.msra.mxu0 0.0
        %5268 = vmatprep.mubr.f32.mxu0 0.0
        %5269 = vmatmul.mubr.f32.gmra.mrb[0].mxu0 %v5202
        %v5270 = vpop.f32.mrb[0].mxu0
        %v5271 = vadd.f32 0.0, %v5270
        %v5272 = vpop.f32.mrb[0].mxu0
        %v5273 = vadd.f32 0.0, %v5272
        %5274 = vdwg.mxu0
        %5275 = vmatprep.subr.mxu0 %v5196
        %5276 = vmatpush1.msra.mxu0 %v5195
        %5277 = vmatprep.subr.mxu0 0.0
        %5278 = vmatpush1.msra.mxu0 0.0
        %5279 = vmatprep.subr.mxu0 0.0
        %5280 = vmatpush1.msra.mxu0 0.0
        %5281 = vmatprep.subr.mxu0 0.0
        %5282 = vmatpush1.msra.mxu0 0.0
        %5283 = vmatprep.subr.mxu0 0.0
        %5284 = vmatpush1.msra.mxu0 0.0
        %5285 = vmatprep.subr.mxu0 0.0
        %5286 = vmatpush1.msra.mxu0 0.0
        %5287 = vmatprep.subr.mxu0 0.0
        %5288 = vmatpush1.msra.mxu0 0.0
        %5289 = vmatprep.subr.mxu0 0.0
        %5290 = vmatpush1.msra.mxu0 0.0
        %5291 = vmatprep.subr.mxu0 0.0
        %5292 = vmatpush1.msra.mxu0 0.0
        %5293 = vmatprep.subr.mxu0 0.0
        %5294 = vmatpush1.msra.mxu0 0.0
        %5295 = vmatprep.subr.mxu0 0.0
        %5296 = vmatpush1.msra.mxu0 0.0
        %5297 = vmatprep.subr.mxu0 0.0
        %5298 = vmatpush1.msra.mxu0 0.0
        %5299 = vmatprep.subr.mxu0 0.0
        %5300 = vmatpush1.msra.mxu0 0.0
        %5301 = vmatprep.subr.mxu0 0.0
        %5302 = vmatpush1.msra.mxu0 0.0
        %5303 = vmatprep.subr.mxu0 0.0
        %5304 = vmatpush1.msra.mxu0 0.0
        %5305 = vmatprep.subr.mxu0 0.0
        %5306 = vmatpush1.msra.mxu0 0.0
        %5307 = vmatprep.subr.mxu0 0.0
        %5308 = vmatpush1.msra.mxu0 0.0
        %5309 = vmatprep.subr.mxu0 0.0
        %5310 = vmatpush1.msra.mxu0 0.0
        %5311 = vmatprep.subr.mxu0 0.0
        %5312 = vmatpush1.msra.mxu0 0.0
        %5313 = vmatprep.subr.mxu0 0.0
        %5314 = vmatpush1.msra.mxu0 0.0
        %5315 = vmatprep.subr.mxu0 0.0
        %5316 = vmatpush1.msra.mxu0 0.0
        %5317 = vmatprep.subr.mxu0 0.0
        %5318 = vmatpush1.msra.mxu0 0.0
        %5319 = vmatprep.subr.mxu0 0.0
        %5320 = vmatpush1.msra.mxu0 0.0
        %5321 = vmatprep.subr.mxu0 0.0
        %5322 = vmatpush1.msra.mxu0 0.0
        %5323 = vmatprep.subr.mxu0 0.0
        %5324 = vmatpush1.msra.mxu0 0.0
        %5325 = vmatprep.subr.mxu0 0.0
        %5326 = vmatpush1.msra.mxu0 0.0
        %5327 = vmatprep.subr.mxu0 0.0
        %5328 = vmatpush1.msra.mxu0 0.0
        %5329 = vmatprep.subr.mxu0 0.0
        %5330 = vmatpush1.msra.mxu0 0.0
        %5331 = vmatprep.subr.mxu0 0.0
        %5332 = vmatpush1.msra.mxu0 0.0
        %5333 = vmatprep.subr.mxu0 0.0
        %5334 = vmatpush1.msra.mxu0 0.0
        %5335 = vmatprep.subr.mxu0 0.0
        %5336 = vmatpush1.msra.mxu0 0.0
        %5337 = vmatprep.subr.mxu0 0.0
        %5338 = vmatpush1.msra.mxu0 0.0
        %5339 = vmatprep.mubr.f32.mxu0 0.0
        %5340 = vmatmul.mubr.f32.gmra.mrb[0].mxu0 %v5202
        %v5341 = vpop.f32.mrb[0].mxu0
        %v5342 = vadd.f32 0.0, %v5341
        %v5343 = vpop.f32.mrb[0].mxu0
        %v5344 = vadd.f32 0.0, %v5343
        %5345 = vdwg.mxu0
        %v5346 = vadd.f32 %v5132, %v5271
        %v5347 = vadd.f32 %v5133, %v5273
        %v5348 = vadd.f32 %v5134, %v5342
        %v5349 = vadd.f32 %v5135, %v5344
        %s5350 = scalar_lea.vmem %s2, 96
        %v5351 = vld [vmem:[%s5350] ss:$8 sm:$0xf]
        %v5353 = vlaneseq
        %v5354 = vshrl.u32 %v5353, 7
        %v5355 = vsub.s32 0, %v5354
        %v5356 = vrot.slane %v5351, %v5355
        %v5357 = vlaneseq
        %v5358 = vshrl.u32 %v5357, 7
        %v5359 = vsub.s32 1, %v5358
        %v5360 = vrot.slane %v5351, %v5359
        %v5361 = vlaneseq
        %v5362 = vshrl.u32 %v5361, 7
        %v5363 = vsub.s32 2, %v5362
        %v5364 = vrot.slane %v5351, %v5363
        %v5365 = vlaneseq
        %v5366 = vshrl.u32 %v5365, 7
        %v5367 = vsub.s32 3, %v5366
        %v5368 = vrot.slane %v5351, %v5367
        %5369 = vrot.lane.b32.xlu0 %v5356, 71
        %v5370 = vpop.permute.xlu0 %5369
        %5371 = vrot.lane.b32.xlu0 %v5360, 71
        %v5372 = vpop.permute.xlu0 %5371
        %5373 = vrot.lane.b32.xlu0 %v5364, 71
        %v5374 = vpop.permute.xlu0 %5373
        %5375 = vrot.lane.b32.xlu0 %v5368, 71
        %v5376 = vpop.permute.xlu0 %5375
        %v5377 = vsel %vm746, %v5370, %v5372
        %v5378 = vsel %vm746, %v5372, %v5374
        %v5379 = vsel %vm746, %v5374, %v5376
        %v5385 = vmul.f32 %v3205, %v5370
        %v5386 = vmul.f32 %v3206, %v5377
        %v5387 = vmul.f32 %v3207, %v5378
        %v5388 = vmul.f32 %v3208, %v5379
        %v5389 = vmul.f32 %v3209, %v5376
        %s5390 = scalar_lea.vmem %s1, 192
        %v5391 = vld [vmem:[%s5390] sm:$0xff]
        %5397 = vrot.lane.b32.xlu0 %v5385, 57
        %v5398 = vpop.permute.xlu0 %5397
        %5399 = vrot.lane.b32.xlu0 %v5386, 57
        %v5400 = vpop.permute.xlu0 %5399
        %5401 = vrot.lane.b32.xlu0 %v5387, 57
        %v5402 = vpop.permute.xlu0 %5401
        %5403 = vrot.lane.b32.xlu0 %v5388, 57
        %v5404 = vpop.permute.xlu0 %5403
        %5405 = vrot.lane.b32.xlu0 %v5389, 57
        %v5406 = vpop.permute.xlu0 %5405
        %v5407 = vsel %vm715, %v5398, %v5400
        %v5408 = vsel %vm715, %v5400, %v5402
        %v5409 = vsel %vm715, %v5402, %v5404
        %v5410 = vsel %vm715, %v5404, %v5406
        %v5416 = vsel %vm373, %v5391, 0
        %5418 = vmatprep.subr.mxu0 %v5408
        %5419 = vmatpush1.msra.mxu0 %v5407
        %5420 = vmatprep.subr.mxu0 0.0
        %5421 = vmatpush1.msra.mxu0 0.0
        %5422 = vmatprep.subr.mxu0 0.0
        %5423 = vmatpush1.msra.mxu0 0.0
        %5424 = vmatprep.subr.mxu0 0.0
        %5425 = vmatpush1.msra.mxu0 0.0
        %5426 = vmatprep.subr.mxu0 0.0
        %5427 = vmatpush1.msra.mxu0 0.0
        %5428 = vmatprep.subr.mxu0 0.0
        %5429 = vmatpush1.msra.mxu0 0.0
        %5430 = vmatprep.subr.mxu0 0.0
        %5431 = vmatpush1.msra.mxu0 0.0
        %5432 = vmatprep.subr.mxu0 0.0
        %5433 = vmatpush1.msra.mxu0 0.0
        %5434 = vmatprep.subr.mxu0 0.0
        %5435 = vmatpush1.msra.mxu0 0.0
        %5436 = vmatprep.subr.mxu0 0.0
        %5437 = vmatpush1.msra.mxu0 0.0
        %5438 = vmatprep.subr.mxu0 0.0
        %5439 = vmatpush1.msra.mxu0 0.0
        %5440 = vmatprep.subr.mxu0 0.0
        %5441 = vmatpush1.msra.mxu0 0.0
        %5442 = vmatprep.subr.mxu0 0.0
        %5443 = vmatpush1.msra.mxu0 0.0
        %5444 = vmatprep.subr.mxu0 0.0
        %5445 = vmatpush1.msra.mxu0 0.0
        %5446 = vmatprep.subr.mxu0 0.0
        %5447 = vmatpush1.msra.mxu0 0.0
        %5448 = vmatprep.subr.mxu0 0.0
        %5449 = vmatpush1.msra.mxu0 0.0
        %5450 = vmatprep.subr.mxu0 0.0
        %5451 = vmatpush1.msra.mxu0 0.0
        %5452 = vmatprep.subr.mxu0 0.0
        %5453 = vmatpush1.msra.mxu0 0.0
        %5454 = vmatprep.subr.mxu0 0.0
        %5455 = vmatpush1.msra.mxu0 0.0
        %5456 = vmatprep.subr.mxu0 0.0
        %5457 = vmatpush1.msra.mxu0 0.0
        %5458 = vmatprep.subr.mxu0 0.0
        %5459 = vmatpush1.msra.mxu0 0.0
        %5460 = vmatprep.subr.mxu0 0.0
        %5461 = vmatpush1.msra.mxu0 0.0
        %5462 = vmatprep.subr.mxu0 0.0
        %5463 = vmatpush1.msra.mxu0 0.0
        %5464 = vmatprep.subr.mxu0 0.0
        %5465 = vmatpush1.msra.mxu0 0.0
        %5466 = vmatprep.subr.mxu0 0.0
        %5467 = vmatpush1.msra.mxu0 0.0
        %5468 = vmatprep.subr.mxu0 0.0
        %5469 = vmatpush1.msra.mxu0 0.0
        %5470 = vmatprep.subr.mxu0 0.0
        %5471 = vmatpush1.msra.mxu0 0.0
        %5472 = vmatprep.subr.mxu0 0.0
        %5473 = vmatpush1.msra.mxu0 0.0
        %5474 = vmatprep.subr.mxu0 0.0
        %5475 = vmatpush1.msra.mxu0 0.0
        %5476 = vmatprep.subr.mxu0 0.0
        %5477 = vmatpush1.msra.mxu0 0.0
        %5478 = vmatprep.subr.mxu0 0.0
        %5479 = vmatpush1.msra.mxu0 0.0
        %5480 = vmatprep.subr.mxu0 0.0
        %5481 = vmatpush1.msra.mxu0 0.0
        %5482 = vmatprep.mubr.f32.mxu0 0.0
        %5483 = vmatmul.mubr.f32.gmra.mrb[0].mxu0 %v5416
        %v5484 = vpop.f32.mrb[0].mxu0
        %v5485 = vadd.f32 0.0, %v5484
        %v5486 = vpop.f32.mrb[0].mxu0
        %v5487 = vadd.f32 0.0, %v5486
        %5488 = vdwg.mxu0
        %5489 = vmatprep.subr.mxu0 %v5410
        %5490 = vmatpush1.msra.mxu0 %v5409
        %5491 = vmatprep.subr.mxu0 0.0
        %5492 = vmatpush1.msra.mxu0 0.0
        %5493 = vmatprep.subr.mxu0 0.0
        %5494 = vmatpush1.msra.mxu0 0.0
        %5495 = vmatprep.subr.mxu0 0.0
        %5496 = vmatpush1.msra.mxu0 0.0
        %5497 = vmatprep.subr.mxu0 0.0
        %5498 = vmatpush1.msra.mxu0 0.0
        %5499 = vmatprep.subr.mxu0 0.0
        %5500 = vmatpush1.msra.mxu0 0.0
        %5501 = vmatprep.subr.mxu0 0.0
        %5502 = vmatpush1.msra.mxu0 0.0
        %5503 = vmatprep.subr.mxu0 0.0
        %5504 = vmatpush1.msra.mxu0 0.0
        %5505 = vmatprep.subr.mxu0 0.0
        %5506 = vmatpush1.msra.mxu0 0.0
        %5507 = vmatprep.subr.mxu0 0.0
        %5508 = vmatpush1.msra.mxu0 0.0
        %5509 = vmatprep.subr.mxu0 0.0
        %5510 = vmatpush1.msra.mxu0 0.0
        %5511 = vmatprep.subr.mxu0 0.0
        %5512 = vmatpush1.msra.mxu0 0.0
        %5513 = vmatprep.subr.mxu0 0.0
        %5514 = vmatpush1.msra.mxu0 0.0
        %5515 = vmatprep.subr.mxu0 0.0
        %5516 = vmatpush1.msra.mxu0 0.0
        %5517 = vmatprep.subr.mxu0 0.0
        %5518 = vmatpush1.msra.mxu0 0.0
        %5519 = vmatprep.subr.mxu0 0.0
        %5520 = vmatpush1.msra.mxu0 0.0
        %5521 = vmatprep.subr.mxu0 0.0
        %5522 = vmatpush1.msra.mxu0 0.0
        %5523 = vmatprep.subr.mxu0 0.0
        %5524 = vmatpush1.msra.mxu0 0.0
        %5525 = vmatprep.subr.mxu0 0.0
        %5526 = vmatpush1.msra.mxu0 0.0
        %5527 = vmatprep.subr.mxu0 0.0
        %5528 = vmatpush1.msra.mxu0 0.0
        %5529 = vmatprep.subr.mxu0 0.0
        %5530 = vmatpush1.msra.mxu0 0.0
        %5531 = vmatprep.subr.mxu0 0.0
        %5532 = vmatpush1.msra.mxu0 0.0
        %5533 = vmatprep.subr.mxu0 0.0
        %5534 = vmatpush1.msra.mxu0 0.0
        %5535 = vmatprep.subr.mxu0 0.0
        %5536 = vmatpush1.msra.mxu0 0.0
        %5537 = vmatprep.subr.mxu0 0.0
        %5538 = vmatpush1.msra.mxu0 0.0
        %5539 = vmatprep.subr.mxu0 0.0
        %5540 = vmatpush1.msra.mxu0 0.0
        %5541 = vmatprep.subr.mxu0 0.0
        %5542 = vmatpush1.msra.mxu0 0.0
        %5543 = vmatprep.subr.mxu0 0.0
        %5544 = vmatpush1.msra.mxu0 0.0
        %5545 = vmatprep.subr.mxu0 0.0
        %5546 = vmatpush1.msra.mxu0 0.0
        %5547 = vmatprep.subr.mxu0 0.0
        %5548 = vmatpush1.msra.mxu0 0.0
        %5549 = vmatprep.subr.mxu0 0.0
        %5550 = vmatpush1.msra.mxu0 0.0
        %5551 = vmatprep.subr.mxu0 0.0
        %5552 = vmatpush1.msra.mxu0 0.0
        %5553 = vmatprep.mubr.f32.mxu0 0.0
        %5554 = vmatmul.mubr.f32.gmra.mrb[0].mxu0 %v5416
        %v5555 = vpop.f32.mrb[0].mxu0
        %v5556 = vadd.f32 0.0, %v5555
        %v5557 = vpop.f32.mrb[0].mxu0
        %v5558 = vadd.f32 0.0, %v5557
        %5559 = vdwg.mxu0
        %v5560 = vadd.f32 %v5346, %v5485
        %v5561 = vadd.f32 %v5347, %v5487
        %v5562 = vadd.f32 %v5348, %v5556
        %v5563 = vadd.f32 %v5349, %v5558
        %s5564 = scalar_lea.vmem %s2, 97
        %v5565 = vld [vmem:[%s5564] ss:$8 sm:$0xf]
        %v5567 = vlaneseq
        %v5568 = vshrl.u32 %v5567, 7
        %v5569 = vsub.s32 0, %v5568
        %v5570 = vrot.slane %v5565, %v5569
        %v5571 = vlaneseq
        %v5572 = vshrl.u32 %v5571, 7
        %v5573 = vsub.s32 1, %v5572
        %v5574 = vrot.slane %v5565, %v5573
        %v5575 = vlaneseq
        %v5576 = vshrl.u32 %v5575, 7
        %v5577 = vsub.s32 2, %v5576
        %v5578 = vrot.slane %v5565, %v5577
        %v5579 = vlaneseq
        %v5580 = vshrl.u32 %v5579, 7
        %v5581 = vsub.s32 3, %v5580
        %v5582 = vrot.slane %v5565, %v5581
        %5583 = vrot.lane.b32.xlu0 %v5570, 72
        %v5584 = vpop.permute.xlu0 %5583
        %5585 = vrot.lane.b32.xlu0 %v5574, 72
        %v5586 = vpop.permute.xlu0 %5585
        %5587 = vrot.lane.b32.xlu0 %v5578, 72
        %v5588 = vpop.permute.xlu0 %5587
        %5589 = vrot.lane.b32.xlu0 %v5582, 72
        %v5590 = vpop.permute.xlu0 %5589
        %v5591 = vsel %vm364, %v5584, %v5586
        %v5592 = vsel %vm364, %v5586, %v5588
        %v5593 = vsel %vm364, %v5588, %v5590
        %v5599 = vmul.f32 %v3205, %v5584
        %v5600 = vmul.f32 %v3206, %v5591
        %v5601 = vmul.f32 %v3207, %v5592
        %v5602 = vmul.f32 %v3208, %v5593
        %v5603 = vmul.f32 %v3209, %v5590
        %s5604 = scalar_lea.vmem %s1, 200
        %v5605 = vld [vmem:[%s5604] sm:$0xff]
        %5611 = vrot.lane.b32.xlu0 %v5599, 56
        %v5612 = vpop.permute.xlu0 %5611
        %5613 = vrot.lane.b32.xlu0 %v5600, 56
        %v5614 = vpop.permute.xlu0 %5613
        %5615 = vrot.lane.b32.xlu0 %v5601, 56
        %v5616 = vpop.permute.xlu0 %5615
        %5617 = vrot.lane.b32.xlu0 %v5602, 56
        %v5618 = vpop.permute.xlu0 %5617
        %5619 = vrot.lane.b32.xlu0 %v5603, 56
        %v5620 = vpop.permute.xlu0 %5619
        %v5621 = vsel %vm333, %v5612, %v5614
        %v5622 = vsel %vm333, %v5614, %v5616
        %v5623 = vsel %vm333, %v5616, %v5618
        %v5624 = vsel %vm333, %v5618, %v5620
        %v5630 = vsel %vm373, %v5605, 0
        %5632 = vmatprep.subr.mxu0 %v5622
        %5633 = vmatpush1.msra.mxu0 %v5621
        %5634 = vmatprep.subr.mxu0 0.0
        %5635 = vmatpush1.msra.mxu0 0.0
        %5636 = vmatprep.subr.mxu0 0.0
        %5637 = vmatpush1.msra.mxu0 0.0
        %5638 = vmatprep.subr.mxu0 0.0
        %5639 = vmatpush1.msra.mxu0 0.0
        %5640 = vmatprep.subr.mxu0 0.0
        %5641 = vmatpush1.msra.mxu0 0.0
        %5642 = vmatprep.subr.mxu0 0.0
        %5643 = vmatpush1.msra.mxu0 0.0
        %5644 = vmatprep.subr.mxu0 0.0
        %5645 = vmatpush1.msra.mxu0 0.0
        %5646 = vmatprep.subr.mxu0 0.0
        %5647 = vmatpush1.msra.mxu0 0.0
        %5648 = vmatprep.subr.mxu0 0.0
        %5649 = vmatpush1.msra.mxu0 0.0
        %5650 = vmatprep.subr.mxu0 0.0
        %5651 = vmatpush1.msra.mxu0 0.0
        %5652 = vmatprep.subr.mxu0 0.0
        %5653 = vmatpush1.msra.mxu0 0.0
        %5654 = vmatprep.subr.mxu0 0.0
        %5655 = vmatpush1.msra.mxu0 0.0
        %5656 = vmatprep.subr.mxu0 0.0
        %5657 = vmatpush1.msra.mxu0 0.0
        %5658 = vmatprep.subr.mxu0 0.0
        %5659 = vmatpush1.msra.mxu0 0.0
        %5660 = vmatprep.subr.mxu0 0.0
        %5661 = vmatpush1.msra.mxu0 0.0
        %5662 = vmatprep.subr.mxu0 0.0
        %5663 = vmatpush1.msra.mxu0 0.0
        %5664 = vmatprep.subr.mxu0 0.0
        %5665 = vmatpush1.msra.mxu0 0.0
        %5666 = vmatprep.subr.mxu0 0.0
        %5667 = vmatpush1.msra.mxu0 0.0
        %5668 = vmatprep.subr.mxu0 0.0
        %5669 = vmatpush1.msra.mxu0 0.0
        %5670 = vmatprep.subr.mxu0 0.0
        %5671 = vmatpush1.msra.mxu0 0.0
        %5672 = vmatprep.subr.mxu0 0.0
        %5673 = vmatpush1.msra.mxu0 0.0
        %5674 = vmatprep.subr.mxu0 0.0
        %5675 = vmatpush1.msra.mxu0 0.0
        %5676 = vmatprep.subr.mxu0 0.0
        %5677 = vmatpush1.msra.mxu0 0.0
        %5678 = vmatprep.subr.mxu0 0.0
        %5679 = vmatpush1.msra.mxu0 0.0
        %5680 = vmatprep.subr.mxu0 0.0
        %5681 = vmatpush1.msra.mxu0 0.0
        %5682 = vmatprep.subr.mxu0 0.0
        %5683 = vmatpush1.msra.mxu0 0.0
        %5684 = vmatprep.subr.mxu0 0.0
        %5685 = vmatpush1.msra.mxu0 0.0
        %5686 = vmatprep.subr.mxu0 0.0
        %5687 = vmatpush1.msra.mxu0 0.0
        %5688 = vmatprep.subr.mxu0 0.0
        %5689 = vmatpush1.msra.mxu0 0.0
        %5690 = vmatprep.subr.mxu0 0.0
        %5691 = vmatpush1.msra.mxu0 0.0
        %5692 = vmatprep.subr.mxu0 0.0
        %5693 = vmatpush1.msra.mxu0 0.0
        %5694 = vmatprep.subr.mxu0 0.0
        %5695 = vmatpush1.msra.mxu0 0.0
        %5696 = vmatprep.mubr.f32.mxu0 0.0
        %5697 = vmatmul.mubr.f32.gmra.mrb[0].mxu0 %v5630
        %v5698 = vpop.f32.mrb[0].mxu0
        %v5699 = vadd.f32 0.0, %v5698
        %v5700 = vpop.f32.mrb[0].mxu0
        %v5701 = vadd.f32 0.0, %v5700
        %5702 = vdwg.mxu0
        %5703 = vmatprep.subr.mxu0 %v5624
        %5704 = vmatpush1.msra.mxu0 %v5623
        %5705 = vmatprep.subr.mxu0 0.0
        %5706 = vmatpush1.msra.mxu0 0.0
        %5707 = vmatprep.subr.mxu0 0.0
        %5708 = vmatpush1.msra.mxu0 0.0
        %5709 = vmatprep.subr.mxu0 0.0
        %5710 = vmatpush1.msra.mxu0 0.0
        %5711 = vmatprep.subr.mxu0 0.0
        %5712 = vmatpush1.msra.mxu0 0.0
        %5713 = vmatprep.subr.mxu0 0.0
        %5714 = vmatpush1.msra.mxu0 0.0
        %5715 = vmatprep.subr.mxu0 0.0
        %5716 = vmatpush1.msra.mxu0 0.0
        %5717 = vmatprep.subr.mxu0 0.0
        %5718 = vmatpush1.msra.mxu0 0.0
        %5719 = vmatprep.subr.mxu0 0.0
        %5720 = vmatpush1.msra.mxu0 0.0
        %5721 = vmatprep.subr.mxu0 0.0
        %5722 = vmatpush1.msra.mxu0 0.0
        %5723 = vmatprep.subr.mxu0 0.0
        %5724 = vmatpush1.msra.mxu0 0.0
        %5725 = vmatprep.subr.mxu0 0.0
        %5726 = vmatpush1.msra.mxu0 0.0
        %5727 = vmatprep.subr.mxu0 0.0
        %5728 = vmatpush1.msra.mxu0 0.0
        %5729 = vmatprep.subr.mxu0 0.0
        %5730 = vmatpush1.msra.mxu0 0.0
        %5731 = vmatprep.subr.mxu0 0.0
        %5732 = vmatpush1.msra.mxu0 0.0
        %5733 = vmatprep.subr.mxu0 0.0
        %5734 = vmatpush1.msra.mxu0 0.0
        %5735 = vmatprep.subr.mxu0 0.0
        %5736 = vmatpush1.msra.mxu0 0.0
        %5737 = vmatprep.subr.mxu0 0.0
        %5738 = vmatpush1.msra.mxu0 0.0
        %5739 = vmatprep.subr.mxu0 0.0
        %5740 = vmatpush1.msra.mxu0 0.0
        %5741 = vmatprep.subr.mxu0 0.0
        %5742 = vmatpush1.msra.mxu0 0.0
        %5743 = vmatprep.subr.mxu0 0.0
        %5744 = vmatpush1.msra.mxu0 0.0
        %5745 = vmatprep.subr.mxu0 0.0
        %5746 = vmatpush1.msra.mxu0 0.0
        %5747 = vmatprep.subr.mxu0 0.0
        %5748 = vmatpush1.msra.mxu0 0.0
        %5749 = vmatprep.subr.mxu0 0.0
        %5750 = vmatpush1.msra.mxu0 0.0
        %5751 = vmatprep.subr.mxu0 0.0
        %5752 = vmatpush1.msra.mxu0 0.0
        %5753 = vmatprep.subr.mxu0 0.0
        %5754 = vmatpush1.msra.mxu0 0.0
        %5755 = vmatprep.subr.mxu0 0.0
        %5756 = vmatpush1.msra.mxu0 0.0
        %5757 = vmatprep.subr.mxu0 0.0
        %5758 = vmatpush1.msra.mxu0 0.0
        %5759 = vmatprep.subr.mxu0 0.0
        %5760 = vmatpush1.msra.mxu0 0.0
        %5761 = vmatprep.subr.mxu0 0.0
        %5762 = vmatpush1.msra.mxu0 0.0
        %5763 = vmatprep.subr.mxu0 0.0
        %5764 = vmatpush1.msra.mxu0 0.0
        %5765 = vmatprep.subr.mxu0 0.0
        %5766 = vmatpush1.msra.mxu0 0.0
        %5767 = vmatprep.mubr.f32.mxu0 0.0
        %5768 = vmatmul.mubr.f32.gmra.mrb[0].mxu0 %v5630
        %v5769 = vpop.f32.mrb[0].mxu0
        %v5770 = vadd.f32 0.0, %v5769
        %v5771 = vpop.f32.mrb[0].mxu0
        %v5772 = vadd.f32 0.0, %v5771
        %5773 = vdwg.mxu0
        %v5774 = vadd.f32 %v5560, %v5699
        %v5775 = vadd.f32 %v5561, %v5701
        %v5776 = vadd.f32 %v5562, %v5770
        %v5777 = vadd.f32 %v5563, %v5772
        %s5778 = scalar_lea.vmem %s2, 98
        %v5779 = vld [vmem:[%s5778] ss:$8 sm:$0xf]
        %v5781 = vlaneseq
        %v5782 = vshrl.u32 %v5781, 7
        %v5783 = vsub.s32 0, %v5782
        %v5784 = vrot.slane %v5779, %v5783
        %v5785 = vlaneseq
        %v5786 = vshrl.u32 %v5785, 7
        %v5787 = vsub.s32 1, %v5786
        %v5788 = vrot.slane %v5779, %v5787
        %v5789 = vlaneseq
        %v5790 = vshrl.u32 %v5789, 7
        %v5791 = vsub.s32 2, %v5790
        %v5792 = vrot.slane %v5779, %v5791
        %v5793 = vlaneseq
        %v5794 = vshrl.u32 %v5793, 7
        %v5795 = vsub.s32 3, %v5794
        %v5796 = vrot.slane %v5779, %v5795
        %5797 = vrot.lane.b32.xlu0 %v5784, 73
        %v5798 = vpop.permute.xlu0 %5797
        %5799 = vrot.lane.b32.xlu0 %v5788, 73
        %v5800 = vpop.permute.xlu0 %5799
        %5801 = vrot.lane.b32.xlu0 %v5792, 73
        %v5802 = vpop.permute.xlu0 %5801
        %5803 = vrot.lane.b32.xlu0 %v5796, 73
        %v5804 = vpop.permute.xlu0 %5803
        %v5805 = vsel %vm534, %v5798, %v5800
        %v5806 = vsel %vm534, %v5800, %v5802
        %v5807 = vsel %vm534, %v5802, %v5804
        %v5813 = vmul.f32 %v3205, %v5798
        %v5814 = vmul.f32 %v3206, %v5805
        %v5815 = vmul.f32 %v3207, %v5806
        %v5816 = vmul.f32 %v3208, %v5807
        %v5817 = vmul.f32 %v3209, %v5804
        %s5818 = scalar_lea.vmem %s1, 208
        %v5819 = vld [vmem:[%s5818] sm:$0xff]
        %5825 = vrot.lane.b32.xlu0 %v5813, 55
        %v5826 = vpop.permute.xlu0 %5825
        %5827 = vrot.lane.b32.xlu0 %v5814, 55
        %v5828 = vpop.permute.xlu0 %5827
        %5829 = vrot.lane.b32.xlu0 %v5815, 55
        %v5830 = vpop.permute.xlu0 %5829
        %5831 = vrot.lane.b32.xlu0 %v5816, 55
        %v5832 = vpop.permute.xlu0 %5831
        %5833 = vrot.lane.b32.xlu0 %v5817, 55
        %v5834 = vpop.permute.xlu0 %5833
        %v5835 = vsel %vm291, %v5826, %v5828
        %v5836 = vsel %vm291, %v5828, %v5830
        %v5837 = vsel %vm291, %v5830, %v5832
        %v5838 = vsel %vm291, %v5832, %v5834
        %v5844 = vsel %vm373, %v5819, 0
        %5846 = vmatprep.subr.mxu0 %v5836
        %5847 = vmatpush1.msra.mxu0 %v5835
        %5848 = vmatprep.subr.mxu0 0.0
        %5849 = vmatpush1.msra.mxu0 0.0
        %5850 = vmatprep.subr.mxu0 0.0
        %5851 = vmatpush1.msra.mxu0 0.0
        %5852 = vmatprep.subr.mxu0 0.0
        %5853 = vmatpush1.msra.mxu0 0.0
        %5854 = vmatprep.subr.mxu0 0.0
        %5855 = vmatpush1.msra.mxu0 0.0
        %5856 = vmatprep.subr.mxu0 0.0
        %5857 = vmatpush1.msra.mxu0 0.0
        %5858 = vmatprep.subr.mxu0 0.0
        %5859 = vmatpush1.msra.mxu0 0.0
        %5860 = vmatprep.subr.mxu0 0.0
        %5861 = vmatpush1.msra.mxu0 0.0
        %5862 = vmatprep.subr.mxu0 0.0
        %5863 = vmatpush1.msra.mxu0 0.0
        %5864 = vmatprep.subr.mxu0 0.0
        %5865 = vmatpush1.msra.mxu0 0.0
        %5866 = vmatprep.subr.mxu0 0.0
        %5867 = vmatpush1.msra.mxu0 0.0
        %5868 = vmatprep.subr.mxu0 0.0
        %5869 = vmatpush1.msra.mxu0 0.0
        %5870 = vmatprep.subr.mxu0 0.0
        %5871 = vmatpush1.msra.mxu0 0.0
        %5872 = vmatprep.subr.mxu0 0.0
        %5873 = vmatpush1.msra.mxu0 0.0
        %5874 = vmatprep.subr.mxu0 0.0
        %5875 = vmatpush1.msra.mxu0 0.0
        %5876 = vmatprep.subr.mxu0 0.0
        %5877 = vmatpush1.msra.mxu0 0.0
        %5878 = vmatprep.subr.mxu0 0.0
        %5879 = vmatpush1.msra.mxu0 0.0
        %5880 = vmatprep.subr.mxu0 0.0
        %5881 = vmatpush1.msra.mxu0 0.0
        %5882 = vmatprep.subr.mxu0 0.0
        %5883 = vmatpush1.msra.mxu0 0.0
        %5884 = vmatprep.subr.mxu0 0.0
        %5885 = vmatpush1.msra.mxu0 0.0
        %5886 = vmatprep.subr.mxu0 0.0
        %5887 = vmatpush1.msra.mxu0 0.0
        %5888 = vmatprep.subr.mxu0 0.0
        %5889 = vmatpush1.msra.mxu0 0.0
        %5890 = vmatprep.subr.mxu0 0.0
        %5891 = vmatpush1.msra.mxu0 0.0
        %5892 = vmatprep.subr.mxu0 0.0
        %5893 = vmatpush1.msra.mxu0 0.0
        %5894 = vmatprep.subr.mxu0 0.0
        %5895 = vmatpush1.msra.mxu0 0.0
        %5896 = vmatprep.subr.mxu0 0.0
        %5897 = vmatpush1.msra.mxu0 0.0
        %5898 = vmatprep.subr.mxu0 0.0
        %5899 = vmatpush1.msra.mxu0 0.0
        %5900 = vmatprep.subr.mxu0 0.0
        %5901 = vmatpush1.msra.mxu0 0.0
        %5902 = vmatprep.subr.mxu0 0.0
        %5903 = vmatpush1.msra.mxu0 0.0
        %5904 = vmatprep.subr.mxu0 0.0
        %5905 = vmatpush1.msra.mxu0 0.0
        %5906 = vmatprep.subr.mxu0 0.0
        %5907 = vmatpush1.msra.mxu0 0.0
        %5908 = vmatprep.subr.mxu0 0.0
        %5909 = vmatpush1.msra.mxu0 0.0
        %5910 = vmatprep.mubr.f32.mxu0 0.0
        %5911 = vmatmul.mubr.f32.gmra.mrb[0].mxu0 %v5844
        %v5912 = vpop.f32.mrb[0].mxu0
        %v5913 = vadd.f32 0.0, %v5912
        %v5914 = vpop.f32.mrb[0].mxu0
        %v5915 = vadd.f32 0.0, %v5914
        %5916 = vdwg.mxu0
        %5917 = vmatprep.subr.mxu0 %v5838
        %5918 = vmatpush1.msra.mxu0 %v5837
        %5919 = vmatprep.subr.mxu0 0.0
        %5920 = vmatpush1.msra.mxu0 0.0
        %5921 = vmatprep.subr.mxu0 0.0
        %5922 = vmatpush1.msra.mxu0 0.0
        %5923 = vmatprep.subr.mxu0 0.0
        %5924 = vmatpush1.msra.mxu0 0.0
        %5925 = vmatprep.subr.mxu0 0.0
        %5926 = vmatpush1.msra.mxu0 0.0
        %5927 = vmatprep.subr.mxu0 0.0
        %5928 = vmatpush1.msra.mxu0 0.0
        %5929 = vmatprep.subr.mxu0 0.0
        %5930 = vmatpush1.msra.mxu0 0.0
        %5931 = vmatprep.subr.mxu0 0.0
        %5932 = vmatpush1.msra.mxu0 0.0
        %5933 = vmatprep.subr.mxu0 0.0
        %5934 = vmatpush1.msra.mxu0 0.0
        %5935 = vmatprep.subr.mxu0 0.0
        %5936 = vmatpush1.msra.mxu0 0.0
        %5937 = vmatprep.subr.mxu0 0.0
        %5938 = vmatpush1.msra.mxu0 0.0
        %5939 = vmatprep.subr.mxu0 0.0
        %5940 = vmatpush1.msra.mxu0 0.0
        %5941 = vmatprep.subr.mxu0 0.0
        %5942 = vmatpush1.msra.mxu0 0.0
        %5943 = vmatprep.subr.mxu0 0.0
        %5944 = vmatpush1.msra.mxu0 0.0
        %5945 = vmatprep.subr.mxu0 0.0
        %5946 = vmatpush1.msra.mxu0 0.0
        %5947 = vmatprep.subr.mxu0 0.0
        %5948 = vmatpush1.msra.mxu0 0.0
        %5949 = vmatprep.subr.mxu0 0.0
        %5950 = vmatpush1.msra.mxu0 0.0
        %5951 = vmatprep.subr.mxu0 0.0
        %5952 = vmatpush1.msra.mxu0 0.0
        %5953 = vmatprep.subr.mxu0 0.0
        %5954 = vmatpush1.msra.mxu0 0.0
        %5955 = vmatprep.subr.mxu0 0.0
        %5956 = vmatpush1.msra.mxu0 0.0
        %5957 = vmatprep.subr.mxu0 0.0
        %5958 = vmatpush1.msra.mxu0 0.0
        %5959 = vmatprep.subr.mxu0 0.0
        %5960 = vmatpush1.msra.mxu0 0.0
        %5961 = vmatprep.subr.mxu0 0.0
        %5962 = vmatpush1.msra.mxu0 0.0
        %5963 = vmatprep.subr.mxu0 0.0
        %5964 = vmatpush1.msra.mxu0 0.0
        %5965 = vmatprep.subr.mxu0 0.0
        %5966 = vmatpush1.msra.mxu0 0.0
        %5967 = vmatprep.subr.mxu0 0.0
        %5968 = vmatpush1.msra.mxu0 0.0
        %5969 = vmatprep.subr.mxu0 0.0
        %5970 = vmatpush1.msra.mxu0 0.0
        %5971 = vmatprep.subr.mxu0 0.0
        %5972 = vmatpush1.msra.mxu0 0.0
        %5973 = vmatprep.subr.mxu0 0.0
        %5974 = vmatpush1.msra.mxu0 0.0
        %5975 = vmatprep.subr.mxu0 0.0
        %5976 = vmatpush1.msra.mxu0 0.0
        %5977 = vmatprep.subr.mxu0 0.0
        %5978 = vmatpush1.msra.mxu0 0.0
        %5979 = vmatprep.subr.mxu0 0.0
        %5980 = vmatpush1.msra.mxu0 0.0
        %5981 = vmatprep.mubr.f32.mxu0 0.0
        %5982 = vmatmul.mubr.f32.gmra.mrb[0].mxu0 %v5844
        %v5983 = vpop.f32.mrb[0].mxu0
        %v5984 = vadd.f32 0.0, %v5983
        %v5985 = vpop.f32.mrb[0].mxu0
        %v5986 = vadd.f32 0.0, %v5985
        %5987 = vdwg.mxu0
        %v5988 = vadd.f32 %v5774, %v5913
        %v5989 = vadd.f32 %v5775, %v5915
        %v5990 = vadd.f32 %v5776, %v5984
        %v5991 = vadd.f32 %v5777, %v5986
        %v5992 = vld [vmem:[%s3] sm:$0xff]
        %5994 = vset.pattern.permute.xlu0 0
        %5995 = vperm.xlu0 %5994, %v5992
        %v5996 = vpop.permute.xlu0 %5995
        %v5998 = vadd.f32 %v5988, %v5996
        %v5999 = vadd.f32 %v5989, %v5996
        %v6000 = vadd.f32 %v5990, %v5996
        %v6001 = vadd.f32 %v5991, %v5996
        %v6002 = vadd.f32 %v5998, %v5999
        %v6003 = vadd.f32 %v6002, %v6000
        %v6004 = vadd.f32 %v6003, %v6001
        %6005 = vadd.xlane.f32.xlu0 %v6004
        %v6006 = vpop.xlane.xlu0 %6005
        %v6007 = vmul.f32 %v5998, %v5998
        %v6008 = vmul.f32 %v5999, %v5999
        %v6009 = vmul.f32 %v6000, %v6000
        %v6010 = vmul.f32 %v6001, %v6001
        %v6011 = vadd.f32 %v6007, %v6008
        %v6012 = vadd.f32 %v6011, %v6009
        %v6013 = vadd.f32 %v6012, %v6010
        %6014 = vadd.xlane.f32.xlu0 %v6013
        %v6015 = vpop.xlane.xlu0 %6014
        %v6016 = vmul.f32 %v6006, 0.001953125
        %v6017 = vmul.f32 %v6015, 0.001953125
        %v6018 = vmul.f32 %v6016, %v6016
        %v6019 = vsub.f32 %v6017, %v6018
        %v6020 = vmax.f32 %v6019, 0.0
        %v6021 = vadd.f32 %v6020, 1e-05
        %v6022 = vrsqrt.pop %v6021
        %v6023 = vld [vmem:[%s4] sm:$0xff]
        %v6024 = vmul.f32 %v6023, %v6022
        %v6025 = vld [vmem:[%s5] sm:$0xff]
        %v6026 = vmul.f32 %v6016, %v6024
        %v6027 = vsub.f32 %v6025, %v6026
        %6029 = vset.pattern.permute.xlu0 0
        %6030 = vperm.xlu0 %6029, %v6024
        %v6031 = vpop.permute.xlu0 %6030
        %v6033 = vmul.f32 %v5998, %v6031
        %v6034 = vmul.f32 %v5999, %v6031
        %v6035 = vmul.f32 %v6000, %v6031
        %v6036 = vmul.f32 %v6001, %v6031
        %6038 = vset.pattern.permute.xlu0 0
        %6039 = vperm.xlu0 %6038, %v6027
        %v6040 = vpop.permute.xlu0 %6039
        %v6042 = vadd.f32 %v6033, %v6040
        %v6043 = vadd.f32 %v6034, %v6040
        %v6044 = vadd.f32 %v6035, %v6040
        %v6045 = vadd.f32 %v6036, %v6040
        %vm6046 = vcmp.ge.f32.partialorder %v6042, 0.0
        %vm6047 = vcmp.ge.f32.partialorder %v6043, 0.0
        %vm6048 = vcmp.ge.f32.partialorder %v6044, 0.0
        %vm6049 = vcmp.ge.f32.partialorder %v6045, 0.0
        %v6050 = vmul.f32 %v6042, 0.01
        %v6051 = vmul.f32 %v6043, 0.01
        %v6052 = vmul.f32 %v6044, 0.01
        %v6053 = vmul.f32 %v6045, 0.01
        %v6054 = vsel %vm6046, %v6042, %v6050
        %v6055 = vsel %vm6047, %v6043, %v6051
        %v6056 = vsel %vm6048, %v6044, %v6052
        %v6057 = vsel %vm6049, %v6045, %v6053
        %6058 = vst [vmem:[%s244] sm:$0xff] %v6054
        %6059 = vst [vmem:[%s244 + $0x8] sm:$0xff] %v6055
        %6060 = vst [vmem:[%s244 + $0x10] sm:$0xff] %v6056
        %6061 = vst [vmem:[%s244 + $0x18] sm:$0xff] %v6057
        %s6062 = sand.u32 %s159, 1
        %s6063 = scalar_lea.sflag [#allocation4], %s6062
        %s6064 = sand.u32 %s159, 1
        %s6065 = smul.addr %s6064, 32
        %s6066 = scalar_lea.vmem [#allocation3], %s6065
        // Predicated region
        $region45: #{tpu_custom_call.1} parent=43 // pred_check
          %p6067 = pneg %p169
        $region46: #{tpu_custom_call.1} parent=43 // pred_check_branch
          %6069 = sbr.rel (%p6067) target = $region48
        $region47: #{tpu_custom_call.1} parent=43 // pred_region
          %s6071 = ssub.s32 512, 512
          %6072 = vsyncadd %s6063, %s6071
          %s6073 = smul.addr %s20, 4
          %s6074 = smul.addr %s6073, 128
          %s6075 = scalar_lea.hbm %s6, %s6074
          %s6077 = sshll.u32 %s6066, 4
          %s6078 = int_to_ptr.vmem [resolvable:$true] %s6077
          %6080 = dma.vmem_to_hbm [thread:$0]  %s6078, 512, %s6075, %s6063
        $region48: #{tpu_custom_call.1} parent=43 // pred_fallthru
          _
      $region44: #{tpu_custom_call.1} parent=5 // pred_fallthru
        _
      %p6081 = scmp.le.s32.totalorder 2, %s15
      // Predicated region
      $region49: #{tpu_custom_call.1} parent=5 // pred_check
        %p6082 = pneg %p6081
      $region50: #{tpu_custom_call.1} parent=5 // pred_check_branch
        %6084 = sbr.rel (%p6082) target = $region52
      $region51: #{tpu_custom_call.1} parent=5 // pred_region
        %s6085 = ssub.s32 %s15, 2
        // Predicated region
        $region53: #{tpu_custom_call.1} parent=51 // pred_check
          %p6086 = pneg %p175
        $region54: #{tpu_custom_call.1} parent=51 // pred_check_branch
          %6088 = sbr.rel (%p6086) target = $region56
        $region55: #{tpu_custom_call.1} parent=51 // pred_region
          %s6089 = sand.u32 %s160, 1
          %s6090 = scalar_lea.sflag [#allocation4], %s6089
          %s6091 = sand.u32 %s160, 1
          %s6092 = smul.addr %s6091, 32
          %s6093 = scalar_lea.vmem [#allocation3], %s6092
          %6094 = dma.done %s6090, 512
        $region56: #{tpu_custom_call.1} parent=51 // pred_fallthru
          _
      $region52: #{tpu_custom_call.1} parent=5 // pred_fallthru
        _
    $region6: #{tpu_custom_call.1} parent=1 // loop_footer
      %s19 = sadd.s32 1, %s15
    $region7: #{tpu_custom_call.1} parent=1 // loop_footer_branch
      %14 = sbr.rel target = $region3
    $region8: #{tpu_custom_call.1} parent=1 // loop_exit
      _
    %6095 = vsyncpa [#allocation4], 1
    %s6096 = scalar_lea.sflag [#allocation4], 1
    %6097 = vsyncpa %s6096, 1

</llo_original>
